<compile_context>
chip_gen: v7x
topology: tpu7x:2x2x1
jax: 0.10.0
libtpu: 0.0.40
codegen_flags: <defaults>
</compile_context>

<pallas_src>
import numpy as np

import jax
import jax.numpy as jnp
from jax.experimental import pallas as pl
from jax.experimental.pallas import tpu as pltpu


_BN_EPS = 1e-5


def _round_up(n, m):
    return -(-n // m) * m


def _pick_batch_tile(B, max_tile=4):
    """Images per conv-trunk grid step.  Grid length stays >= 2 whenever B >= 2 so both
    v7x TensorCores get work; max_tile=4 bounds unrolled code size / live ranges."""
    if B <= 1:
        return 1
    return max(1, min(max_tile, B // 2))


# ----------------------------------------------------------------------------
# Trace-time (numpy) constants
# ----------------------------------------------------------------------------

def _conv_masks(H, W, s_pad):
    """(9, 1, s_pad) 0/1 masks: stencil tap k=(dy,dx) is valid at flat position s=h*W+w
    iff the neighbour (h+dy-1, w+dx-1) lies inside the HxW image (zero-padding conv).
    Padding lanes [H*W, s_pad) are zero for every tap."""
    S = H * W
    s = np.arange(S)
    h, w = s // W, s % W
    masks = np.zeros((9, 1, s_pad), np.float32)
    for k in range(9):
        oy, ox = k // 3 - 1, k % 3 - 1
        masks[k, 0, :S] = ((h + oy >= 0) & (h + oy < H) &
                           (w + ox >= 0) & (w + ox < W))
    return masks


def _pool_select(H, W, s_pad, out_cols):
    """(s_pad, out_cols) 0/1 compaction matrix: column q picks the flat index of the
    top-left element of 2x2 pooling window q; extra (lane-padding) columns stay zero."""
    Ho, Wo = H // 2, W // 2
    sel = np.zeros((s_pad, out_cols), np.float32)
    q = np.arange(Ho * Wo)
    p0 = 2 * (q // Wo) * W + 2 * (q % Wo)
    sel[p0, q] = 1.0
    return sel


# ----------------------------------------------------------------------------
# Pallas kernels
# ----------------------------------------------------------------------------

def _conv_bn_relu_pool(x, w_ref, scale_ref, shift_ref, mask_ref, sel_ref, width):
    """One fused conv3x3(pad=1) -> BN(eval) -> ReLU -> maxpool2x2 block.

    x: (Cin_pad, S) f32, channels on sublanes, flattened spatial on lanes.
    w_ref: (Cout, 9*Cin_pad) bf16 (tap-stacked weights).
    Returns the pooled activation (Cout, S_out) f32 in the same layout.
    """
    S = x.shape[-1]
    # Build the 9 rolled+masked tap copies and stack them along sublanes so the whole
    # 3x3 conv is ONE matmul with K = 9*Cin_pad.  Masks zero out-of-image / row-wrap /
    # lane-padding taps (they also cancel pltpu.roll wrap-around).
    taps = []
    for k in range(9):                               # unrolled at trace time
        oy, ox = k // 3 - 1, k % 3 - 1
        d = oy * width + ox                          # flat-index offset of this tap
        xs = x if d == 0 else pltpu.roll(x, shift=(-d) % S, axis=1)
        taps.append(xs * mask_ref[k])                # f32 on the VPU (safe on v5e)
    x_stack = jnp.concatenate(taps, axis=0).astype(jnp.bfloat16)     # (9*Cin_pad, S)
    acc = jnp.dot(w_ref[...], x_stack, preferred_element_type=jnp.float32)  # (Cout, S)
    # BN (folded eval-mode affine incl. conv bias) + ReLU in f32 on the VPU.
    y = jnp.maximum(acc * scale_ref[...] + shift_ref[...], 0.0)
    # 2x2 stride-2 max pool: max of the 4 window elements via lane rolls (XLU) + VPU max,
    # then compact the kept positions with a 0/1 bf16 selection matmul (stays lane-dense).
    m = jnp.maximum(y, pltpu.roll(y, shift=S - 1, axis=1))
    m = jnp.maximum(m, pltpu.roll(y, shift=S - width, axis=1))
    m = jnp.maximum(m, pltpu.roll(y, shift=S - width - 1, axis=1))
    return jnp.dot(m.astype(jnp.bfloat16), sel_ref[...],
                   preferred_element_type=jnp.float32)


def conv_trunk(x_nchw, layers, batch_tile=None):
    """All three conv blocks fused in a single pallas_call; a tile of images per step."""
    B, Cin, H, W = x_nchw.shape
    n_layers = len(layers)
    cin_pad = layers[0][0].shape[1] // 9              # first conv's sublane-padded Cin
    s_pad0 = _round_up(H * W, 128)

    bt = batch_tile if batch_tile is not None else _pick_batch_tile(B)
    B_pad = _round_up(B, bt)

    # bf16 input stream (halves the per-step DMA); NCHW consumed directly (no transpose).
    x = x_nchw.reshape(B, Cin, H * W).astype(jnp.bfloat16)
    x = jnp.pad(x, ((0, B_pad - B), (0, cin_pad - Cin), (0, s_pad0 - H * W)))

    args = [x]
    in_specs = [pl.BlockSpec((bt, cin_pad, s_pad0), lambda b: (b, 0, 0))]
    widths = []
    h, w, s_pad = H, W, s_pad0
    for w_stack, scale, shift in layers:
        widths.append(w)
        ho, wo = h // 2, w // 2
        s_out = _round_up(ho * wo, 128)               # lane-dense, incl. the last layer
        for arr in (w_stack, scale, shift,
                    jnp.asarray(_conv_masks(h, w, s_pad), jnp.float32),
                    jnp.asarray(_pool_select(h, w, s_pad, s_out), jnp.bfloat16)):
            args.append(arr)
            in_specs.append(
                pl.BlockSpec(arr.shape, lambda b, _n=arr.ndim: (0,) * _n))
        h, w, s_pad = ho, wo, s_out

    cout = layers[-1][0].shape[0]
    widths_t = tuple(widths)

    def kernel(*refs):
        x_ref, o_ref = refs[0], refs[-1]
        for b in range(bt):                           # unrolled batch tile
            p = x_ref[b].astype(jnp.float32)          # (cin_pad, s_pad0)
            for li in range(n_layers):
                w_r, sc_r, sh_r, mk_r, sel_r = refs[1 + 5 * li: 6 + 5 * li]
                p = _conv_bn_relu_pool(p, w_r, sc_r, sh_r, mk_r, sel_r, widths_t[li])
            o_ref[b] = p                              # (cout, 128) lane-dense store

    out = pl.pallas_call(
        kernel,
        out_shape=jax.ShapeDtypeStruct((B_pad, cout, s_pad), jnp.float32),
        grid=(B_pad // bt,),
        in_specs=in_specs,
        out_specs=pl.BlockSpec((bt, cout, s_pad), lambda b: (b, 0, 0)),
        compiler_params=pltpu.CompilerParams(
            dimension_semantics=("parallel",),
            vmem_limit_bytes=32 * 1024 * 1024),
    )(*args)
    return out[:B]                                    # (B, 64, 128); valid lanes [:16]


def _fc_head_kernel(x_ref, w1_ref, b1_ref, w2_ref, b2_ref, o_ref):
    x = x_ref[...].astype(jnp.bfloat16)                                  # (Bt, 1024)
    h = jnp.dot(x, w1_ref[...], preferred_element_type=jnp.float32)      # (Bt, 512)
    h = jnp.maximum(h + b1_ref[...], 0.0)
    # Dropout(0.5) is eval-mode identity.
    o_ref[...] = (jnp.dot(h.astype(jnp.bfloat16), w2_ref[...],
                          preferred_element_type=jnp.float32)
                  + b2_ref[...])                                         # (Bt, 128)


def fc_head(feats, w1, b1, w2, b2):
    """fc1 -> dropout(eval) -> ReLU -> fc2 (+ both biases) fused.  The grid splits the
    batch (complete logits per step: no partial-sum glue); 2 steps when B>1 so both v7x
    TensorCores get work, and on single-TC chips the extra step costs only ~0.35us."""
    B, K = feats.shape
    Nh = w1.shape[1]
    Np = w2.shape[1]
    num_classes = b2.shape[0]
    b2p = jnp.pad(b2, (0, Np - num_classes)).reshape(1, Np).astype(jnp.float32)

    n_split = 2 if B > 1 else 1
    bt = _round_up(-(-B // n_split), 8)               # sublane-aligned batch chunk
    B_pad = bt * n_split
    if B_pad != B:
        feats = jnp.pad(feats, ((0, B_pad - B), (0, 0)))

    out = pl.pallas_call(
        _fc_head_kernel,
        out_shape=jax.ShapeDtypeStruct((B_pad, Np), jnp.float32),
        grid=(n_split,),
        in_specs=[
            pl.BlockSpec((bt, K), lambda j: (j, 0)),
            pl.BlockSpec((K, Nh), lambda j: (0, 0)),
            pl.BlockSpec((1, Nh), lambda j: (0, 0)),
            pl.BlockSpec((Nh, Np), lambda j: (0, 0)),
            pl.BlockSpec((1, Np), lambda j: (0, 0)),
        ],
        out_specs=pl.BlockSpec((bt, Np), lambda j: (j, 0)),
        compiler_params=pltpu.CompilerParams(
            dimension_semantics=("parallel",)),
    )(feats, w1, b1, w2, b2p)
    return out[:B, :num_classes]


# ----------------------------------------------------------------------------
# Parameters, packing, forward
# ----------------------------------------------------------------------------

def init_params(key, num_classes=10, input_channels=3):
    ks = jax.random.split(key, 8)

    def conv_init(k, cout, cin):
        kw, kb = jax.random.split(k)
        return (jax.random.normal(kw, (cout, cin, 3, 3), jnp.float32) * 0.15,
                jax.random.normal(kb, (cout,), jnp.float32) * 0.1)

    def bn_init(c):
        # PyTorch fresh-init BatchNorm2d (eval): gamma=1, beta=0, mean=0, var=1
        return (jnp.ones((c,), jnp.float32), jnp.zeros((c,), jnp.float32),
                jnp.zeros((c,), jnp.float32), jnp.ones((c,), jnp.float32))

    def fc_init(k, fan_in, fan_out):
        kw, kb = jax.random.split(k)
        return (jax.random.normal(kw, (fan_in, fan_out), jnp.float32) * 0.05,
                jax.random.normal(kb, (fan_out,), jnp.float32) * 0.05)

    p = {}
    p["conv1_w"], p["conv1_b"] = conv_init(ks[0], 16, input_channels)
    p["bn1"] = bn_init(16)
    p["conv2_w"], p["conv2_b"] = conv_init(ks[1], 32, 16)
    p["bn2"] = bn_init(32)
    p["conv3_w"], p["conv3_b"] = conv_init(ks[2], 64, 32)
    p["bn3"] = bn_init(64)
    p["fc1_w"], p["fc1_b"] = fc_init(ks[3], 64 * 4 * 4, 512)
    p["fc2_w"], p["fc2_b"] = fc_init(ks[4], 512, num_classes)
    return p


def pack_params(params):
    """One-time repack (outside jit): conv weights tap-stacked to (Cout, 9*Cin_pad) bf16,
    conv bias + eval-BN folded into a (Cout, 1) f32 affine, fc weights bf16 (fc2 lane-
    padded 10->128, fc2 bias kept unpadded so num_classes stays a static shape)."""
    packed = {"layers": []}
    for i in (1, 2, 3):
        wt = params[f"conv{i}_w"]                       # (Cout, Cin, 3, 3) OIHW
        b = params[f"conv{i}_b"]
        gamma, beta, mean, var = params[f"bn{i}"]
        cout, cin = wt.shape[0], wt.shape[1]
        cin_p = _round_up(cin, 8)
        w9 = jnp.transpose(wt, (2, 3, 0, 1)).reshape(9, cout, cin)      # (k, co, ci)
        w9 = jnp.pad(w9, ((0, 0), (0, 0), (0, cin_p - cin)))
        w_stack = jnp.transpose(w9, (1, 0, 2)).reshape(cout, 9 * cin_p)  # k*cin_p + ci
        scale = gamma / jnp.sqrt(var + _BN_EPS)         # eval-mode BN
        shift = (b - mean) * scale + beta
        packed["layers"].append((w_stack.astype(jnp.bfloat16),
                                 scale.reshape(cout, 1).astype(jnp.float32),
                                 shift.reshape(cout, 1).astype(jnp.float32)))
    num_classes = params["fc2_w"].shape[1]
    n_pad = _round_up(num_classes, 128)
    packed["fc1_w"] = params["fc1_w"].astype(jnp.bfloat16)
    packed["fc1_b"] = params["fc1_b"].reshape(1, -1).astype(jnp.float32)
    packed["fc2_w"] = jnp.pad(params["fc2_w"],
                              ((0, 0), (0, n_pad - num_classes))).astype(jnp.bfloat16)
    packed["fc2_b"] = params["fc2_b"].astype(jnp.float32)     # (num_classes,)
    return packed


@jax.jit
def image_cnn_forward(x_nchw, packed):
    B, _, H, W = x_nchw.shape
    trunk = conv_trunk(x_nchw, packed["layers"])        # (B, 64, 128), torch (C,H,W) order
    so = (H // 8) * (W // 8)                            # valid pooled spatial (16)
    feats = trunk[:, :, :so].reshape(B, -1).astype(jnp.bfloat16)   # matches torch .view
    return fc_head(feats, packed["fc1_w"], packed["fc1_b"],
                   packed["fc2_w"], packed["fc2_b"])


# ----------------------------------------------------------------------------
# Pure-JAX reference (eval-mode semantics of the PyTorch module)
# ----------------------------------------------------------------------------

def reference_forward(x_nchw, params):
    x = x_nchw.astype(jnp.float32)
    for i in (1, 2, 3):
        wt, b = params[f"conv{i}_w"], params[f"conv{i}_b"]
        gamma, beta, mean, var = params[f"bn{i}"]
        x = jax.lax.conv_general_dilated(
            x, wt, window_strides=(1, 1), padding=((1, 1), (1, 1)),
            dimension_numbers=("NCHW", "OIHW", "NCHW"),
            precision=jax.lax.Precision.HIGHEST)
        x = x + b[None, :, None, None]
        x = (x - mean[None, :, None, None]) / jnp.sqrt(var[None, :, None, None] + _BN_EPS)
        x = gamma[None, :, None, None] * x + beta[None, :, None, None]
        x = jnp.maximum(x, 0.0)
        B, C, H, W = x.shape
        x = x.reshape(B, C, H // 2, 2, W // 2, 2).max(axis=(3, 5))
    x = x.reshape(x.shape[0], -1)
    x = jnp.maximum(x @ params["fc1_w"] + params["fc1_b"], 0.0)
    return x @ params["fc2_w"] + params["fc2_b"]


if __name__ == "__main__":
    key = jax.random.PRNGKey(0)
    k_x, k_p = jax.random.split(key)

    # fc1 expects 64*4*4 features after three 2x pools -> 32x32 spatial input.
    x = jax.random.normal(k_x, (2, 3, 32, 32), jnp.float32)      # NCHW, PyTorch layout
    params = init_params(k_p, num_classes=10, input_channels=3)
    packed = pack_params(params)

    out = jax.block_until_ready(image_cnn_forward(x, packed))
    assert out.shape == (2, 10), out.shape
    assert bool(jnp.all(jnp.isfinite(out)))

    # Correctness vs a pure-JAX f32 reference (kernels use bf16 MXU inputs -> tolerant).
    ref = jax.block_until_ready(reference_forward(x, params))
    err = float(jnp.max(jnp.abs(out - ref)) / (jnp.max(jnp.abs(ref)) + 1e-6))
    assert err < 0.1, f"mismatch vs reference: normalized max err {err:.4f}"

    print("KERNEL_OK")
</pallas_src>

<mosaic_0001>
module attributes {stable_mosaic.version = 11 : i64} {
  func.func @_fc_head_kernel(%arg0: i32, %arg1: memref<8x1024xbf16, #tpu.memory_space<vmem>>, %arg2: memref<1024x512xbf16, #tpu.memory_space<vmem>>, %arg3: memref<1x512xf32, #tpu.memory_space<vmem>>, %arg4: memref<512x128xbf16, #tpu.memory_space<vmem>>, %arg5: memref<1x128xf32, #tpu.memory_space<vmem>>, %arg6: memref<8x128xf32, #tpu.memory_space<vmem>>) attributes {dimension_semantics = [#tpu.dimension_semantics<parallel>], iteration_bounds = array<i64: 2>, scalar_prefetch = 0 : i64, scratch_operands = 0 : i64, tpu.core_type = #tpu.core_type<tc>, window_params = [{transform_indices = @transform_0, window_bounds = array<i64: 8, 1024>}, {pipeline_mode = #tpu.pipeline_mode<synchronous>, transform_indices = @transform_1, window_bounds = array<i64: 1024, 512>}, {pipeline_mode = #tpu.pipeline_mode<synchronous>, transform_indices = @transform_2, window_bounds = array<i64: 1, 512>}, {pipeline_mode = #tpu.pipeline_mode<synchronous>, transform_indices = @transform_3, window_bounds = array<i64: 512, 128>}, {pipeline_mode = #tpu.pipeline_mode<synchronous>, transform_indices = @transform_4, window_bounds = array<i64: 1, 128>}, {transform_indices = @transform_5, window_bounds = array<i64: 8, 128>}]} {
    %c0 = arith.constant 0 : index
    %c0_0 = arith.constant 0 : index
    %0 = vector.load %arg1[%c0, %c0_0] : memref<8x1024xbf16, #tpu.memory_space<vmem>>, vector<8x1024xbf16>
    %c0_1 = arith.constant 0 : index
    %c0_2 = arith.constant 0 : index
    %1 = vector.load %arg2[%c0_1, %c0_2] : memref<1024x512xbf16, #tpu.memory_space<vmem>>, vector<1024x512xbf16>
    %cst = arith.constant dense<0.000000e+00> : vector<8x512xf32>
    %2 = tpu.matmul %0, %1, %cst {dimension_numbers = #tpu.dot_dimension_numbers<[1], [0], [0], [1], [0, 0, 1, 1], [], []>} : vector<8x1024xbf16>, vector<1024x512xbf16>, vector<8x512xf32> -> vector<8x512xf32>
    %c0_3 = arith.constant 0 : index
    %c0_4 = arith.constant 0 : index
    %3 = vector.load %arg3[%c0_3, %c0_4] : memref<1x512xf32, #tpu.memory_space<vmem>>, vector<1x512xf32>
    %4 = vector.broadcast %3 : vector<1x512xf32> to vector<8x512xf32>
    %5 = arith.addf %2, %4 : vector<8x512xf32>
    %cst_5 = arith.constant 0.000000e+00 : f32
    %6 = vector.broadcast %cst_5 : f32 to vector<8x512xf32>
    %7 = arith.maximumf %5, %6 : vector<8x512xf32>
    %8 = arith.truncf %7 : vector<8x512xf32> to vector<8x512xbf16>
    %c0_6 = arith.constant 0 : index
    %c0_7 = arith.constant 0 : index
    %9 = vector.load %arg4[%c0_6, %c0_7] : memref<512x128xbf16, #tpu.memory_space<vmem>>, vector<512x128xbf16>
    %cst_8 = arith.constant dense<0.000000e+00> : vector<8x128xf32>
    %10 = tpu.matmul %8, %9, %cst_8 {dimension_numbers = #tpu.dot_dimension_numbers<[1], [0], [0], [1], [0, 0, 1, 1], [], []>} : vector<8x512xbf16>, vector<512x128xbf16>, vector<8x128xf32> -> vector<8x128xf32>
    %c0_9 = arith.constant 0 : index
    %c0_10 = arith.constant 0 : index
    %11 = vector.load %arg5[%c0_9, %c0_10] : memref<1x128xf32, #tpu.memory_space<vmem>>, vector<1x128xf32>
    %12 = vector.broadcast %11 : vector<1x128xf32> to vector<8x128xf32>
    %13 = arith.addf %10, %12 : vector<8x128xf32>
    %c0_11 = arith.constant 0 : index
    %c0_12 = arith.constant 0 : index
    %14 = vector.load %arg6[%c0_11, %c0_12] : memref<8x128xf32, #tpu.memory_space<vmem>>, vector<8x128xf32>
    tpu.vector_store %arg6[%c0_11, %c0_12], %13 {strides = array<i32>} : memref<8x128xf32, #tpu.memory_space<vmem>>, vector<8x128xf32>,
    return
  }
  func.func @transform_0(%arg0: i32) -> (i32, i32) {
    %c0_i32 = arith.constant 0 : i32
    %c0_i32_0 = arith.constant 0 : i32
    return %arg0, %c0_i32 : i32, i32
  }
  func.func @transform_1(%arg0: i32) -> (i32, i32) {
    %c0_i32 = arith.constant 0 : i32
    %c0_i32_0 = arith.constant 0 : i32
    %c0_i32_1 = arith.constant 0 : i32
    return %c0_i32, %c0_i32_0 : i32, i32
  }
  func.func @transform_2(%arg0: i32) -> (i32, i32) {
    %c0_i32 = arith.constant 0 : i32
    %c0_i32_0 = arith.constant 0 : i32
    %c0_i32_1 = arith.constant 0 : i32
    return %c0_i32, %c0_i32_0 : i32, i32
  }
  func.func @transform_3(%arg0: i32) -> (i32, i32) {
    %c0_i32 = arith.constant 0 : i32
    %c0_i32_0 = arith.constant 0 : i32
    %c0_i32_1 = arith.constant 0 : i32
    return %c0_i32, %c0_i32_0 : i32, i32
  }
  func.func @transform_4(%arg0: i32) -> (i32, i32) {
    %c0_i32 = arith.constant 0 : i32
    %c0_i32_0 = arith.constant 0 : i32
    %c0_i32_1 = arith.constant 0 : i32
    return %c0_i32, %c0_i32_0 : i32, i32
  }
  func.func @transform_5(%arg0: i32) -> (i32, i32) {
    %c0_i32 = arith.constant 0 : i32
    %c0_i32_0 = arith.constant 0 : i32
    return %arg0, %c0_i32 : i32, i32
  }
}

module attributes {stable_mosaic.version = 11 : i64} {
  func.func @kernel(%arg0: i32, %arg1: memref<1x8x1024xbf16, #tpu.memory_space<vmem>>, %arg2: memref<16x72xbf16, #tpu.memory_space<vmem>>, %arg3: memref<16x1xf32, #tpu.memory_space<vmem>>, %arg4: memref<16x1xf32, #tpu.memory_space<vmem>>, %arg5: memref<9x1x1024xf32, #tpu.memory_space<vmem>>, %arg6: memref<1024x256xbf16, #tpu.memory_space<vmem>>, %arg7: memref<32x144xbf16, #tpu.memory_space<vmem>>, %arg8: memref<32x1xf32, #tpu.memory_space<vmem>>, %arg9: memref<32x1xf32, #tpu.memory_space<vmem>>, %arg10: memref<9x1x256xf32, #tpu.memory_space<vmem>>, %arg11: memref<256x128xbf16, #tpu.memory_space<vmem>>, %arg12: memref<64x288xbf16, #tpu.memory_space<vmem>>, %arg13: memref<64x1xf32, #tpu.memory_space<vmem>>, %arg14: memref<64x1xf32, #tpu.memory_space<vmem>>, %arg15: memref<9x1x128xf32, #tpu.memory_space<vmem>>, %arg16: memref<128x128xbf16, #tpu.memory_space<vmem>>, %arg17: memref<1x64x128xf32, #tpu.memory_space<vmem>>) attributes {dimension_semantics = [#tpu.dimension_semantics<parallel>], iteration_bounds = array<i64: 2>, scalar_prefetch = 0 : i64, scratch_operands = 0 : i64, tpu.core_type = #tpu.core_type<tc>, window_params = [{transform_indices = @transform_0, window_bounds = array<i64: 1, 8, 1024>}, {pipeline_mode = #tpu.pipeline_mode<synchronous>, transform_indices = @transform_1, window_bounds = array<i64: 16, 72>}, {pipeline_mode = #tpu.pipeline_mode<synchronous>, transform_indices = @transform_2, window_bounds = array<i64: 16, 1>}, {pipeline_mode = #tpu.pipeline_mode<synchronous>, transform_indices = @transform_3, window_bounds = array<i64: 16, 1>}, {pipeline_mode = #tpu.pipeline_mode<synchronous>, transform_indices = @transform_4, window_bounds = array<i64: 9, 1, 1024>}, {pipeline_mode = #tpu.pipeline_mode<synchronous>, transform_indices = @transform_5, window_bounds = array<i64: 1024, 256>}, {pipeline_mode = #tpu.pipeline_mode<synchronous>, transform_indices = @transform_6, window_bounds = array<i64: 32, 144>}, {pipeline_mode = #tpu.pipeline_mode<synchronous>, transform_indices = @transform_7, window_bounds = array<i64: 32, 1>}, {pipeline_mode = #tpu.pipeline_mode<synchronous>, transform_indices = @transform_8, window_bounds = array<i64: 32, 1>}, {pipeline_mode = #tpu.pipeline_mode<synchronous>, transform_indices = @transform_9, window_bounds = array<i64: 9, 1, 256>}, {pipeline_mode = #tpu.pipeline_mode<synchronous>, transform_indices = @transform_10, window_bounds = array<i64: 256, 128>}, {pipeline_mode = #tpu.pipeline_mode<synchronous>, transform_indices = @transform_11, window_bounds = array<i64: 64, 288>}, {pipeline_mode = #tpu.pipeline_mode<synchronous>, transform_indices = @transform_12, window_bounds = array<i64: 64, 1>}, {pipeline_mode = #tpu.pipeline_mode<synchronous>, transform_indices = @transform_13, window_bounds = array<i64: 64, 1>}, {pipeline_mode = #tpu.pipeline_mode<synchronous>, transform_indices = @transform_14, window_bounds = array<i64: 9, 1, 128>}, {pipeline_mode = #tpu.pipeline_mode<synchronous>, transform_indices = @transform_15, window_bounds = array<i64: 128, 128>}, {transform_indices = @transform_16, window_bounds = array<i64: 1, 64, 128>}]} {
    %c0 = arith.constant 0 : index
    %c0_0 = arith.constant 0 : index
    %c0_1 = arith.constant 0 : index
    %0 = vector.load %arg1[%c0, %c0_0, %c0_1] : memref<1x8x1024xbf16, #tpu.memory_space<vmem>>, vector<1x8x1024xbf16>
    %1 = vector.shape_cast %0 : vector<1x8x1024xbf16> to vector<8x1024xbf16>
    %2 = arith.extf %1 : vector<8x1024xbf16> to vector<8x1024xf32>
    %c33_i32 = arith.constant 33 : i32
    %3 = tpu.dynamic_rotate %2 by %c33_i32 dim 1 : vector<8x1024xf32>, i32 -> vector<8x1024xf32>
    %c0_2 = arith.constant 0 : index
    %c0_3 = arith.constant 0 : index
    %c0_4 = arith.constant 0 : index
    %4 = vector.load %arg5[%c0_2, %c0_3, %c0_4] : memref<9x1x1024xf32, #tpu.memory_space<vmem>>, vector<1x1x1024xf32>
    %5 = vector.shape_cast %4 : vector<1x1x1024xf32> to vector<1x1024xf32>
    %6 = vector.broadcast %5 : vector<1x1024xf32> to vector<8x1024xf32>
    %7 = arith.mulf %3, %6 : vector<8x1024xf32>
    %c32_i32 = arith.constant 32 : i32
    %8 = tpu.dynamic_rotate %2 by %c32_i32 dim 1 : vector<8x1024xf32>, i32 -> vector<8x1024xf32>
    %c1 = arith.constant 1 : index
    %c0_5 = arith.constant 0 : index
    %c0_6 = arith.constant 0 : index
    %9 = vector.load %arg5[%c1, %c0_5, %c0_6] : memref<9x1x1024xf32, #tpu.memory_space<vmem>>, vector<1x1x1024xf32>
    %10 = vector.shape_cast %9 : vector<1x1x1024xf32> to vector<1x1024xf32>
    %11 = vector.broadcast %10 : vector<1x1024xf32> to vector<8x1024xf32>
    %12 = arith.mulf %8, %11 : vector<8x1024xf32>
    %c31_i32 = arith.constant 31 : i32
    %13 = tpu.dynamic_rotate %2 by %c31_i32 dim 1 : vector<8x1024xf32>, i32 -> vector<8x1024xf32>
    %c2 = arith.constant 2 : index
    %c0_7 = arith.constant 0 : index
    %c0_8 = arith.constant 0 : index
    %14 = vector.load %arg5[%c2, %c0_7, %c0_8] : memref<9x1x1024xf32, #tpu.memory_space<vmem>>, vector<1x1x1024xf32>
    %15 = vector.shape_cast %14 : vector<1x1x1024xf32> to vector<1x1024xf32>
    %16 = vector.broadcast %15 : vector<1x1024xf32> to vector<8x1024xf32>
    %17 = arith.mulf %13, %16 : vector<8x1024xf32>
    %c1_i32 = arith.constant 1 : i32
    %18 = tpu.dynamic_rotate %2 by %c1_i32 dim 1 : vector<8x1024xf32>, i32 -> vector<8x1024xf32>
    %c3 = arith.constant 3 : index
    %c0_9 = arith.constant 0 : index
    %c0_10 = arith.constant 0 : index
    %19 = vector.load %arg5[%c3, %c0_9, %c0_10] : memref<9x1x1024xf32, #tpu.memory_space<vmem>>, vector<1x1x1024xf32>
    %20 = vector.shape_cast %19 : vector<1x1x1024xf32> to vector<1x1024xf32>
    %21 = vector.broadcast %20 : vector<1x1024xf32> to vector<8x1024xf32>
    %22 = arith.mulf %18, %21 : vector<8x1024xf32>
    %c4 = arith.constant 4 : index
    %c0_11 = arith.constant 0 : index
    %c0_12 = arith.constant 0 : index
    %23 = vector.load %arg5[%c4, %c0_11, %c0_12] : memref<9x1x1024xf32, #tpu.memory_space<vmem>>, vector<1x1x1024xf32>
    %24 = vector.shape_cast %23 : vector<1x1x1024xf32> to vector<1x1024xf32>
    %25 = vector.broadcast %24 : vector<1x1024xf32> to vector<8x1024xf32>
    %26 = arith.mulf %2, %25 : vector<8x1024xf32>
    %c1023_i32 = arith.constant 1023 : i32
    %27 = tpu.dynamic_rotate %2 by %c1023_i32 dim 1 : vector<8x1024xf32>, i32 -> vector<8x1024xf32>
    %c5 = arith.constant 5 : index
    %c0_13 = arith.constant 0 : index
    %c0_14 = arith.constant 0 : index
    %28 = vector.load %arg5[%c5, %c0_13, %c0_14] : memref<9x1x1024xf32, #tpu.memory_space<vmem>>, vector<1x1x1024xf32>
    %29 = vector.shape_cast %28 : vector<1x1x1024xf32> to vector<1x1024xf32>
    %30 = vector.broadcast %29 : vector<1x1024xf32> to vector<8x1024xf32>
    %31 = arith.mulf %27, %30 : vector<8x1024xf32>
    %c993_i32 = arith.constant 993 : i32
    %32 = tpu.dynamic_rotate %2 by %c993_i32 dim 1 : vector<8x1024xf32>, i32 -> vector<8x1024xf32>
    %c6 = arith.constant 6 : index
    %c0_15 = arith.constant 0 : index
    %c0_16 = arith.constant 0 : index
    %33 = vector.load %arg5[%c6, %c0_15, %c0_16] : memref<9x1x1024xf32, #tpu.memory_space<vmem>>, vector<1x1x1024xf32>
    %34 = vector.shape_cast %33 : vector<1x1x1024xf32> to vector<1x1024xf32>
    %35 = vector.broadcast %34 : vector<1x1024xf32> to vector<8x1024xf32>
    %36 = arith.mulf %32, %35 : vector<8x1024xf32>
    %c992_i32 = arith.constant 992 : i32
    %37 = tpu.dynamic_rotate %2 by %c992_i32 dim 1 : vector<8x1024xf32>, i32 -> vector<8x1024xf32>
    %c7 = arith.constant 7 : index
    %c0_17 = arith.constant 0 : index
    %c0_18 = arith.constant 0 : index
    %38 = vector.load %arg5[%c7, %c0_17, %c0_18] : memref<9x1x1024xf32, #tpu.memory_space<vmem>>, vector<1x1x1024xf32>
    %39 = vector.shape_cast %38 : vector<1x1x1024xf32> to vector<1x1024xf32>
    %40 = vector.broadcast %39 : vector<1x1024xf32> to vector<8x1024xf32>
    %41 = arith.mulf %37, %40 : vector<8x1024xf32>
    %c991_i32 = arith.constant 991 : i32
    %42 = tpu.dynamic_rotate %2 by %c991_i32 dim 1 : vector<8x1024xf32>, i32 -> vector<8x1024xf32>
    %c8 = arith.constant 8 : index
    %c0_19 = arith.constant 0 : index
    %c0_20 = arith.constant 0 : index
    %43 = vector.load %arg5[%c8, %c0_19, %c0_20] : memref<9x1x1024xf32, #tpu.memory_space<vmem>>, vector<1x1x1024xf32>
    %44 = vector.shape_cast %43 : vector<1x1x1024xf32> to vector<1x1024xf32>
    %45 = vector.broadcast %44 : vector<1x1024xf32> to vector<8x1024xf32>
    %46 = arith.mulf %42, %45 : vector<8x1024xf32>
    %47 = tpu.concatenate %7, %12, %17, %22, %26, %31, %36, %41, %46 in 0 : vector<8x1024xf32>, vector<8x1024xf32>, vector<8x1024xf32>, vector<8x1024xf32>, vector<8x1024xf32>, vector<8x1024xf32>, vector<8x1024xf32>, vector<8x1024xf32>, vector<8x1024xf32> -> vector<72x1024xf32>
    %48 = arith.truncf %47 : vector<72x1024xf32> to vector<72x1024xbf16>
    %c0_21 = arith.constant 0 : index
    %c0_22 = arith.constant 0 : index
    %49 = vector.load %arg2[%c0_21, %c0_22] : memref<16x72xbf16, #tpu.memory_space<vmem>>, vector<16x72xbf16>
    %cst = arith.constant dense<0.000000e+00> : vector<16x1024xf32>
    %50 = tpu.matmul %49, %48, %cst {dimension_numbers = #tpu.dot_dimension_numbers<[1], [0], [0], [1], [0, 0, 1, 1], [], []>} : vector<16x72xbf16>, vector<72x1024xbf16>, vector<16x1024xf32> -> vector<16x1024xf32>
    %c0_23 = arith.constant 0 : index
    %c0_24 = arith.constant 0 : index
    %51 = vector.load %arg3[%c0_23, %c0_24] : memref<16x1xf32, #tpu.memory_space<vmem>>, vector<16x1xf32>
    %52 = vector.broadcast %51 : vector<16x1xf32> to vector<16x1024xf32>
    %53 = arith.mulf %50, %52 : vector<16x1024xf32>
    %c0_25 = arith.constant 0 : index
    %c0_26 = arith.constant 0 : index
    %54 = vector.load %arg4[%c0_25, %c0_26] : memref<16x1xf32, #tpu.memory_space<vmem>>, vector<16x1xf32>
    %55 = vector.broadcast %54 : vector<16x1xf32> to vector<16x1024xf32>
    %56 = arith.addf %53, %55 : vector<16x1024xf32>
    %cst_27 = arith.constant 0.000000e+00 : f32
    %57 = vector.broadcast %cst_27 : f32 to vector<16x1024xf32>
    %58 = arith.maximumf %56, %57 : vector<16x1024xf32>
    %c1023_i32_28 = arith.constant 1023 : i32
    %59 = tpu.dynamic_rotate %58 by %c1023_i32_28 dim 1 : vector<16x1024xf32>, i32 -> vector<16x1024xf32>
    %60 = arith.maximumf %58, %59 : vector<16x1024xf32>
    %c992_i32_29 = arith.constant 992 : i32
    %61 = tpu.dynamic_rotate %58 by %c992_i32_29 dim 1 : vector<16x1024xf32>, i32 -> vector<16x1024xf32>
    %62 = arith.maximumf %60, %61 : vector<16x1024xf32>
    %c991_i32_30 = arith.constant 991 : i32
    %63 = tpu.dynamic_rotate %58 by %c991_i32_30 dim 1 : vector<16x1024xf32>, i32 -> vector<16x1024xf32>
    %64 = arith.maximumf %62, %63 : vector<16x1024xf32>
    %65 = arith.truncf %64 : vector<16x1024xf32> to vector<16x1024xbf16>
    %c0_31 = arith.constant 0 : index
    %c0_32 = arith.constant 0 : index
    %66 = vector.load %arg6[%c0_31, %c0_32] : memref<1024x256xbf16, #tpu.memory_space<vmem>>, vector<1024x256xbf16>
    %cst_33 = arith.constant dense<0.000000e+00> : vector<16x256xf32>
    %67 = tpu.matmul %65, %66, %cst_33 {dimension_numbers = #tpu.dot_dimension_numbers<[1], [0], [0], [1], [0, 0, 1, 1], [], []>} : vector<16x1024xbf16>, vector<1024x256xbf16>, vector<16x256xf32> -> vector<16x256xf32>
    %c17_i32 = arith.constant 17 : i32
    %68 = tpu.dynamic_rotate %67 by %c17_i32 dim 1 : vector<16x256xf32>, i32 -> vector<16x256xf32>
    %c0_34 = arith.constant 0 : index
    %c0_35 = arith.constant 0 : index
    %c0_36 = arith.constant 0 : index
    %69 = vector.load %arg10[%c0_34, %c0_35, %c0_36] : memref<9x1x256xf32, #tpu.memory_space<vmem>>, vector<1x1x256xf32>
    %70 = vector.shape_cast %69 : vector<1x1x256xf32> to vector<1x256xf32>
    %71 = vector.broadcast %70 : vector<1x256xf32> to vector<16x256xf32>
    %72 = arith.mulf %68, %71 : vector<16x256xf32>
    %c16_i32 = arith.constant 16 : i32
    %73 = tpu.dynamic_rotate %67 by %c16_i32 dim 1 : vector<16x256xf32>, i32 -> vector<16x256xf32>
    %c1_37 = arith.constant 1 : index
    %c0_38 = arith.constant 0 : index
    %c0_39 = arith.constant 0 : index
    %74 = vector.load %arg10[%c1_37, %c0_38, %c0_39] : memref<9x1x256xf32, #tpu.memory_space<vmem>>, vector<1x1x256xf32>
    %75 = vector.shape_cast %74 : vector<1x1x256xf32> to vector<1x256xf32>
    %76 = vector.broadcast %75 : vector<1x256xf32> to vector<16x256xf32>
    %77 = arith.mulf %73, %76 : vector<16x256xf32>
    %c15_i32 = arith.constant 15 : i32
    %78 = tpu.dynamic_rotate %67 by %c15_i32 dim 1 : vector<16x256xf32>, i32 -> vector<16x256xf32>
    %c2_40 = arith.constant 2 : index
    %c0_41 = arith.constant 0 : index
    %c0_42 = arith.constant 0 : index
    %79 = vector.load %arg10[%c2_40, %c0_41, %c0_42] : memref<9x1x256xf32, #tpu.memory_space<vmem>>, vector<1x1x256xf32>
    %80 = vector.shape_cast %79 : vector<1x1x256xf32> to vector<1x256xf32>
    %81 = vector.broadcast %80 : vector<1x256xf32> to vector<16x256xf32>
    %82 = arith.mulf %78, %81 : vector<16x256xf32>
    %c1_i32_43 = arith.constant 1 : i32
    %83 = tpu.dynamic_rotate %67 by %c1_i32_43 dim 1 : vector<16x256xf32>, i32 -> vector<16x256xf32>
    %c3_44 = arith.constant 3 : index
    %c0_45 = arith.constant 0 : index
    %c0_46 = arith.constant 0 : index
    %84 = vector.load %arg10[%c3_44, %c0_45, %c0_46] : memref<9x1x256xf32, #tpu.memory_space<vmem>>, vector<1x1x256xf32>
    %85 = vector.shape_cast %84 : vector<1x1x256xf32> to vector<1x256xf32>
    %86 = vector.broadcast %85 : vector<1x256xf32> to vector<16x256xf32>
    %87 = arith.mulf %83, %86 : vector<16x256xf32>
    %c4_47 = arith.constant 4 : index
    %c0_48 = arith.constant 0 : index
    %c0_49 = arith.constant 0 : index
    %88 = vector.load %arg10[%c4_47, %c0_48, %c0_49] : memref<9x1x256xf32, #tpu.memory_space<vmem>>, vector<1x1x256xf32>
    %89 = vector.shape_cast %88 : vector<1x1x256xf32> to vector<1x256xf32>
    %90 = vector.broadcast %89 : vector<1x256xf32> to vector<16x256xf32>
    %91 = arith.mulf %67, %90 : vector<16x256xf32>
    %c255_i32 = arith.constant 255 : i32
    %92 = tpu.dynamic_rotate %67 by %c255_i32 dim 1 : vector<16x256xf32>, i32 -> vector<16x256xf32>
    %c5_50 = arith.constant 5 : index
    %c0_51 = arith.constant 0 : index
    %c0_52 = arith.constant 0 : index
    %93 = vector.load %arg10[%c5_50, %c0_51, %c0_52] : memref<9x1x256xf32, #tpu.memory_space<vmem>>, vector<1x1x256xf32>
    %94 = vector.shape_cast %93 : vector<1x1x256xf32> to vector<1x256xf32>
    %95 = vector.broadcast %94 : vector<1x256xf32> to vector<16x256xf32>
    %96 = arith.mulf %92, %95 : vector<16x256xf32>
    %c241_i32 = arith.constant 241 : i32
    %97 = tpu.dynamic_rotate %67 by %c241_i32 dim 1 : vector<16x256xf32>, i32 -> vector<16x256xf32>
    %c6_53 = arith.constant 6 : index
    %c0_54 = arith.constant 0 : index
    %c0_55 = arith.constant 0 : index
    %98 = vector.load %arg10[%c6_53, %c0_54, %c0_55] : memref<9x1x256xf32, #tpu.memory_space<vmem>>, vector<1x1x256xf32>
    %99 = vector.shape_cast %98 : vector<1x1x256xf32> to vector<1x256xf32>
    %100 = vector.broadcast %99 : vector<1x256xf32> to vector<16x256xf32>
    %101 = arith.mulf %97, %100 : vector<16x256xf32>
    %c240_i32 = arith.constant 240 : i32
    %102 = tpu.dynamic_rotate %67 by %c240_i32 dim 1 : vector<16x256xf32>, i32 -> vector<16x256xf32>
    %c7_56 = arith.constant 7 : index
    %c0_57 = arith.constant 0 : index
    %c0_58 = arith.constant 0 : index
    %103 = vector.load %arg10[%c7_56, %c0_57, %c0_58] : memref<9x1x256xf32, #tpu.memory_space<vmem>>, vector<1x1x256xf32>
    %104 = vector.shape_cast %103 : vector<1x1x256xf32> to vector<1x256xf32>
    %105 = vector.broadcast %104 : vector<1x256xf32> to vector<16x256xf32>
    %106 = arith.mulf %102, %105 : vector<16x256xf32>
    %c239_i32 = arith.constant 239 : i32
    %107 = tpu.dynamic_rotate %67 by %c239_i32 dim 1 : vector<16x256xf32>, i32 -> vector<16x256xf32>
    %c8_59 = arith.constant 8 : index
    %c0_60 = arith.constant 0 : index
    %c0_61 = arith.constant 0 : index
    %108 = vector.load %arg10[%c8_59, %c0_60, %c0_61] : memref<9x1x256xf32, #tpu.memory_space<vmem>>, vector<1x1x256xf32>
    %109 = vector.shape_cast %108 : vector<1x1x256xf32> to vector<1x256xf32>
    %110 = vector.broadcast %109 : vector<1x256xf32> to vector<16x256xf32>
    %111 = arith.mulf %107, %110 : vector<16x256xf32>
    %112 = tpu.concatenate %72, %77, %82, %87, %91, %96, %101, %106, %111 in 0 : vector<16x256xf32>, vector<16x256xf32>, vector<16x256xf32>, vector<16x256xf32>, vector<16x256xf32>, vector<16x256xf32>, vector<16x256xf32>, vector<16x256xf32>, vector<16x256xf32> -> vector<144x256xf32>
    %113 = arith.truncf %112 : vector<144x256xf32> to vector<144x256xbf16>
    %c0_62 = arith.constant 0 : index
    %c0_63 = arith.constant 0 : index
    %114 = vector.load %arg7[%c0_62, %c0_63] : memref<32x144xbf16, #tpu.memory_space<vmem>>, vector<32x144xbf16>
    %cst_64 = arith.constant dense<0.000000e+00> : vector<32x256xf32>
    %115 = tpu.matmul %114, %113, %cst_64 {dimension_numbers = #tpu.dot_dimension_numbers<[1], [0], [0], [1], [0, 0, 1, 1], [], []>} : vector<32x144xbf16>, vector<144x256xbf16>, vector<32x256xf32> -> vector<32x256xf32>
    %c0_65 = arith.constant 0 : index
    %c0_66 = arith.constant 0 : index
    %116 = vector.load %arg8[%c0_65, %c0_66] : memref<32x1xf32, #tpu.memory_space<vmem>>, vector<32x1xf32>
    %117 = vector.broadcast %116 : vector<32x1xf32> to vector<32x256xf32>
    %118 = arith.mulf %115, %117 : vector<32x256xf32>
    %c0_67 = arith.constant 0 : index
    %c0_68 = arith.constant 0 : index
    %119 = vector.load %arg9[%c0_67, %c0_68] : memref<32x1xf32, #tpu.memory_space<vmem>>, vector<32x1xf32>
    %120 = vector.broadcast %119 : vector<32x1xf32> to vector<32x256xf32>
    %121 = arith.addf %118, %120 : vector<32x256xf32>
    %cst_69 = arith.constant 0.000000e+00 : f32
    %122 = vector.broadcast %cst_69 : f32 to vector<32x256xf32>
    %123 = arith.maximumf %121, %122 : vector<32x256xf32>
    %c255_i32_70 = arith.constant 255 : i32
    %124 = tpu.dynamic_rotate %123 by %c255_i32_70 dim 1 : vector<32x256xf32>, i32 -> vector<32x256xf32>
    %125 = arith.maximumf %123, %124 : vector<32x256xf32>
    %c240_i32_71 = arith.constant 240 : i32
    %126 = tpu.dynamic_rotate %123 by %c240_i32_71 dim 1 : vector<32x256xf32>, i32 -> vector<32x256xf32>
    %127 = arith.maximumf %125, %126 : vector<32x256xf32>
    %c239_i32_72 = arith.constant 239 : i32
    %128 = tpu.dynamic_rotate %123 by %c239_i32_72 dim 1 : vector<32x256xf32>, i32 -> vector<32x256xf32>
    %129 = arith.maximumf %127, %128 : vector<32x256xf32>
    %130 = arith.truncf %129 : vector<32x256xf32> to vector<32x256xbf16>
    %c0_73 = arith.constant 0 : index
    %c0_74 = arith.constant 0 : index
    %131 = vector.load %arg11[%c0_73, %c0_74] : memref<256x128xbf16, #tpu.memory_space<vmem>>, vector<256x128xbf16>
    %cst_75 = arith.constant dense<0.000000e+00> : vector<32x128xf32>
    %132 = tpu.matmul %130, %131, %cst_75 {dimension_numbers = #tpu.dot_dimension_numbers<[1], [0], [0], [1], [0, 0, 1, 1], [], []>} : vector<32x256xbf16>, vector<256x128xbf16>, vector<32x128xf32> -> vector<32x128xf32>
    %c9_i32 = arith.constant 9 : i32
    %133 = tpu.dynamic_rotate %132 by %c9_i32 dim 1 : vector<32x128xf32>, i32 -> vector<32x128xf32>
    %c0_76 = arith.constant 0 : index
    %c0_77 = arith.constant 0 : index
    %c0_78 = arith.constant 0 : index
    %134 = vector.load %arg15[%c0_76, %c0_77, %c0_78] : memref<9x1x128xf32, #tpu.memory_space<vmem>>, vector<1x1x128xf32>
    %135 = vector.shape_cast %134 : vector<1x1x128xf32> to vector<1x128xf32>
    %136 = vector.broadcast %135 : vector<1x128xf32> to vector<32x128xf32>
    %137 = arith.mulf %133, %136 : vector<32x128xf32>
    %c8_i32 = arith.constant 8 : i32
    %138 = tpu.dynamic_rotate %132 by %c8_i32 dim 1 : vector<32x128xf32>, i32 -> vector<32x128xf32>
    %c1_79 = arith.constant 1 : index
    %c0_80 = arith.constant 0 : index
    %c0_81 = arith.constant 0 : index
    %139 = vector.load %arg15[%c1_79, %c0_80, %c0_81] : memref<9x1x128xf32, #tpu.memory_space<vmem>>, vector<1x1x128xf32>
    %140 = vector.shape_cast %139 : vector<1x1x128xf32> to vector<1x128xf32>
    %141 = vector.broadcast %140 : vector<1x128xf32> to vector<32x128xf32>
    %142 = arith.mulf %138, %141 : vector<32x128xf32>
    %c7_i32 = arith.constant 7 : i32
    %143 = tpu.dynamic_rotate %132 by %c7_i32 dim 1 : vector<32x128xf32>, i32 -> vector<32x128xf32>
    %c2_82 = arith.constant 2 : index
    %c0_83 = arith.constant 0 : index
    %c0_84 = arith.constant 0 : index
    %144 = vector.load %arg15[%c2_82, %c0_83, %c0_84] : memref<9x1x128xf32, #tpu.memory_space<vmem>>, vector<1x1x128xf32>
    %145 = vector.shape_cast %144 : vector<1x1x128xf32> to vector<1x128xf32>
    %146 = vector.broadcast %145 : vector<1x128xf32> to vector<32x128xf32>
    %147 = arith.mulf %143, %146 : vector<32x128xf32>
    %c1_i32_85 = arith.constant 1 : i32
    %148 = tpu.dynamic_rotate %132 by %c1_i32_85 dim 1 : vector<32x128xf32>, i32 -> vector<32x128xf32>
    %c3_86 = arith.constant 3 : index
    %c0_87 = arith.constant 0 : index
    %c0_88 = arith.constant 0 : index
    %149 = vector.load %arg15[%c3_86, %c0_87, %c0_88] : memref<9x1x128xf32, #tpu.memory_space<vmem>>, vector<1x1x128xf32>
    %150 = vector.shape_cast %149 : vector<1x1x128xf32> to vector<1x128xf32>
    %151 = vector.broadcast %150 : vector<1x128xf32> to vector<32x128xf32>
    %152 = arith.mulf %148, %151 : vector<32x128xf32>
    %c4_89 = arith.constant 4 : index
    %c0_90 = arith.constant 0 : index
    %c0_91 = arith.constant 0 : index
    %153 = vector.load %arg15[%c4_89, %c0_90, %c0_91] : memref<9x1x128xf32, #tpu.memory_space<vmem>>, vector<1x1x128xf32>
    %154 = vector.shape_cast %153 : vector<1x1x128xf32> to vector<1x128xf32>
    %155 = vector.broadcast %154 : vector<1x128xf32> to vector<32x128xf32>
    %156 = arith.mulf %132, %155 : vector<32x128xf32>
    %c127_i32 = arith.constant 127 : i32
    %157 = tpu.dynamic_rotate %132 by %c127_i32 dim 1 : vector<32x128xf32>, i32 -> vector<32x128xf32>
    %c5_92 = arith.constant 5 : index
    %c0_93 = arith.constant 0 : index
    %c0_94 = arith.constant 0 : index
    %158 = vector.load %arg15[%c5_92, %c0_93, %c0_94] : memref<9x1x128xf32, #tpu.memory_space<vmem>>, vector<1x1x128xf32>
    %159 = vector.shape_cast %158 : vector<1x1x128xf32> to vector<1x128xf32>
    %160 = vector.broadcast %159 : vector<1x128xf32> to vector<32x128xf32>
    %161 = arith.mulf %157, %160 : vector<32x128xf32>
    %c121_i32 = arith.constant 121 : i32
    %162 = tpu.dynamic_rotate %132 by %c121_i32 dim 1 : vector<32x128xf32>, i32 -> vector<32x128xf32>
    %c6_95 = arith.constant 6 : index
    %c0_96 = arith.constant 0 : index
    %c0_97 = arith.constant 0 : index
    %163 = vector.load %arg15[%c6_95, %c0_96, %c0_97] : memref<9x1x128xf32, #tpu.memory_space<vmem>>, vector<1x1x128xf32>
    %164 = vector.shape_cast %163 : vector<1x1x128xf32> to vector<1x128xf32>
    %165 = vector.broadcast %164 : vector<1x128xf32> to vector<32x128xf32>
    %166 = arith.mulf %162, %165 : vector<32x128xf32>
    %c120_i32 = arith.constant 120 : i32
    %167 = tpu.dynamic_rotate %132 by %c120_i32 dim 1 : vector<32x128xf32>, i32 -> vector<32x128xf32>
    %c7_98 = arith.constant 7 : index
    %c0_99 = arith.constant 0 : index
    %c0_100 = arith.constant 0 : index
    %168 = vector.load %arg15[%c7_98, %c0_99, %c0_100] : memref<9x1x128xf32, #tpu.memory_space<vmem>>, vector<1x1x128xf32>
    %169 = vector.shape_cast %168 : vector<1x1x128xf32> to vector<1x128xf32>
    %170 = vector.broadcast %169 : vector<1x128xf32> to vector<32x128xf32>
    %171 = arith.mulf %167, %170 : vector<32x128xf32>
    %c119_i32 = arith.constant 119 : i32
    %172 = tpu.dynamic_rotate %132 by %c119_i32 dim 1 : vector<32x128xf32>, i32 -> vector<32x128xf32>
    %c8_101 = arith.constant 8 : index
    %c0_102 = arith.constant 0 : index
    %c0_103 = arith.constant 0 : index
    %173 = vector.load %arg15[%c8_101, %c0_102, %c0_103] : memref<9x1x128xf32, #tpu.memory_space<vmem>>, vector<1x1x128xf32>
    %174 = vector.shape_cast %173 : vector<1x1x128xf32> to vector<1x128xf32>
    %175 = vector.broadcast %174 : vector<1x128xf32> to vector<32x128xf32>
    %176 = arith.mulf %172, %175 : vector<32x128xf32>
    %177 = tpu.concatenate %137, %142, %147, %152, %156, %161, %166, %171, %176 in 0 : vector<32x128xf32>, vector<32x128xf32>, vector<32x128xf32>, vector<32x128xf32>, vector<32x128xf32>, vector<32x128xf32>, vector<32x128xf32>, vector<32x128xf32>, vector<32x128xf32> -> vector<288x128xf32>
    %178 = arith.truncf %177 : vector<288x128xf32> to vector<288x128xbf16>
    %c0_104 = arith.constant 0 : index
    %c0_105 = arith.constant 0 : index
    %179 = vector.load %arg12[%c0_104, %c0_105] : memref<64x288xbf16, #tpu.memory_space<vmem>>, vector<64x288xbf16>
    %cst_106 = arith.constant dense<0.000000e+00> : vector<64x128xf32>
    %180 = tpu.matmul %179, %178, %cst_106 {dimension_numbers = #tpu.dot_dimension_numbers<[1], [0], [0], [1], [0, 0, 1, 1], [], []>} : vector<64x288xbf16>, vector<288x128xbf16>, vector<64x128xf32> -> vector<64x128xf32>
    %c0_107 = arith.constant 0 : index
    %c0_108 = arith.constant 0 : index
    %181 = vector.load %arg13[%c0_107, %c0_108] : memref<64x1xf32, #tpu.memory_space<vmem>>, vector<64x1xf32>
    %182 = vector.broadcast %181 : vector<64x1xf32> to vector<64x128xf32>
    %183 = arith.mulf %180, %182 : vector<64x128xf32>
    %c0_109 = arith.constant 0 : index
    %c0_110 = arith.constant 0 : index
    %184 = vector.load %arg14[%c0_109, %c0_110] : memref<64x1xf32, #tpu.memory_space<vmem>>, vector<64x1xf32>
    %185 = vector.broadcast %184 : vector<64x1xf32> to vector<64x128xf32>
    %186 = arith.addf %183, %185 : vector<64x128xf32>
    %cst_111 = arith.constant 0.000000e+00 : f32
    %187 = vector.broadcast %cst_111 : f32 to vector<64x128xf32>
    %188 = arith.maximumf %186, %187 : vector<64x128xf32>
    %c127_i32_112 = arith.constant 127 : i32
    %189 = tpu.dynamic_rotate %188 by %c127_i32_112 dim 1 : vector<64x128xf32>, i32 -> vector<64x128xf32>
    %190 = arith.maximumf %188, %189 : vector<64x128xf32>
    %c120_i32_113 = arith.constant 120 : i32
    %191 = tpu.dynamic_rotate %188 by %c120_i32_113 dim 1 : vector<64x128xf32>, i32 -> vector<64x128xf32>
    %192 = arith.maximumf %190, %191 : vector<64x128xf32>
    %c119_i32_114 = arith.constant 119 : i32
    %193 = tpu.dynamic_rotate %188 by %c119_i32_114 dim 1 : vector<64x128xf32>, i32 -> vector<64x128xf32>
    %194 = arith.maximumf %192, %193 : vector<64x128xf32>
    %195 = arith.truncf %194 : vector<64x128xf32> to vector<64x128xbf16>
    %c0_115 = arith.constant 0 : index
    %c0_116 = arith.constant 0 : index
    %196 = vector.load %arg16[%c0_115, %c0_116] : memref<128x128xbf16, #tpu.memory_space<vmem>>, vector<128x128xbf16>
    %cst_117 = arith.constant dense<0.000000e+00> : vector<64x128xf32>
    %197 = tpu.matmul %195, %196, %cst_117 {dimension_numbers = #tpu.dot_dimension_numbers<[1], [0], [0], [1], [0, 0, 1, 1], [], []>} : vector<64x128xbf16>, vector<128x128xbf16>, vector<64x128xf32> -> vector<64x128xf32>
    %c0_118 = arith.constant 0 : index
    %c0_119 = arith.constant 0 : index
    %c0_120 = arith.constant 0 : index
    %198 = vector.load %arg17[%c0_118, %c0_119, %c0_120] : memref<1x64x128xf32, #tpu.memory_space<vmem>>, vector<1x64x128xf32>
    %199 = vector.shape_cast %198 : vector<1x64x128xf32> to vector<64x128xf32>
    %200 = vector.shape_cast %197 : vector<64x128xf32> to vector<1x64x128xf32>
    tpu.vector_store %arg17[%c0_118, %c0_119, %c0_120], %200 {strides = array<i32>} : memref<1x64x128xf32, #tpu.memory_space<vmem>>, vector<1x64x128xf32>,
    return
  }
  func.func @transform_0(%arg0: i32) -> (i32, i32, i32) {
    %c0_i32 = arith.constant 0 : i32
    %c0_i32_0 = arith.constant 0 : i32
    %c0_i32_1 = arith.constant 0 : i32
    return %arg0, %c0_i32, %c0_i32_0 : i32, i32, i32
  }
  func.func @transform_1(%arg0: i32) -> (i32, i32) {
    %c0_i32 = arith.constant 0 : i32
    %c0_i32_0 = arith.constant 0 : i32
    %c0_i32_1 = arith.constant 0 : i32
    return %c0_i32, %c0_i32_0 : i32, i32
  }
  func.func @transform_2(%arg0: i32) -> (i32, i32) {
    %c0_i32 = arith.constant 0 : i32
    %c0_i32_0 = arith.constant 0 : i32
    %c0_i32_1 = arith.constant 0 : i32
    return %c0_i32, %c0_i32_0 : i32, i32
  }
  func.func @transform_3(%arg0: i32) -> (i32, i32) {
    %c0_i32 = arith.constant 0 : i32
    %c0_i32_0 = arith.constant 0 : i32
    %c0_i32_1 = arith.constant 0 : i32
    return %c0_i32, %c0_i32_0 : i32, i32
  }
  func.func @transform_4(%arg0: i32) -> (i32, i32, i32) {
    %c0_i32 = arith.constant 0 : i32
    %c0_i32_0 = arith.constant 0 : i32
    %c0_i32_1 = arith.constant 0 : i32
    %c0_i32_2 = arith.constant 0 : i32
    return %c0_i32, %c0_i32_0, %c0_i32_1 : i32, i32, i32
  }
  func.func @transform_5(%arg0: i32) -> (i32, i32) {
    %c0_i32 = arith.constant 0 : i32
    %c0_i32_0 = arith.constant 0 : i32
    %c0_i32_1 = arith.constant 0 : i32
    return %c0_i32, %c0_i32_0 : i32, i32
  }
  func.func @transform_6(%arg0: i32) -> (i32, i32) {
    %c0_i32 = arith.constant 0 : i32
    %c0_i32_0 = arith.constant 0 : i32
    %c0_i32_1 = arith.constant 0 : i32
    return %c0_i32, %c0_i32_0 : i32, i32
  }
  func.func @transform_7(%arg0: i32) -> (i32, i32) {
    %c0_i32 = arith.constant 0 : i32
    %c0_i32_0 = arith.constant 0 : i32
    %c0_i32_1 = arith.constant 0 : i32
    return %c0_i32, %c0_i32_0 : i32, i32
  }
  func.func @transform_8(%arg0: i32) -> (i32, i32) {
    %c0_i32 = arith.constant 0 : i32
    %c0_i32_0 = arith.constant 0 : i32
    %c0_i32_1 = arith.constant 0 : i32
    return %c0_i32, %c0_i32_0 : i32, i32
  }
  func.func @transform_9(%arg0: i32) -> (i32, i32, i32) {
    %c0_i32 = arith.constant 0 : i32
    %c0_i32_0 = arith.constant 0 : i32
    %c0_i32_1 = arith.constant 0 : i32
    %c0_i32_2 = arith.constant 0 : i32
    return %c0_i32, %c0_i32_0, %c0_i32_1 : i32, i32, i32
  }
  func.func @transform_10(%arg0: i32) -> (i32, i32) {
    %c0_i32 = arith.constant 0 : i32
    %c0_i32_0 = arith.constant 0 : i32
    %c0_i32_1 = arith.constant 0 : i32
    return %c0_i32, %c0_i32_0 : i32, i32
  }
  func.func @transform_11(%arg0: i32) -> (i32, i32) {
    %c0_i32 = arith.constant 0 : i32
    %c0_i32_0 = arith.constant 0 : i32
    %c0_i32_1 = arith.constant 0 : i32
    return %c0_i32, %c0_i32_0 : i32, i32
  }
  func.func @transform_12(%arg0: i32) -> (i32, i32) {
    %c0_i32 = arith.constant 0 : i32
    %c0_i32_0 = arith.constant 0 : i32
    %c0_i32_1 = arith.constant 0 : i32
    return %c0_i32, %c0_i32_0 : i32, i32
  }
  func.func @transform_13(%arg0: i32) -> (i32, i32) {
    %c0_i32 = arith.constant 0 : i32
    %c0_i32_0 = arith.constant 0 : i32
    %c0_i32_1 = arith.constant 0 : i32
    return %c0_i32, %c0_i32_0 : i32, i32
  }
  func.func @transform_14(%arg0: i32) -> (i32, i32, i32) {
    %c0_i32 = arith.constant 0 : i32
    %c0_i32_0 = arith.constant 0 : i32
    %c0_i32_1 = arith.constant 0 : i32
    %c0_i32_2 = arith.constant 0 : i32
    return %c0_i32, %c0_i32_0, %c0_i32_1 : i32, i32, i32
  }
  func.func @transform_15(%arg0: i32) -> (i32, i32) {
    %c0_i32 = arith.constant 0 : i32
    %c0_i32_0 = arith.constant 0 : i32
    %c0_i32_1 = arith.constant 0 : i32
    return %c0_i32, %c0_i32_0 : i32, i32
  }
  func.func @transform_16(%arg0: i32) -> (i32, i32, i32) {
    %c0_i32 = arith.constant 0 : i32
    %c0_i32_0 = arith.constant 0 : i32
    %c0_i32_1 = arith.constant 0 : i32
    return %arg0, %c0_i32, %c0_i32_0 : i32, i32, i32
  }
}

</mosaic_0001>

<llo_original>
// kernel: image_cnn_forward.3
$region0: #{image_cnn_forward.3}
  #allocation0 [shape = 'u32[]', space=smem, size = 0x4, offset = 0x4, fixed_abs, tag = 'smem constant byte address 0x4 - core index']
  #allocation1 [shape = 'u32[144,128]{1,0:T(1,128)}', space=vmem, size = 0x12000, scoped, tag = 'internal scratch']
  %s0 = inlined_call_operand.vmem [shape: bf16[16,1024], index: 0, kind: input, shape index: {}]
  %s1 = inlined_call_operand.vmem [shape: bf16[1024,512], index: 1, kind: input, shape index: {}]
  %s2 = inlined_call_operand.vmem [shape: f32[1,512], index: 2, kind: input, shape index: {}]
  %s3 = inlined_call_operand.vmem [shape: bf16[512,128], index: 3, kind: input, shape index: {}]
  %s4 = inlined_call_operand.vmem [shape: f32[1,128], index: 4, kind: input, shape index: {}]
  %s5 = inlined_call_operand.vmem [shape: f32[16,128], index: 5, kind: output, shape index: {}]
  %s6 = sld [smem:[#allocation0]]
  $region53: #{image_cnn_forward.3} parent=0
    _
  %s8 = ssub.s32 1, %s6
  %s9 = scalar_select 0, %s8, %s6
  loop: start=0, step=1, limit=4
  $region2: #{image_cnn_forward.3} parent=0 // loop_pre_header
    _
  $region3: #{image_cnn_forward.3} parent=0 // loop_header
    %s11 = sphi 0, %s15
    %p12 = scmp.ge.s32.totalorder %s11, 4
    %s21 = sphi 0, %s23
    %s24 = sphi 0, %s21
    %s25 = sphi 0, %s24
    %s41 = sphi 0, %s25
    %s45 = sphi 0, %s45
    %s47 = sphi 0, %s45
    %s48 = sphi 0, %s47
    %s62 = sphi 0, %s48
    %s66 = sphi 0, %s66
    %s68 = sphi 0, %s66
    %s69 = sphi 0, %s68
    %s83 = sphi 0, %s69
    %s87 = sphi 0, %s87
    %s89 = sphi 0, %s87
    %s90 = sphi 0, %s89
    %s104 = sphi 0, %s90
    %s108 = sphi 0, %s108
    %s110 = sphi 0, %s108
    %s111 = sphi 0, %s110
    %s125 = sphi 0, %s111
    %s131 = sphi 0, %s133
    %s134 = sphi 0, %s131
    %s135 = sphi 0, %s134
    %s151 = sphi 0, %s135
  $region4: #{image_cnn_forward.3} parent=0 // loop_header_branch
    %14 = sbr.rel (%p12) target = $region8
  $region5: #{image_cnn_forward.3} parent=0 // loop_body
    %s16 = ssub.s32 %s11, 1
    %s17 = ssub.s32 %s11, 2
    %s18 = sadd.s32 %s11, 1
    %s19 = ssub.s32 %s11, %s18
    %p20 = scmp.eq.s32.totalorder %s19, 0
    %s22 = sadd.s32 %s21, 1
    %s23 = scalar_select %p20, %s21, %s22
    %p26 = pneg %p20
    %p27 = scmp.eq.s32.totalorder %s11, 1
    %p28 = por %p26, %p27
    %p29 = scmp.ne.s32.totalorder %s21, %s24
    %p30 = scmp.eq.s32.totalorder %s11, 0
    %p31 = por %p29, %p30
    %p32 = scmp.ne.s32.totalorder %s21, %s24
    %p33 = scmp.eq.s32.totalorder %s16, 1
    %p34 = por %p32, %p33
    %p35 = scmp.ne.s32.totalorder %s24, %s25
    %p36 = scmp.eq.s32.totalorder %s16, 0
    %p37 = por %p35, %p36
    %p38 = scmp.ne.s32.totalorder %s24, %s25
    %p39 = scmp.eq.s32.totalorder %s17, 1
    %p40 = por %p38, %p39
    %p42 = scmp.ne.s32.totalorder %s25, %s41
    %p43 = scmp.eq.s32.totalorder %s17, 0
    %p44 = por %p42, %p43
    %s46 = sadd.s32 %s45, 1
    %p49 = scmp.eq.s32.totalorder %s11, 1
    %p50 = scmp.ne.s32.totalorder %s45, %s47
    %p51 = scmp.eq.s32.totalorder %s11, 0
    %p52 = por %p50, %p51
    %p53 = scmp.ne.s32.totalorder %s45, %s47
    %p54 = scmp.eq.s32.totalorder %s16, 1
    %p55 = por %p53, %p54
    %p56 = scmp.ne.s32.totalorder %s47, %s48
    %p57 = scmp.eq.s32.totalorder %s16, 0
    %p58 = por %p56, %p57
    %p59 = scmp.ne.s32.totalorder %s47, %s48
    %p60 = scmp.eq.s32.totalorder %s17, 1
    %p61 = por %p59, %p60
    %p63 = scmp.ne.s32.totalorder %s48, %s62
    %p64 = scmp.eq.s32.totalorder %s17, 0
    %p65 = por %p63, %p64
    %s67 = sadd.s32 %s66, 1
    %p70 = scmp.eq.s32.totalorder %s11, 1
    %p71 = scmp.ne.s32.totalorder %s66, %s68
    %p72 = scmp.eq.s32.totalorder %s11, 0
    %p73 = por %p71, %p72
    %p74 = scmp.ne.s32.totalorder %s66, %s68
    %p75 = scmp.eq.s32.totalorder %s16, 1
    %p76 = por %p74, %p75
    %p77 = scmp.ne.s32.totalorder %s68, %s69
    %p78 = scmp.eq.s32.totalorder %s16, 0
    %p79 = por %p77, %p78
    %p80 = scmp.ne.s32.totalorder %s68, %s69
    %p81 = scmp.eq.s32.totalorder %s17, 1
    %p82 = por %p80, %p81
    %p84 = scmp.ne.s32.totalorder %s69, %s83
    %p85 = scmp.eq.s32.totalorder %s17, 0
    %p86 = por %p84, %p85
    %s88 = sadd.s32 %s87, 1
    %p91 = scmp.eq.s32.totalorder %s11, 1
    %p92 = scmp.ne.s32.totalorder %s87, %s89
    %p93 = scmp.eq.s32.totalorder %s11, 0
    %p94 = por %p92, %p93
    %p95 = scmp.ne.s32.totalorder %s87, %s89
    %p96 = scmp.eq.s32.totalorder %s16, 1
    %p97 = por %p95, %p96
    %p98 = scmp.ne.s32.totalorder %s89, %s90
    %p99 = scmp.eq.s32.totalorder %s16, 0
    %p100 = por %p98, %p99
    %p101 = scmp.ne.s32.totalorder %s89, %s90
    %p102 = scmp.eq.s32.totalorder %s17, 1
    %p103 = por %p101, %p102
    %p105 = scmp.ne.s32.totalorder %s90, %s104
    %p106 = scmp.eq.s32.totalorder %s17, 0
    %p107 = por %p105, %p106
    %s109 = sadd.s32 %s108, 1
    %p112 = scmp.eq.s32.totalorder %s11, 1
    %p113 = scmp.ne.s32.totalorder %s108, %s110
    %p114 = scmp.eq.s32.totalorder %s11, 0
    %p115 = por %p113, %p114
    %p116 = scmp.ne.s32.totalorder %s108, %s110
    %p117 = scmp.eq.s32.totalorder %s16, 1
    %p118 = por %p116, %p117
    %p119 = scmp.ne.s32.totalorder %s110, %s111
    %p120 = scmp.eq.s32.totalorder %s16, 0
    %p121 = por %p119, %p120
    %p122 = scmp.ne.s32.totalorder %s110, %s111
    %p123 = scmp.eq.s32.totalorder %s17, 1
    %p124 = por %p122, %p123
    %p126 = scmp.ne.s32.totalorder %s111, %s125
    %p127 = scmp.eq.s32.totalorder %s17, 0
    %p128 = por %p126, %p127
    %s129 = ssub.s32 %s11, %s18
    %p130 = scmp.eq.s32.totalorder %s129, 0
    %s132 = sadd.s32 %s131, 1
    %s133 = scalar_select %p130, %s131, %s132
    %p136 = pneg %p130
    %p137 = scmp.eq.s32.totalorder %s11, 1
    %p138 = por %p136, %p137
    %p139 = scmp.ne.s32.totalorder %s131, %s134
    %p140 = scmp.eq.s32.totalorder %s11, 0
    %p141 = por %p139, %p140
    %p142 = scmp.ne.s32.totalorder %s131, %s134
    %p143 = scmp.eq.s32.totalorder %s16, 1
    %p144 = por %p142, %p143
    %p145 = scmp.ne.s32.totalorder %s134, %s135
    %p146 = scmp.eq.s32.totalorder %s16, 0
    %p147 = por %p145, %p146
    %p148 = scmp.ne.s32.totalorder %s134, %s135
    %p149 = scmp.eq.s32.totalorder %s17, 1
    %p150 = por %p148, %p149
    %p152 = scmp.ne.s32.totalorder %s135, %s151
    %p153 = scmp.eq.s32.totalorder %s17, 0
    %p154 = por %p152, %p153
    %p155 = scmp.le.s32.totalorder 1, %s11
    %p156 = scmp.lt.s32.totalorder %s11, 3
    %p157 = pnand %p155, %p156
    %p158 = pneg %p157
    // Predicated region
    $region9: #{image_cnn_forward.3} parent=5 // pred_check
      _
    $region10: #{image_cnn_forward.3} parent=5 // pred_check_branch
      %160 = sbr.rel (%p157) target = $region12
    $region11: #{image_cnn_forward.3} parent=5 // pred_region
      %s161 = ssub.s32 %s11, 1
      // Predicated region
      $region13: #{image_cnn_forward.3} parent=11 // pred_check
        %p162 = pneg %p58
      $region14: #{image_cnn_forward.3} parent=11 // pred_check_branch
        %164 = sbr.rel (%p162) target = $region16
      $region15: #{image_cnn_forward.3} parent=11 // pred_region
        _
      $region16: #{image_cnn_forward.3} parent=11 // pred_fallthru
        _
      // Predicated region
      $region17: #{image_cnn_forward.3} parent=11 // pred_check
        %p165 = pneg %p79
      $region18: #{image_cnn_forward.3} parent=11 // pred_check_branch
        %167 = sbr.rel (%p165) target = $region20
      $region19: #{image_cnn_forward.3} parent=11 // pred_region
        _
      $region20: #{image_cnn_forward.3} parent=11 // pred_fallthru
        _
      // Predicated region
      $region21: #{image_cnn_forward.3} parent=11 // pred_check
        %p168 = pneg %p100
      $region22: #{image_cnn_forward.3} parent=11 // pred_check_branch
        %170 = sbr.rel (%p168) target = $region24
      $region23: #{image_cnn_forward.3} parent=11 // pred_region
        _
      $region24: #{image_cnn_forward.3} parent=11 // pred_fallthru
        _
      // Predicated region
      $region25: #{image_cnn_forward.3} parent=11 // pred_check
        %p171 = pneg %p121
      $region26: #{image_cnn_forward.3} parent=11 // pred_check_branch
        %173 = sbr.rel (%p171) target = $region28
      $region27: #{image_cnn_forward.3} parent=11 // pred_region
        _
      $region28: #{image_cnn_forward.3} parent=11 // pred_fallthru
        _
    $region12: #{image_cnn_forward.3} parent=5 // pred_fallthru
      _
    %p174 = scmp.lt.s32.totalorder %s11, 2
    // Predicated region
    $region29: #{image_cnn_forward.3} parent=5 // pred_check
      %p175 = pneg %p174
    $region30: #{image_cnn_forward.3} parent=5 // pred_check_branch
      %177 = sbr.rel (%p175) target = $region32
    $region31: #{image_cnn_forward.3} parent=5 // pred_region
      // Predicated region
      $region33: #{image_cnn_forward.3} parent=31 // pred_check
        %p178 = pneg %p31
      $region34: #{image_cnn_forward.3} parent=31 // pred_check_branch
        %180 = sbr.rel (%p178) target = $region36
      $region35: #{image_cnn_forward.3} parent=31 // pred_region
        %p181 = scmp.lt.s32.totalorder %s11, 1
        %s182 = scalar_select %p181, %s11, 1
        %s183 = smul.addr %s182, 8
        %s184 = smul.addr %s183, 4
        %s185 = scalar_lea.vmem %s0, %s184
      $region36: #{image_cnn_forward.3} parent=31 // pred_fallthru
        _
    $region32: #{image_cnn_forward.3} parent=5 // pred_fallthru
      _
    %p186 = scmp.le.s32.totalorder 1, %s11
    %p187 = scmp.lt.s32.totalorder %s11, 3
    %p188 = pnand %p186, %p187
    %p189 = pneg %p188
    // Predicated region
    $region37: #{image_cnn_forward.3} parent=5 // pred_check
      _
    $region38: #{image_cnn_forward.3} parent=5 // pred_check_branch
      %191 = sbr.rel (%p188) target = $region40
    $region39: #{image_cnn_forward.3} parent=5 // pred_region
      %s192 = ssub.s32 %s11, 1
      %p193 = scmp.lt.s32.totalorder %s16, 1
      %s194 = scalar_select %p193, %s16, 1
      %s195 = smul.addr %s194, 8
      %s196 = smul.addr %s195, 4
      %s197 = scalar_lea.vmem %s0, %s196
      %p198 = pneg %p37
      %p199 = pneg %p34
      %p200 = pneg %p58
      %p201 = pneg %p55
      %p202 = pneg %p79
      %p203 = pneg %p76
      %p204 = pneg %p100
      %p205 = pneg %p97
      %p206 = pneg %p121
      %p207 = pneg %p118
      %p208 = pneg %p147
      %p209 = pneg %p144
      %p210 = scmp.lt.s32.totalorder %s16, 1
      %s211 = scalar_select %p210, %s16, 1
      %s212 = smul.addr %s211, 8
      %s213 = scalar_lea.vmem %s5, %s212
      %p214 = scmp.lt.s32.totalorder %s16, 1
      %s215 = scalar_select %p214, %s16, 1
      %s216 = smul.addr %s215, 8
      %s217 = smul.addr %s216, 4
      %s218 = scalar_lea.vmem %s0, %s217
      %p219 = scmp.lt.s32.totalorder %s16, 1
      %s220 = scalar_select %p219, %s16, 1
      %s221 = smul.addr %s220, 8
      %s222 = scalar_lea.vmem %s5, %s221
      %v224 = vld [vmem:[%s218] sm:$0xff]
      %v225 = vld [vmem:[%s218 + $0x8] sm:$0xff]
      %v226 = vld [vmem:[%s218 + $0x10] sm:$0xff]
      %v227 = vld [vmem:[%s218 + $0x18] sm:$0xff]
      %v228 = vld [vmem:[%s1] sm:$0xff]
      %v229 = vld [vmem:[%s1 + $0x8] sm:$0xff]
      %v230 = vld [vmem:[%s1 + $0x10] sm:$0xff]
      %v231 = vld [vmem:[%s1 + $0x18] sm:$0xff]
      %v232 = vld [vmem:[%s1 + $0x20] sm:$0xff]
      %v233 = vld [vmem:[%s1 + $0x28] sm:$0xff]
      %v234 = vld [vmem:[%s1 + $0x30] sm:$0xff]
      %v235 = vld [vmem:[%s1 + $0x38] sm:$0xff]
      %v236 = vld [vmem:[%s1 + $0x40] sm:$0xff]
      %v237 = vld [vmem:[%s1 + $0x48] sm:$0xff]
      %v238 = vld [vmem:[%s1 + $0x50] sm:$0xff]
      %v239 = vld [vmem:[%s1 + $0x58] sm:$0xff]
      %v240 = vld [vmem:[%s1 + $0x60] sm:$0xff]
      %v241 = vld [vmem:[%s1 + $0x68] sm:$0xff]
      %v242 = vld [vmem:[%s1 + $0x70] sm:$0xff]
      %v243 = vld [vmem:[%s1 + $0x78] sm:$0xff]
      %v244 = vld [vmem:[%s1 + $0x80] sm:$0xff]
      %v245 = vld [vmem:[%s1 + $0x88] sm:$0xff]
      %v246 = vld [vmem:[%s1 + $0x90] sm:$0xff]
      %v247 = vld [vmem:[%s1 + $0x98] sm:$0xff]
      %v248 = vld [vmem:[%s1 + $0xa0] sm:$0xff]
      %v249 = vld [vmem:[%s1 + $0xa8] sm:$0xff]
      %v250 = vld [vmem:[%s1 + $0xb0] sm:$0xff]
      %v251 = vld [vmem:[%s1 + $0xb8] sm:$0xff]
      %v252 = vld [vmem:[%s1 + $0xc0] sm:$0xff]
      %v253 = vld [vmem:[%s1 + $0xc8] sm:$0xff]
      %v254 = vld [vmem:[%s1 + $0xd0] sm:$0xff]
      %v255 = vld [vmem:[%s1 + $0xd8] sm:$0xff]
      %v256 = vld [vmem:[%s1 + $0xe0] sm:$0xff]
      %v257 = vld [vmem:[%s1 + $0xe8] sm:$0xff]
      %v258 = vld [vmem:[%s1 + $0xf0] sm:$0xff]
      %v259 = vld [vmem:[%s1 + $0xf8] sm:$0xff]
      %v260 = vld [vmem:[%s1 + $0x100] sm:$0xff]
      %v261 = vld [vmem:[%s1 + $0x108] sm:$0xff]
      %v262 = vld [vmem:[%s1 + $0x110] sm:$0xff]
      %v263 = vld [vmem:[%s1 + $0x118] sm:$0xff]
      %v264 = vld [vmem:[%s1 + $0x120] sm:$0xff]
      %v265 = vld [vmem:[%s1 + $0x128] sm:$0xff]
      %v266 = vld [vmem:[%s1 + $0x130] sm:$0xff]
      %v267 = vld [vmem:[%s1 + $0x138] sm:$0xff]
      %v268 = vld [vmem:[%s1 + $0x140] sm:$0xff]
      %v269 = vld [vmem:[%s1 + $0x148] sm:$0xff]
      %v270 = vld [vmem:[%s1 + $0x150] sm:$0xff]
      %v271 = vld [vmem:[%s1 + $0x158] sm:$0xff]
      %v272 = vld [vmem:[%s1 + $0x160] sm:$0xff]
      %v273 = vld [vmem:[%s1 + $0x168] sm:$0xff]
      %v274 = vld [vmem:[%s1 + $0x170] sm:$0xff]
      %v275 = vld [vmem:[%s1 + $0x178] sm:$0xff]
      %v276 = vld [vmem:[%s1 + $0x180] sm:$0xff]
      %v277 = vld [vmem:[%s1 + $0x188] sm:$0xff]
      %v278 = vld [vmem:[%s1 + $0x190] sm:$0xff]
      %v279 = vld [vmem:[%s1 + $0x198] sm:$0xff]
      %v280 = vld [vmem:[%s1 + $0x1a0] sm:$0xff]
      %v281 = vld [vmem:[%s1 + $0x1a8] sm:$0xff]
      %v282 = vld [vmem:[%s1 + $0x1b0] sm:$0xff]
      %v283 = vld [vmem:[%s1 + $0x1b8] sm:$0xff]
      %v284 = vld [vmem:[%s1 + $0x1c0] sm:$0xff]
      %v285 = vld [vmem:[%s1 + $0x1c8] sm:$0xff]
      %v286 = vld [vmem:[%s1 + $0x1d0] sm:$0xff]
      %v287 = vld [vmem:[%s1 + $0x1d8] sm:$0xff]
      %v288 = vld [vmem:[%s1 + $0x1e0] sm:$0xff]
      %v289 = vld [vmem:[%s1 + $0x1e8] sm:$0xff]
      %v290 = vld [vmem:[%s1 + $0x1f0] sm:$0xff]
      %v291 = vld [vmem:[%s1 + $0x1f8] sm:$0xff]
      %v292 = vld [vmem:[%s1 + $0x200] sm:$0xff]
      %v293 = vld [vmem:[%s1 + $0x208] sm:$0xff]
      %v294 = vld [vmem:[%s1 + $0x210] sm:$0xff]
      %v295 = vld [vmem:[%s1 + $0x218] sm:$0xff]
      %v296 = vld [vmem:[%s1 + $0x220] sm:$0xff]
      %v297 = vld [vmem:[%s1 + $0x228] sm:$0xff]
      %v298 = vld [vmem:[%s1 + $0x230] sm:$0xff]
      %v299 = vld [vmem:[%s1 + $0x238] sm:$0xff]
      %v300 = vld [vmem:[%s1 + $0x240] sm:$0xff]
      %v301 = vld [vmem:[%s1 + $0x248] sm:$0xff]
      %v302 = vld [vmem:[%s1 + $0x250] sm:$0xff]
      %v303 = vld [vmem:[%s1 + $0x258] sm:$0xff]
      %v304 = vld [vmem:[%s1 + $0x260] sm:$0xff]
      %v305 = vld [vmem:[%s1 + $0x268] sm:$0xff]
      %v306 = vld [vmem:[%s1 + $0x270] sm:$0xff]
      %v307 = vld [vmem:[%s1 + $0x278] sm:$0xff]
      %v308 = vld [vmem:[%s1 + $0x280] sm:$0xff]
      %v309 = vld [vmem:[%s1 + $0x288] sm:$0xff]
      %v310 = vld [vmem:[%s1 + $0x290] sm:$0xff]
      %v311 = vld [vmem:[%s1 + $0x298] sm:$0xff]
      %v312 = vld [vmem:[%s1 + $0x2a0] sm:$0xff]
      %v313 = vld [vmem:[%s1 + $0x2a8] sm:$0xff]
      %v314 = vld [vmem:[%s1 + $0x2b0] sm:$0xff]
      %v315 = vld [vmem:[%s1 + $0x2b8] sm:$0xff]
      %v316 = vld [vmem:[%s1 + $0x2c0] sm:$0xff]
      %v317 = vld [vmem:[%s1 + $0x2c8] sm:$0xff]
      %v318 = vld [vmem:[%s1 + $0x2d0] sm:$0xff]
      %v319 = vld [vmem:[%s1 + $0x2d8] sm:$0xff]
      %v320 = vld [vmem:[%s1 + $0x2e0] sm:$0xff]
      %v321 = vld [vmem:[%s1 + $0x2e8] sm:$0xff]
      %v322 = vld [vmem:[%s1 + $0x2f0] sm:$0xff]
      %v323 = vld [vmem:[%s1 + $0x2f8] sm:$0xff]
      %v324 = vld [vmem:[%s1 + $0x300] sm:$0xff]
      %v325 = vld [vmem:[%s1 + $0x308] sm:$0xff]
      %v326 = vld [vmem:[%s1 + $0x310] sm:$0xff]
      %v327 = vld [vmem:[%s1 + $0x318] sm:$0xff]
      %v328 = vld [vmem:[%s1 + $0x320] sm:$0xff]
      %v329 = vld [vmem:[%s1 + $0x328] sm:$0xff]
      %v330 = vld [vmem:[%s1 + $0x330] sm:$0xff]
      %v331 = vld [vmem:[%s1 + $0x338] sm:$0xff]
      %v332 = vld [vmem:[%s1 + $0x340] sm:$0xff]
      %v333 = vld [vmem:[%s1 + $0x348] sm:$0xff]
      %v334 = vld [vmem:[%s1 + $0x350] sm:$0xff]
      %v335 = vld [vmem:[%s1 + $0x358] sm:$0xff]
      %v336 = vld [vmem:[%s1 + $0x360] sm:$0xff]
      %v337 = vld [vmem:[%s1 + $0x368] sm:$0xff]
      %v338 = vld [vmem:[%s1 + $0x370] sm:$0xff]
      %v339 = vld [vmem:[%s1 + $0x378] sm:$0xff]
      %v340 = vld [vmem:[%s1 + $0x380] sm:$0xff]
      %v341 = vld [vmem:[%s1 + $0x388] sm:$0xff]
      %v342 = vld [vmem:[%s1 + $0x390] sm:$0xff]
      %v343 = vld [vmem:[%s1 + $0x398] sm:$0xff]
      %v344 = vld [vmem:[%s1 + $0x3a0] sm:$0xff]
      %v345 = vld [vmem:[%s1 + $0x3a8] sm:$0xff]
      %v346 = vld [vmem:[%s1 + $0x3b0] sm:$0xff]
      %v347 = vld [vmem:[%s1 + $0x3b8] sm:$0xff]
      %v348 = vld [vmem:[%s1 + $0x3c0] sm:$0xff]
      %v349 = vld [vmem:[%s1 + $0x3c8] sm:$0xff]
      %v350 = vld [vmem:[%s1 + $0x3d0] sm:$0xff]
      %v351 = vld [vmem:[%s1 + $0x3d8] sm:$0xff]
      %v352 = vld [vmem:[%s1 + $0x3e0] sm:$0xff]
      %v353 = vld [vmem:[%s1 + $0x3e8] sm:$0xff]
      %v354 = vld [vmem:[%s1 + $0x3f0] sm:$0xff]
      %v355 = vld [vmem:[%s1 + $0x3f8] sm:$0xff]
      %v356 = vld [vmem:[%s1 + $0x400] sm:$0xff]
      %v357 = vld [vmem:[%s1 + $0x408] sm:$0xff]
      %v358 = vld [vmem:[%s1 + $0x410] sm:$0xff]
      %v359 = vld [vmem:[%s1 + $0x418] sm:$0xff]
      %v360 = vld [vmem:[%s1 + $0x420] sm:$0xff]
      %v361 = vld [vmem:[%s1 + $0x428] sm:$0xff]
      %v362 = vld [vmem:[%s1 + $0x430] sm:$0xff]
      %v363 = vld [vmem:[%s1 + $0x438] sm:$0xff]
      %v364 = vld [vmem:[%s1 + $0x440] sm:$0xff]
      %v365 = vld [vmem:[%s1 + $0x448] sm:$0xff]
      %v366 = vld [vmem:[%s1 + $0x450] sm:$0xff]
      %v367 = vld [vmem:[%s1 + $0x458] sm:$0xff]
      %v368 = vld [vmem:[%s1 + $0x460] sm:$0xff]
      %v369 = vld [vmem:[%s1 + $0x468] sm:$0xff]
      %v370 = vld [vmem:[%s1 + $0x470] sm:$0xff]
      %v371 = vld [vmem:[%s1 + $0x478] sm:$0xff]
      %v372 = vld [vmem:[%s1 + $0x480] sm:$0xff]
      %v373 = vld [vmem:[%s1 + $0x488] sm:$0xff]
      %v374 = vld [vmem:[%s1 + $0x490] sm:$0xff]
      %v375 = vld [vmem:[%s1 + $0x498] sm:$0xff]
      %v376 = vld [vmem:[%s1 + $0x4a0] sm:$0xff]
      %v377 = vld [vmem:[%s1 + $0x4a8] sm:$0xff]
      %v378 = vld [vmem:[%s1 + $0x4b0] sm:$0xff]
      %v379 = vld [vmem:[%s1 + $0x4b8] sm:$0xff]
      %v380 = vld [vmem:[%s1 + $0x4c0] sm:$0xff]
      %v381 = vld [vmem:[%s1 + $0x4c8] sm:$0xff]
      %v382 = vld [vmem:[%s1 + $0x4d0] sm:$0xff]
      %v383 = vld [vmem:[%s1 + $0x4d8] sm:$0xff]
      %v384 = vld [vmem:[%s1 + $0x4e0] sm:$0xff]
      %v385 = vld [vmem:[%s1 + $0x4e8] sm:$0xff]
      %v386 = vld [vmem:[%s1 + $0x4f0] sm:$0xff]
      %v387 = vld [vmem:[%s1 + $0x4f8] sm:$0xff]
      %v388 = vld [vmem:[%s1 + $0x500] sm:$0xff]
      %v389 = vld [vmem:[%s1 + $0x508] sm:$0xff]
      %v390 = vld [vmem:[%s1 + $0x510] sm:$0xff]
      %v391 = vld [vmem:[%s1 + $0x518] sm:$0xff]
      %v392 = vld [vmem:[%s1 + $0x520] sm:$0xff]
      %v393 = vld [vmem:[%s1 + $0x528] sm:$0xff]
      %v394 = vld [vmem:[%s1 + $0x530] sm:$0xff]
      %v395 = vld [vmem:[%s1 + $0x538] sm:$0xff]
      %v396 = vld [vmem:[%s1 + $0x540] sm:$0xff]
      %v397 = vld [vmem:[%s1 + $0x548] sm:$0xff]
      %v398 = vld [vmem:[%s1 + $0x550] sm:$0xff]
      %v399 = vld [vmem:[%s1 + $0x558] sm:$0xff]
      %v400 = vld [vmem:[%s1 + $0x560] sm:$0xff]
      %v401 = vld [vmem:[%s1 + $0x568] sm:$0xff]
      %v402 = vld [vmem:[%s1 + $0x570] sm:$0xff]
      %v403 = vld [vmem:[%s1 + $0x578] sm:$0xff]
      %v404 = vld [vmem:[%s1 + $0x580] sm:$0xff]
      %v405 = vld [vmem:[%s1 + $0x588] sm:$0xff]
      %v406 = vld [vmem:[%s1 + $0x590] sm:$0xff]
      %v407 = vld [vmem:[%s1 + $0x598] sm:$0xff]
      %v408 = vld [vmem:[%s1 + $0x5a0] sm:$0xff]
      %v409 = vld [vmem:[%s1 + $0x5a8] sm:$0xff]
      %v410 = vld [vmem:[%s1 + $0x5b0] sm:$0xff]
      %v411 = vld [vmem:[%s1 + $0x5b8] sm:$0xff]
      %v412 = vld [vmem:[%s1 + $0x5c0] sm:$0xff]
      %v413 = vld [vmem:[%s1 + $0x5c8] sm:$0xff]
      %v414 = vld [vmem:[%s1 + $0x5d0] sm:$0xff]
      %v415 = vld [vmem:[%s1 + $0x5d8] sm:$0xff]
      %v416 = vld [vmem:[%s1 + $0x5e0] sm:$0xff]
      %v417 = vld [vmem:[%s1 + $0x5e8] sm:$0xff]
      %v418 = vld [vmem:[%s1 + $0x5f0] sm:$0xff]
      %v419 = vld [vmem:[%s1 + $0x5f8] sm:$0xff]
      %v420 = vld [vmem:[%s1 + $0x600] sm:$0xff]
      %v421 = vld [vmem:[%s1 + $0x608] sm:$0xff]
      %v422 = vld [vmem:[%s1 + $0x610] sm:$0xff]
      %v423 = vld [vmem:[%s1 + $0x618] sm:$0xff]
      %v424 = vld [vmem:[%s1 + $0x620] sm:$0xff]
      %v425 = vld [vmem:[%s1 + $0x628] sm:$0xff]
      %v426 = vld [vmem:[%s1 + $0x630] sm:$0xff]
      %v427 = vld [vmem:[%s1 + $0x638] sm:$0xff]
      %v428 = vld [vmem:[%s1 + $0x640] sm:$0xff]
      %v429 = vld [vmem:[%s1 + $0x648] sm:$0xff]
      %v430 = vld [vmem:[%s1 + $0x650] sm:$0xff]
      %v431 = vld [vmem:[%s1 + $0x658] sm:$0xff]
      %v432 = vld [vmem:[%s1 + $0x660] sm:$0xff]
      %v433 = vld [vmem:[%s1 + $0x668] sm:$0xff]
      %v434 = vld [vmem:[%s1 + $0x670] sm:$0xff]
      %v435 = vld [vmem:[%s1 + $0x678] sm:$0xff]
      %v436 = vld [vmem:[%s1 + $0x680] sm:$0xff]
      %v437 = vld [vmem:[%s1 + $0x688] sm:$0xff]
      %v438 = vld [vmem:[%s1 + $0x690] sm:$0xff]
      %v439 = vld [vmem:[%s1 + $0x698] sm:$0xff]
      %v440 = vld [vmem:[%s1 + $0x6a0] sm:$0xff]
      %v441 = vld [vmem:[%s1 + $0x6a8] sm:$0xff]
      %v442 = vld [vmem:[%s1 + $0x6b0] sm:$0xff]
      %v443 = vld [vmem:[%s1 + $0x6b8] sm:$0xff]
      %v444 = vld [vmem:[%s1 + $0x6c0] sm:$0xff]
      %v445 = vld [vmem:[%s1 + $0x6c8] sm:$0xff]
      %v446 = vld [vmem:[%s1 + $0x6d0] sm:$0xff]
      %v447 = vld [vmem:[%s1 + $0x6d8] sm:$0xff]
      %v448 = vld [vmem:[%s1 + $0x6e0] sm:$0xff]
      %v449 = vld [vmem:[%s1 + $0x6e8] sm:$0xff]
      %v450 = vld [vmem:[%s1 + $0x6f0] sm:$0xff]
      %v451 = vld [vmem:[%s1 + $0x6f8] sm:$0xff]
      %v452 = vld [vmem:[%s1 + $0x700] sm:$0xff]
      %v453 = vld [vmem:[%s1 + $0x708] sm:$0xff]
      %v454 = vld [vmem:[%s1 + $0x710] sm:$0xff]
      %v455 = vld [vmem:[%s1 + $0x718] sm:$0xff]
      %v456 = vld [vmem:[%s1 + $0x720] sm:$0xff]
      %v457 = vld [vmem:[%s1 + $0x728] sm:$0xff]
      %v458 = vld [vmem:[%s1 + $0x730] sm:$0xff]
      %v459 = vld [vmem:[%s1 + $0x738] sm:$0xff]
      %v460 = vld [vmem:[%s1 + $0x740] sm:$0xff]
      %v461 = vld [vmem:[%s1 + $0x748] sm:$0xff]
      %v462 = vld [vmem:[%s1 + $0x750] sm:$0xff]
      %v463 = vld [vmem:[%s1 + $0x758] sm:$0xff]
      %v464 = vld [vmem:[%s1 + $0x760] sm:$0xff]
      %v465 = vld [vmem:[%s1 + $0x768] sm:$0xff]
      %v466 = vld [vmem:[%s1 + $0x770] sm:$0xff]
      %v467 = vld [vmem:[%s1 + $0x778] sm:$0xff]
      %v468 = vld [vmem:[%s1 + $0x780] sm:$0xff]
      %v469 = vld [vmem:[%s1 + $0x788] sm:$0xff]
      %v470 = vld [vmem:[%s1 + $0x790] sm:$0xff]
      %v471 = vld [vmem:[%s1 + $0x798] sm:$0xff]
      %v472 = vld [vmem:[%s1 + $0x7a0] sm:$0xff]
      %v473 = vld [vmem:[%s1 + $0x7a8] sm:$0xff]
      %v474 = vld [vmem:[%s1 + $0x7b0] sm:$0xff]
      %v475 = vld [vmem:[%s1 + $0x7b8] sm:$0xff]
      %v476 = vld [vmem:[%s1 + $0x7c0] sm:$0xff]
      %v477 = vld [vmem:[%s1 + $0x7c8] sm:$0xff]
      %v478 = vld [vmem:[%s1 + $0x7d0] sm:$0xff]
      %v479 = vld [vmem:[%s1 + $0x7d8] sm:$0xff]
      %v480 = vld [vmem:[%s1 + $0x7e0] sm:$0xff]
      %v481 = vld [vmem:[%s1 + $0x7e8] sm:$0xff]
      %v482 = vld [vmem:[%s1 + $0x7f0] sm:$0xff]
      %v483 = vld [vmem:[%s1 + $0x7f8] sm:$0xff]
      %v484 = vld [vmem:[%s2] sm:$0xf]
      %v486 = vlaneseq
      %v487 = vshrl.u32 %v486, 7
      %v488 = vsub.s32 0, %v487
      %v489 = vrot.slane %v484, %v488
      %v490 = vlaneseq
      %v491 = vshrl.u32 %v490, 7
      %v492 = vsub.s32 1, %v491
      %v493 = vrot.slane %v484, %v492
      %v494 = vlaneseq
      %v495 = vshrl.u32 %v494, 7
      %v496 = vsub.s32 2, %v495
      %v497 = vrot.slane %v484, %v496
      %v498 = vlaneseq
      %v499 = vshrl.u32 %v498, 7
      %v500 = vsub.s32 3, %v499
      %v501 = vrot.slane %v484, %v500
      %v510 = vunpack.c.l.b16 %v224
      %v511 = vunpack.c.h.b16 %v224
      %v512 = vunpack.c.l.b16 %v225
      %v513 = vunpack.c.h.b16 %v225
      %v514 = vunpack.c.l.b16 %v226
      %v515 = vunpack.c.h.b16 %v226
      %v516 = vunpack.c.l.b16 %v227
      %v517 = vunpack.c.h.b16 %v227
      %v518 = vpack.c.b16 %v510, %v510
      %v519 = vpack.c.b16 %v511, %v511
      %v520 = vpack.c.b16 %v512, %v512
      %v521 = vpack.c.b16 %v513, %v513
      %v522 = vpack.c.b16 %v514, %v514
      %v523 = vpack.c.b16 %v515, %v515
      %v524 = vpack.c.b16 %v516, %v516
      %v525 = vpack.c.b16 %v517, %v517
      %v790 = vunpack.c.l.b16 %v228
      %v791 = vunpack.c.h.b16 %v228
      %v792 = vunpack.c.l.b16 %v229
      %v793 = vunpack.c.h.b16 %v229
      %v794 = vunpack.c.l.b16 %v230
      %v795 = vunpack.c.h.b16 %v230
      %v796 = vunpack.c.l.b16 %v231
      %v797 = vunpack.c.h.b16 %v231
      %v798 = vunpack.c.l.b16 %v232
      %v799 = vunpack.c.h.b16 %v232
      %v800 = vunpack.c.l.b16 %v233
      %v801 = vunpack.c.h.b16 %v233
      %v802 = vunpack.c.l.b16 %v234
      %v803 = vunpack.c.h.b16 %v234
      %v804 = vunpack.c.l.b16 %v235
      %v805 = vunpack.c.h.b16 %v235
      %v806 = vunpack.c.l.b16 %v236
      %v807 = vunpack.c.h.b16 %v236
      %v808 = vunpack.c.l.b16 %v237
      %v809 = vunpack.c.h.b16 %v237
      %v810 = vunpack.c.l.b16 %v238
      %v811 = vunpack.c.h.b16 %v238
      %v812 = vunpack.c.l.b16 %v239
      %v813 = vunpack.c.h.b16 %v239
      %v814 = vunpack.c.l.b16 %v240
      %v815 = vunpack.c.h.b16 %v240
      %v816 = vunpack.c.l.b16 %v241
      %v817 = vunpack.c.h.b16 %v241
      %v818 = vunpack.c.l.b16 %v242
      %v819 = vunpack.c.h.b16 %v242
      %v820 = vunpack.c.l.b16 %v243
      %v821 = vunpack.c.h.b16 %v243
      %v822 = vunpack.c.l.b16 %v244
      %v823 = vunpack.c.h.b16 %v244
      %v824 = vunpack.c.l.b16 %v245
      %v825 = vunpack.c.h.b16 %v245
      %v826 = vunpack.c.l.b16 %v246
      %v827 = vunpack.c.h.b16 %v246
      %v828 = vunpack.c.l.b16 %v247
      %v829 = vunpack.c.h.b16 %v247
      %v830 = vunpack.c.l.b16 %v248
      %v831 = vunpack.c.h.b16 %v248
      %v832 = vunpack.c.l.b16 %v249
      %v833 = vunpack.c.h.b16 %v249
      %v834 = vunpack.c.l.b16 %v250
      %v835 = vunpack.c.h.b16 %v250
      %v836 = vunpack.c.l.b16 %v251
      %v837 = vunpack.c.h.b16 %v251
      %v838 = vunpack.c.l.b16 %v252
      %v839 = vunpack.c.h.b16 %v252
      %v840 = vunpack.c.l.b16 %v253
      %v841 = vunpack.c.h.b16 %v253
      %v842 = vunpack.c.l.b16 %v254
      %v843 = vunpack.c.h.b16 %v254
      %v844 = vunpack.c.l.b16 %v255
      %v845 = vunpack.c.h.b16 %v255
      %v846 = vunpack.c.l.b16 %v256
      %v847 = vunpack.c.h.b16 %v256
      %v848 = vunpack.c.l.b16 %v257
      %v849 = vunpack.c.h.b16 %v257
      %v850 = vunpack.c.l.b16 %v258
      %v851 = vunpack.c.h.b16 %v258
      %v852 = vunpack.c.l.b16 %v259
      %v853 = vunpack.c.h.b16 %v259
      %v854 = vunpack.c.l.b16 %v260
      %v855 = vunpack.c.h.b16 %v260
      %v856 = vunpack.c.l.b16 %v261
      %v857 = vunpack.c.h.b16 %v261
      %v858 = vunpack.c.l.b16 %v262
      %v859 = vunpack.c.h.b16 %v262
      %v860 = vunpack.c.l.b16 %v263
      %v861 = vunpack.c.h.b16 %v263
      %v862 = vunpack.c.l.b16 %v264
      %v863 = vunpack.c.h.b16 %v264
      %v864 = vunpack.c.l.b16 %v265
      %v865 = vunpack.c.h.b16 %v265
      %v866 = vunpack.c.l.b16 %v266
      %v867 = vunpack.c.h.b16 %v266
      %v868 = vunpack.c.l.b16 %v267
      %v869 = vunpack.c.h.b16 %v267
      %v870 = vunpack.c.l.b16 %v268
      %v871 = vunpack.c.h.b16 %v268
      %v872 = vunpack.c.l.b16 %v269
      %v873 = vunpack.c.h.b16 %v269
      %v874 = vunpack.c.l.b16 %v270
      %v875 = vunpack.c.h.b16 %v270
      %v876 = vunpack.c.l.b16 %v271
      %v877 = vunpack.c.h.b16 %v271
      %v878 = vunpack.c.l.b16 %v272
      %v879 = vunpack.c.h.b16 %v272
      %v880 = vunpack.c.l.b16 %v273
      %v881 = vunpack.c.h.b16 %v273
      %v882 = vunpack.c.l.b16 %v274
      %v883 = vunpack.c.h.b16 %v274
      %v884 = vunpack.c.l.b16 %v275
      %v885 = vunpack.c.h.b16 %v275
      %v886 = vunpack.c.l.b16 %v276
      %v887 = vunpack.c.h.b16 %v276
      %v888 = vunpack.c.l.b16 %v277
      %v889 = vunpack.c.h.b16 %v277
      %v890 = vunpack.c.l.b16 %v278
      %v891 = vunpack.c.h.b16 %v278
      %v892 = vunpack.c.l.b16 %v279
      %v893 = vunpack.c.h.b16 %v279
      %v894 = vunpack.c.l.b16 %v280
      %v895 = vunpack.c.h.b16 %v280
      %v896 = vunpack.c.l.b16 %v281
      %v897 = vunpack.c.h.b16 %v281
      %v898 = vunpack.c.l.b16 %v282
      %v899 = vunpack.c.h.b16 %v282
      %v900 = vunpack.c.l.b16 %v283
      %v901 = vunpack.c.h.b16 %v283
      %v902 = vunpack.c.l.b16 %v284
      %v903 = vunpack.c.h.b16 %v284
      %v904 = vunpack.c.l.b16 %v285
      %v905 = vunpack.c.h.b16 %v285
      %v906 = vunpack.c.l.b16 %v286
      %v907 = vunpack.c.h.b16 %v286
      %v908 = vunpack.c.l.b16 %v287
      %v909 = vunpack.c.h.b16 %v287
      %v910 = vunpack.c.l.b16 %v288
      %v911 = vunpack.c.h.b16 %v288
      %v912 = vunpack.c.l.b16 %v289
      %v913 = vunpack.c.h.b16 %v289
      %v914 = vunpack.c.l.b16 %v290
      %v915 = vunpack.c.h.b16 %v290
      %v916 = vunpack.c.l.b16 %v291
      %v917 = vunpack.c.h.b16 %v291
      %v918 = vunpack.c.l.b16 %v292
      %v919 = vunpack.c.h.b16 %v292
      %v920 = vunpack.c.l.b16 %v293
      %v921 = vunpack.c.h.b16 %v293
      %v922 = vunpack.c.l.b16 %v294
      %v923 = vunpack.c.h.b16 %v294
      %v924 = vunpack.c.l.b16 %v295
      %v925 = vunpack.c.h.b16 %v295
      %v926 = vunpack.c.l.b16 %v296
      %v927 = vunpack.c.h.b16 %v296
      %v928 = vunpack.c.l.b16 %v297
      %v929 = vunpack.c.h.b16 %v297
      %v930 = vunpack.c.l.b16 %v298
      %v931 = vunpack.c.h.b16 %v298
      %v932 = vunpack.c.l.b16 %v299
      %v933 = vunpack.c.h.b16 %v299
      %v934 = vunpack.c.l.b16 %v300
      %v935 = vunpack.c.h.b16 %v300
      %v936 = vunpack.c.l.b16 %v301
      %v937 = vunpack.c.h.b16 %v301
      %v938 = vunpack.c.l.b16 %v302
      %v939 = vunpack.c.h.b16 %v302
      %v940 = vunpack.c.l.b16 %v303
      %v941 = vunpack.c.h.b16 %v303
      %v942 = vunpack.c.l.b16 %v304
      %v943 = vunpack.c.h.b16 %v304
      %v944 = vunpack.c.l.b16 %v305
      %v945 = vunpack.c.h.b16 %v305
      %v946 = vunpack.c.l.b16 %v306
      %v947 = vunpack.c.h.b16 %v306
      %v948 = vunpack.c.l.b16 %v307
      %v949 = vunpack.c.h.b16 %v307
      %v950 = vunpack.c.l.b16 %v308
      %v951 = vunpack.c.h.b16 %v308
      %v952 = vunpack.c.l.b16 %v309
      %v953 = vunpack.c.h.b16 %v309
      %v954 = vunpack.c.l.b16 %v310
      %v955 = vunpack.c.h.b16 %v310
      %v956 = vunpack.c.l.b16 %v311
      %v957 = vunpack.c.h.b16 %v311
      %v958 = vunpack.c.l.b16 %v312
      %v959 = vunpack.c.h.b16 %v312
      %v960 = vunpack.c.l.b16 %v313
      %v961 = vunpack.c.h.b16 %v313
      %v962 = vunpack.c.l.b16 %v314
      %v963 = vunpack.c.h.b16 %v314
      %v964 = vunpack.c.l.b16 %v315
      %v965 = vunpack.c.h.b16 %v315
      %v966 = vunpack.c.l.b16 %v316
      %v967 = vunpack.c.h.b16 %v316
      %v968 = vunpack.c.l.b16 %v317
      %v969 = vunpack.c.h.b16 %v317
      %v970 = vunpack.c.l.b16 %v318
      %v971 = vunpack.c.h.b16 %v318
      %v972 = vunpack.c.l.b16 %v319
      %v973 = vunpack.c.h.b16 %v319
      %v974 = vunpack.c.l.b16 %v320
      %v975 = vunpack.c.h.b16 %v320
      %v976 = vunpack.c.l.b16 %v321
      %v977 = vunpack.c.h.b16 %v321
      %v978 = vunpack.c.l.b16 %v322
      %v979 = vunpack.c.h.b16 %v322
      %v980 = vunpack.c.l.b16 %v323
      %v981 = vunpack.c.h.b16 %v323
      %v982 = vunpack.c.l.b16 %v324
      %v983 = vunpack.c.h.b16 %v324
      %v984 = vunpack.c.l.b16 %v325
      %v985 = vunpack.c.h.b16 %v325
      %v986 = vunpack.c.l.b16 %v326
      %v987 = vunpack.c.h.b16 %v326
      %v988 = vunpack.c.l.b16 %v327
      %v989 = vunpack.c.h.b16 %v327
      %v990 = vunpack.c.l.b16 %v328
      %v991 = vunpack.c.h.b16 %v328
      %v992 = vunpack.c.l.b16 %v329
      %v993 = vunpack.c.h.b16 %v329
      %v994 = vunpack.c.l.b16 %v330
      %v995 = vunpack.c.h.b16 %v330
      %v996 = vunpack.c.l.b16 %v331
      %v997 = vunpack.c.h.b16 %v331
      %v998 = vunpack.c.l.b16 %v332
      %v999 = vunpack.c.h.b16 %v332
      %v1000 = vunpack.c.l.b16 %v333
      %v1001 = vunpack.c.h.b16 %v333
      %v1002 = vunpack.c.l.b16 %v334
      %v1003 = vunpack.c.h.b16 %v334
      %v1004 = vunpack.c.l.b16 %v335
      %v1005 = vunpack.c.h.b16 %v335
      %v1006 = vunpack.c.l.b16 %v336
      %v1007 = vunpack.c.h.b16 %v336
      %v1008 = vunpack.c.l.b16 %v337
      %v1009 = vunpack.c.h.b16 %v337
      %v1010 = vunpack.c.l.b16 %v338
      %v1011 = vunpack.c.h.b16 %v338
      %v1012 = vunpack.c.l.b16 %v339
      %v1013 = vunpack.c.h.b16 %v339
      %v1014 = vunpack.c.l.b16 %v340
      %v1015 = vunpack.c.h.b16 %v340
      %v1016 = vunpack.c.l.b16 %v341
      %v1017 = vunpack.c.h.b16 %v341
      %v1018 = vunpack.c.l.b16 %v342
      %v1019 = vunpack.c.h.b16 %v342
      %v1020 = vunpack.c.l.b16 %v343
      %v1021 = vunpack.c.h.b16 %v343
      %v1022 = vunpack.c.l.b16 %v344
      %v1023 = vunpack.c.h.b16 %v344
      %v1024 = vunpack.c.l.b16 %v345
      %v1025 = vunpack.c.h.b16 %v345
      %v1026 = vunpack.c.l.b16 %v346
      %v1027 = vunpack.c.h.b16 %v346
      %v1028 = vunpack.c.l.b16 %v347
      %v1029 = vunpack.c.h.b16 %v347
      %v1030 = vunpack.c.l.b16 %v348
      %v1031 = vunpack.c.h.b16 %v348
      %v1032 = vunpack.c.l.b16 %v349
      %v1033 = vunpack.c.h.b16 %v349
      %v1034 = vunpack.c.l.b16 %v350
      %v1035 = vunpack.c.h.b16 %v350
      %v1036 = vunpack.c.l.b16 %v351
      %v1037 = vunpack.c.h.b16 %v351
      %v1038 = vunpack.c.l.b16 %v352
      %v1039 = vunpack.c.h.b16 %v352
      %v1040 = vunpack.c.l.b16 %v353
      %v1041 = vunpack.c.h.b16 %v353
      %v1042 = vunpack.c.l.b16 %v354
      %v1043 = vunpack.c.h.b16 %v354
      %v1044 = vunpack.c.l.b16 %v355
      %v1045 = vunpack.c.h.b16 %v355
      %v1046 = vunpack.c.l.b16 %v356
      %v1047 = vunpack.c.h.b16 %v356
      %v1048 = vunpack.c.l.b16 %v357
      %v1049 = vunpack.c.h.b16 %v357
      %v1050 = vunpack.c.l.b16 %v358
      %v1051 = vunpack.c.h.b16 %v358
      %v1052 = vunpack.c.l.b16 %v359
      %v1053 = vunpack.c.h.b16 %v359
      %v1054 = vunpack.c.l.b16 %v360
      %v1055 = vunpack.c.h.b16 %v360
      %v1056 = vunpack.c.l.b16 %v361
      %v1057 = vunpack.c.h.b16 %v361
      %v1058 = vunpack.c.l.b16 %v362
      %v1059 = vunpack.c.h.b16 %v362
      %v1060 = vunpack.c.l.b16 %v363
      %v1061 = vunpack.c.h.b16 %v363
      %v1062 = vunpack.c.l.b16 %v364
      %v1063 = vunpack.c.h.b16 %v364
      %v1064 = vunpack.c.l.b16 %v365
      %v1065 = vunpack.c.h.b16 %v365
      %v1066 = vunpack.c.l.b16 %v366
      %v1067 = vunpack.c.h.b16 %v366
      %v1068 = vunpack.c.l.b16 %v367
      %v1069 = vunpack.c.h.b16 %v367
      %v1070 = vunpack.c.l.b16 %v368
      %v1071 = vunpack.c.h.b16 %v368
      %v1072 = vunpack.c.l.b16 %v369
      %v1073 = vunpack.c.h.b16 %v369
      %v1074 = vunpack.c.l.b16 %v370
      %v1075 = vunpack.c.h.b16 %v370
      %v1076 = vunpack.c.l.b16 %v371
      %v1077 = vunpack.c.h.b16 %v371
      %v1078 = vunpack.c.l.b16 %v372
      %v1079 = vunpack.c.h.b16 %v372
      %v1080 = vunpack.c.l.b16 %v373
      %v1081 = vunpack.c.h.b16 %v373
      %v1082 = vunpack.c.l.b16 %v374
      %v1083 = vunpack.c.h.b16 %v374
      %v1084 = vunpack.c.l.b16 %v375
      %v1085 = vunpack.c.h.b16 %v375
      %v1086 = vunpack.c.l.b16 %v376
      %v1087 = vunpack.c.h.b16 %v376
      %v1088 = vunpack.c.l.b16 %v377
      %v1089 = vunpack.c.h.b16 %v377
      %v1090 = vunpack.c.l.b16 %v378
      %v1091 = vunpack.c.h.b16 %v378
      %v1092 = vunpack.c.l.b16 %v379
      %v1093 = vunpack.c.h.b16 %v379
      %v1094 = vunpack.c.l.b16 %v380
      %v1095 = vunpack.c.h.b16 %v380
      %v1096 = vunpack.c.l.b16 %v381
      %v1097 = vunpack.c.h.b16 %v381
      %v1098 = vunpack.c.l.b16 %v382
      %v1099 = vunpack.c.h.b16 %v382
      %v1100 = vunpack.c.l.b16 %v383
      %v1101 = vunpack.c.h.b16 %v383
      %v1102 = vunpack.c.l.b16 %v384
      %v1103 = vunpack.c.h.b16 %v384
      %v1104 = vunpack.c.l.b16 %v385
      %v1105 = vunpack.c.h.b16 %v385
      %v1106 = vunpack.c.l.b16 %v386
      %v1107 = vunpack.c.h.b16 %v386
      %v1108 = vunpack.c.l.b16 %v387
      %v1109 = vunpack.c.h.b16 %v387
      %v1110 = vunpack.c.l.b16 %v388
      %v1111 = vunpack.c.h.b16 %v388
      %v1112 = vunpack.c.l.b16 %v389
      %v1113 = vunpack.c.h.b16 %v389
      %v1114 = vunpack.c.l.b16 %v390
      %v1115 = vunpack.c.h.b16 %v390
      %v1116 = vunpack.c.l.b16 %v391
      %v1117 = vunpack.c.h.b16 %v391
      %v1118 = vunpack.c.l.b16 %v392
      %v1119 = vunpack.c.h.b16 %v392
      %v1120 = vunpack.c.l.b16 %v393
      %v1121 = vunpack.c.h.b16 %v393
      %v1122 = vunpack.c.l.b16 %v394
      %v1123 = vunpack.c.h.b16 %v394
      %v1124 = vunpack.c.l.b16 %v395
      %v1125 = vunpack.c.h.b16 %v395
      %v1126 = vunpack.c.l.b16 %v396
      %v1127 = vunpack.c.h.b16 %v396
      %v1128 = vunpack.c.l.b16 %v397
      %v1129 = vunpack.c.h.b16 %v397
      %v1130 = vunpack.c.l.b16 %v398
      %v1131 = vunpack.c.h.b16 %v398
      %v1132 = vunpack.c.l.b16 %v399
      %v1133 = vunpack.c.h.b16 %v399
      %v1134 = vunpack.c.l.b16 %v400
      %v1135 = vunpack.c.h.b16 %v400
      %v1136 = vunpack.c.l.b16 %v401
      %v1137 = vunpack.c.h.b16 %v401
      %v1138 = vunpack.c.l.b16 %v402
      %v1139 = vunpack.c.h.b16 %v402
      %v1140 = vunpack.c.l.b16 %v403
      %v1141 = vunpack.c.h.b16 %v403
      %v1142 = vunpack.c.l.b16 %v404
      %v1143 = vunpack.c.h.b16 %v404
      %v1144 = vunpack.c.l.b16 %v405
      %v1145 = vunpack.c.h.b16 %v405
      %v1146 = vunpack.c.l.b16 %v406
      %v1147 = vunpack.c.h.b16 %v406
      %v1148 = vunpack.c.l.b16 %v407
      %v1149 = vunpack.c.h.b16 %v407
      %v1150 = vunpack.c.l.b16 %v408
      %v1151 = vunpack.c.h.b16 %v408
      %v1152 = vunpack.c.l.b16 %v409
      %v1153 = vunpack.c.h.b16 %v409
      %v1154 = vunpack.c.l.b16 %v410
      %v1155 = vunpack.c.h.b16 %v410
      %v1156 = vunpack.c.l.b16 %v411
      %v1157 = vunpack.c.h.b16 %v411
      %v1158 = vunpack.c.l.b16 %v412
      %v1159 = vunpack.c.h.b16 %v412
      %v1160 = vunpack.c.l.b16 %v413
      %v1161 = vunpack.c.h.b16 %v413
      %v1162 = vunpack.c.l.b16 %v414
      %v1163 = vunpack.c.h.b16 %v414
      %v1164 = vunpack.c.l.b16 %v415
      %v1165 = vunpack.c.h.b16 %v415
      %v1166 = vunpack.c.l.b16 %v416
      %v1167 = vunpack.c.h.b16 %v416
      %v1168 = vunpack.c.l.b16 %v417
      %v1169 = vunpack.c.h.b16 %v417
      %v1170 = vunpack.c.l.b16 %v418
      %v1171 = vunpack.c.h.b16 %v418
      %v1172 = vunpack.c.l.b16 %v419
      %v1173 = vunpack.c.h.b16 %v419
      %v1174 = vunpack.c.l.b16 %v420
      %v1175 = vunpack.c.h.b16 %v420
      %v1176 = vunpack.c.l.b16 %v421
      %v1177 = vunpack.c.h.b16 %v421
      %v1178 = vunpack.c.l.b16 %v422
      %v1179 = vunpack.c.h.b16 %v422
      %v1180 = vunpack.c.l.b16 %v423
      %v1181 = vunpack.c.h.b16 %v423
      %v1182 = vunpack.c.l.b16 %v424
      %v1183 = vunpack.c.h.b16 %v424
      %v1184 = vunpack.c.l.b16 %v425
      %v1185 = vunpack.c.h.b16 %v425
      %v1186 = vunpack.c.l.b16 %v426
      %v1187 = vunpack.c.h.b16 %v426
      %v1188 = vunpack.c.l.b16 %v427
      %v1189 = vunpack.c.h.b16 %v427
      %v1190 = vunpack.c.l.b16 %v428
      %v1191 = vunpack.c.h.b16 %v428
      %v1192 = vunpack.c.l.b16 %v429
      %v1193 = vunpack.c.h.b16 %v429
      %v1194 = vunpack.c.l.b16 %v430
      %v1195 = vunpack.c.h.b16 %v430
      %v1196 = vunpack.c.l.b16 %v431
      %v1197 = vunpack.c.h.b16 %v431
      %v1198 = vunpack.c.l.b16 %v432
      %v1199 = vunpack.c.h.b16 %v432
      %v1200 = vunpack.c.l.b16 %v433
      %v1201 = vunpack.c.h.b16 %v433
      %v1202 = vunpack.c.l.b16 %v434
      %v1203 = vunpack.c.h.b16 %v434
      %v1204 = vunpack.c.l.b16 %v435
      %v1205 = vunpack.c.h.b16 %v435
      %v1206 = vunpack.c.l.b16 %v436
      %v1207 = vunpack.c.h.b16 %v436
      %v1208 = vunpack.c.l.b16 %v437
      %v1209 = vunpack.c.h.b16 %v437
      %v1210 = vunpack.c.l.b16 %v438
      %v1211 = vunpack.c.h.b16 %v438
      %v1212 = vunpack.c.l.b16 %v439
      %v1213 = vunpack.c.h.b16 %v439
      %v1214 = vunpack.c.l.b16 %v440
      %v1215 = vunpack.c.h.b16 %v440
      %v1216 = vunpack.c.l.b16 %v441
      %v1217 = vunpack.c.h.b16 %v441
      %v1218 = vunpack.c.l.b16 %v442
      %v1219 = vunpack.c.h.b16 %v442
      %v1220 = vunpack.c.l.b16 %v443
      %v1221 = vunpack.c.h.b16 %v443
      %v1222 = vunpack.c.l.b16 %v444
      %v1223 = vunpack.c.h.b16 %v444
      %v1224 = vunpack.c.l.b16 %v445
      %v1225 = vunpack.c.h.b16 %v445
      %v1226 = vunpack.c.l.b16 %v446
      %v1227 = vunpack.c.h.b16 %v446
      %v1228 = vunpack.c.l.b16 %v447
      %v1229 = vunpack.c.h.b16 %v447
      %v1230 = vunpack.c.l.b16 %v448
      %v1231 = vunpack.c.h.b16 %v448
      %v1232 = vunpack.c.l.b16 %v449
      %v1233 = vunpack.c.h.b16 %v449
      %v1234 = vunpack.c.l.b16 %v450
      %v1235 = vunpack.c.h.b16 %v450
      %v1236 = vunpack.c.l.b16 %v451
      %v1237 = vunpack.c.h.b16 %v451
      %v1238 = vunpack.c.l.b16 %v452
      %v1239 = vunpack.c.h.b16 %v452
      %v1240 = vunpack.c.l.b16 %v453
      %v1241 = vunpack.c.h.b16 %v453
      %v1242 = vunpack.c.l.b16 %v454
      %v1243 = vunpack.c.h.b16 %v454
      %v1244 = vunpack.c.l.b16 %v455
      %v1245 = vunpack.c.h.b16 %v455
      %v1246 = vunpack.c.l.b16 %v456
      %v1247 = vunpack.c.h.b16 %v456
      %v1248 = vunpack.c.l.b16 %v457
      %v1249 = vunpack.c.h.b16 %v457
      %v1250 = vunpack.c.l.b16 %v458
      %v1251 = vunpack.c.h.b16 %v458
      %v1252 = vunpack.c.l.b16 %v459
      %v1253 = vunpack.c.h.b16 %v459
      %v1254 = vunpack.c.l.b16 %v460
      %v1255 = vunpack.c.h.b16 %v460
      %v1256 = vunpack.c.l.b16 %v461
      %v1257 = vunpack.c.h.b16 %v461
      %v1258 = vunpack.c.l.b16 %v462
      %v1259 = vunpack.c.h.b16 %v462
      %v1260 = vunpack.c.l.b16 %v463
      %v1261 = vunpack.c.h.b16 %v463
      %v1262 = vunpack.c.l.b16 %v464
      %v1263 = vunpack.c.h.b16 %v464
      %v1264 = vunpack.c.l.b16 %v465
      %v1265 = vunpack.c.h.b16 %v465
      %v1266 = vunpack.c.l.b16 %v466
      %v1267 = vunpack.c.h.b16 %v466
      %v1268 = vunpack.c.l.b16 %v467
      %v1269 = vunpack.c.h.b16 %v467
      %v1270 = vunpack.c.l.b16 %v468
      %v1271 = vunpack.c.h.b16 %v468
      %v1272 = vunpack.c.l.b16 %v469
      %v1273 = vunpack.c.h.b16 %v469
      %v1274 = vunpack.c.l.b16 %v470
      %v1275 = vunpack.c.h.b16 %v470
      %v1276 = vunpack.c.l.b16 %v471
      %v1277 = vunpack.c.h.b16 %v471
      %v1278 = vunpack.c.l.b16 %v472
      %v1279 = vunpack.c.h.b16 %v472
      %v1280 = vunpack.c.l.b16 %v473
      %v1281 = vunpack.c.h.b16 %v473
      %v1282 = vunpack.c.l.b16 %v474
      %v1283 = vunpack.c.h.b16 %v474
      %v1284 = vunpack.c.l.b16 %v475
      %v1285 = vunpack.c.h.b16 %v475
      %v1286 = vunpack.c.l.b16 %v476
      %v1287 = vunpack.c.h.b16 %v476
      %v1288 = vunpack.c.l.b16 %v477
      %v1289 = vunpack.c.h.b16 %v477
      %v1290 = vunpack.c.l.b16 %v478
      %v1291 = vunpack.c.h.b16 %v478
      %v1292 = vunpack.c.l.b16 %v479
      %v1293 = vunpack.c.h.b16 %v479
      %v1294 = vunpack.c.l.b16 %v480
      %v1295 = vunpack.c.h.b16 %v480
      %v1296 = vunpack.c.l.b16 %v481
      %v1297 = vunpack.c.h.b16 %v481
      %v1298 = vunpack.c.l.b16 %v482
      %v1299 = vunpack.c.h.b16 %v482
      %v1300 = vunpack.c.l.b16 %v483
      %v1301 = vunpack.c.h.b16 %v483
      %v1302 = vpack.c.b16 %v794, %v790
      %v1303 = vpack.c.b16 %v795, %v791
      %v1304 = vpack.c.b16 %v796, %v792
      %v1305 = vpack.c.b16 %v797, %v793
      %v1306 = vpack.c.b16 %v802, %v798
      %v1307 = vpack.c.b16 %v803, %v799
      %v1308 = vpack.c.b16 %v804, %v800
      %v1309 = vpack.c.b16 %v805, %v801
      %v1310 = vpack.c.b16 %v810, %v806
      %v1311 = vpack.c.b16 %v811, %v807
      %v1312 = vpack.c.b16 %v812, %v808
      %v1313 = vpack.c.b16 %v813, %v809
      %v1314 = vpack.c.b16 %v818, %v814
      %v1315 = vpack.c.b16 %v819, %v815
      %v1316 = vpack.c.b16 %v820, %v816
      %v1317 = vpack.c.b16 %v821, %v817
      %v1318 = vpack.c.b16 %v826, %v822
      %v1319 = vpack.c.b16 %v827, %v823
      %v1320 = vpack.c.b16 %v828, %v824
      %v1321 = vpack.c.b16 %v829, %v825
      %v1322 = vpack.c.b16 %v834, %v830
      %v1323 = vpack.c.b16 %v835, %v831
      %v1324 = vpack.c.b16 %v836, %v832
      %v1325 = vpack.c.b16 %v837, %v833
      %v1326 = vpack.c.b16 %v842, %v838
      %v1327 = vpack.c.b16 %v843, %v839
      %v1328 = vpack.c.b16 %v844, %v840
      %v1329 = vpack.c.b16 %v845, %v841
      %v1330 = vpack.c.b16 %v850, %v846
      %v1331 = vpack.c.b16 %v851, %v847
      %v1332 = vpack.c.b16 %v852, %v848
      %v1333 = vpack.c.b16 %v853, %v849
      %v1334 = vpack.c.b16 %v858, %v854
      %v1335 = vpack.c.b16 %v859, %v855
      %v1336 = vpack.c.b16 %v860, %v856
      %v1337 = vpack.c.b16 %v861, %v857
      %v1338 = vpack.c.b16 %v866, %v862
      %v1339 = vpack.c.b16 %v867, %v863
      %v1340 = vpack.c.b16 %v868, %v864
      %v1341 = vpack.c.b16 %v869, %v865
      %v1342 = vpack.c.b16 %v874, %v870
      %v1343 = vpack.c.b16 %v875, %v871
      %v1344 = vpack.c.b16 %v876, %v872
      %v1345 = vpack.c.b16 %v877, %v873
      %v1346 = vpack.c.b16 %v882, %v878
      %v1347 = vpack.c.b16 %v883, %v879
      %v1348 = vpack.c.b16 %v884, %v880
      %v1349 = vpack.c.b16 %v885, %v881
      %v1350 = vpack.c.b16 %v890, %v886
      %v1351 = vpack.c.b16 %v891, %v887
      %v1352 = vpack.c.b16 %v892, %v888
      %v1353 = vpack.c.b16 %v893, %v889
      %v1354 = vpack.c.b16 %v898, %v894
      %v1355 = vpack.c.b16 %v899, %v895
      %v1356 = vpack.c.b16 %v900, %v896
      %v1357 = vpack.c.b16 %v901, %v897
      %v1358 = vpack.c.b16 %v906, %v902
      %v1359 = vpack.c.b16 %v907, %v903
      %v1360 = vpack.c.b16 %v908, %v904
      %v1361 = vpack.c.b16 %v909, %v905
      %v1362 = vpack.c.b16 %v914, %v910
      %v1363 = vpack.c.b16 %v915, %v911
      %v1364 = vpack.c.b16 %v916, %v912
      %v1365 = vpack.c.b16 %v917, %v913
      %v1366 = vpack.c.b16 %v922, %v918
      %v1367 = vpack.c.b16 %v923, %v919
      %v1368 = vpack.c.b16 %v924, %v920
      %v1369 = vpack.c.b16 %v925, %v921
      %v1370 = vpack.c.b16 %v930, %v926
      %v1371 = vpack.c.b16 %v931, %v927
      %v1372 = vpack.c.b16 %v932, %v928
      %v1373 = vpack.c.b16 %v933, %v929
      %v1374 = vpack.c.b16 %v938, %v934
      %v1375 = vpack.c.b16 %v939, %v935
      %v1376 = vpack.c.b16 %v940, %v936
      %v1377 = vpack.c.b16 %v941, %v937
      %v1378 = vpack.c.b16 %v946, %v942
      %v1379 = vpack.c.b16 %v947, %v943
      %v1380 = vpack.c.b16 %v948, %v944
      %v1381 = vpack.c.b16 %v949, %v945
      %v1382 = vpack.c.b16 %v954, %v950
      %v1383 = vpack.c.b16 %v955, %v951
      %v1384 = vpack.c.b16 %v956, %v952
      %v1385 = vpack.c.b16 %v957, %v953
      %v1386 = vpack.c.b16 %v962, %v958
      %v1387 = vpack.c.b16 %v963, %v959
      %v1388 = vpack.c.b16 %v964, %v960
      %v1389 = vpack.c.b16 %v965, %v961
      %v1390 = vpack.c.b16 %v970, %v966
      %v1391 = vpack.c.b16 %v971, %v967
      %v1392 = vpack.c.b16 %v972, %v968
      %v1393 = vpack.c.b16 %v973, %v969
      %v1394 = vpack.c.b16 %v978, %v974
      %v1395 = vpack.c.b16 %v979, %v975
      %v1396 = vpack.c.b16 %v980, %v976
      %v1397 = vpack.c.b16 %v981, %v977
      %v1398 = vpack.c.b16 %v986, %v982
      %v1399 = vpack.c.b16 %v987, %v983
      %v1400 = vpack.c.b16 %v988, %v984
      %v1401 = vpack.c.b16 %v989, %v985
      %v1402 = vpack.c.b16 %v994, %v990
      %v1403 = vpack.c.b16 %v995, %v991
      %v1404 = vpack.c.b16 %v996, %v992
      %v1405 = vpack.c.b16 %v997, %v993
      %v1406 = vpack.c.b16 %v1002, %v998
      %v1407 = vpack.c.b16 %v1003, %v999
      %v1408 = vpack.c.b16 %v1004, %v1000
      %v1409 = vpack.c.b16 %v1005, %v1001
      %v1410 = vpack.c.b16 %v1010, %v1006
      %v1411 = vpack.c.b16 %v1011, %v1007
      %v1412 = vpack.c.b16 %v1012, %v1008
      %v1413 = vpack.c.b16 %v1013, %v1009
      %v1414 = vpack.c.b16 %v1018, %v1014
      %v1415 = vpack.c.b16 %v1019, %v1015
      %v1416 = vpack.c.b16 %v1020, %v1016
      %v1417 = vpack.c.b16 %v1021, %v1017
      %v1418 = vpack.c.b16 %v1026, %v1022
      %v1419 = vpack.c.b16 %v1027, %v1023
      %v1420 = vpack.c.b16 %v1028, %v1024
      %v1421 = vpack.c.b16 %v1029, %v1025
      %v1422 = vpack.c.b16 %v1034, %v1030
      %v1423 = vpack.c.b16 %v1035, %v1031
      %v1424 = vpack.c.b16 %v1036, %v1032
      %v1425 = vpack.c.b16 %v1037, %v1033
      %v1426 = vpack.c.b16 %v1042, %v1038
      %v1427 = vpack.c.b16 %v1043, %v1039
      %v1428 = vpack.c.b16 %v1044, %v1040
      %v1429 = vpack.c.b16 %v1045, %v1041
      %v1430 = vpack.c.b16 %v1050, %v1046
      %v1431 = vpack.c.b16 %v1051, %v1047
      %v1432 = vpack.c.b16 %v1052, %v1048
      %v1433 = vpack.c.b16 %v1053, %v1049
      %v1434 = vpack.c.b16 %v1058, %v1054
      %v1435 = vpack.c.b16 %v1059, %v1055
      %v1436 = vpack.c.b16 %v1060, %v1056
      %v1437 = vpack.c.b16 %v1061, %v1057
      %v1438 = vpack.c.b16 %v1066, %v1062
      %v1439 = vpack.c.b16 %v1067, %v1063
      %v1440 = vpack.c.b16 %v1068, %v1064
      %v1441 = vpack.c.b16 %v1069, %v1065
      %v1442 = vpack.c.b16 %v1074, %v1070
      %v1443 = vpack.c.b16 %v1075, %v1071
      %v1444 = vpack.c.b16 %v1076, %v1072
      %v1445 = vpack.c.b16 %v1077, %v1073
      %v1446 = vpack.c.b16 %v1082, %v1078
      %v1447 = vpack.c.b16 %v1083, %v1079
      %v1448 = vpack.c.b16 %v1084, %v1080
      %v1449 = vpack.c.b16 %v1085, %v1081
      %v1450 = vpack.c.b16 %v1090, %v1086
      %v1451 = vpack.c.b16 %v1091, %v1087
      %v1452 = vpack.c.b16 %v1092, %v1088
      %v1453 = vpack.c.b16 %v1093, %v1089
      %v1454 = vpack.c.b16 %v1098, %v1094
      %v1455 = vpack.c.b16 %v1099, %v1095
      %v1456 = vpack.c.b16 %v1100, %v1096
      %v1457 = vpack.c.b16 %v1101, %v1097
      %v1458 = vpack.c.b16 %v1106, %v1102
      %v1459 = vpack.c.b16 %v1107, %v1103
      %v1460 = vpack.c.b16 %v1108, %v1104
      %v1461 = vpack.c.b16 %v1109, %v1105
      %v1462 = vpack.c.b16 %v1114, %v1110
      %v1463 = vpack.c.b16 %v1115, %v1111
      %v1464 = vpack.c.b16 %v1116, %v1112
      %v1465 = vpack.c.b16 %v1117, %v1113
      %v1466 = vpack.c.b16 %v1122, %v1118
      %v1467 = vpack.c.b16 %v1123, %v1119
      %v1468 = vpack.c.b16 %v1124, %v1120
      %v1469 = vpack.c.b16 %v1125, %v1121
      %v1470 = vpack.c.b16 %v1130, %v1126
      %v1471 = vpack.c.b16 %v1131, %v1127
      %v1472 = vpack.c.b16 %v1132, %v1128
      %v1473 = vpack.c.b16 %v1133, %v1129
      %v1474 = vpack.c.b16 %v1138, %v1134
      %v1475 = vpack.c.b16 %v1139, %v1135
      %v1476 = vpack.c.b16 %v1140, %v1136
      %v1477 = vpack.c.b16 %v1141, %v1137
      %v1478 = vpack.c.b16 %v1146, %v1142
      %v1479 = vpack.c.b16 %v1147, %v1143
      %v1480 = vpack.c.b16 %v1148, %v1144
      %v1481 = vpack.c.b16 %v1149, %v1145
      %v1482 = vpack.c.b16 %v1154, %v1150
      %v1483 = vpack.c.b16 %v1155, %v1151
      %v1484 = vpack.c.b16 %v1156, %v1152
      %v1485 = vpack.c.b16 %v1157, %v1153
      %v1486 = vpack.c.b16 %v1162, %v1158
      %v1487 = vpack.c.b16 %v1163, %v1159
      %v1488 = vpack.c.b16 %v1164, %v1160
      %v1489 = vpack.c.b16 %v1165, %v1161
      %v1490 = vpack.c.b16 %v1170, %v1166
      %v1491 = vpack.c.b16 %v1171, %v1167
      %v1492 = vpack.c.b16 %v1172, %v1168
      %v1493 = vpack.c.b16 %v1173, %v1169
      %v1494 = vpack.c.b16 %v1178, %v1174
      %v1495 = vpack.c.b16 %v1179, %v1175
      %v1496 = vpack.c.b16 %v1180, %v1176
      %v1497 = vpack.c.b16 %v1181, %v1177
      %v1498 = vpack.c.b16 %v1186, %v1182
      %v1499 = vpack.c.b16 %v1187, %v1183
      %v1500 = vpack.c.b16 %v1188, %v1184
      %v1501 = vpack.c.b16 %v1189, %v1185
      %v1502 = vpack.c.b16 %v1194, %v1190
      %v1503 = vpack.c.b16 %v1195, %v1191
      %v1504 = vpack.c.b16 %v1196, %v1192
      %v1505 = vpack.c.b16 %v1197, %v1193
      %v1506 = vpack.c.b16 %v1202, %v1198
      %v1507 = vpack.c.b16 %v1203, %v1199
      %v1508 = vpack.c.b16 %v1204, %v1200
      %v1509 = vpack.c.b16 %v1205, %v1201
      %v1510 = vpack.c.b16 %v1210, %v1206
      %v1511 = vpack.c.b16 %v1211, %v1207
      %v1512 = vpack.c.b16 %v1212, %v1208
      %v1513 = vpack.c.b16 %v1213, %v1209
      %v1514 = vpack.c.b16 %v1218, %v1214
      %v1515 = vpack.c.b16 %v1219, %v1215
      %v1516 = vpack.c.b16 %v1220, %v1216
      %v1517 = vpack.c.b16 %v1221, %v1217
      %v1518 = vpack.c.b16 %v1226, %v1222
      %v1519 = vpack.c.b16 %v1227, %v1223
      %v1520 = vpack.c.b16 %v1228, %v1224
      %v1521 = vpack.c.b16 %v1229, %v1225
      %v1522 = vpack.c.b16 %v1234, %v1230
      %v1523 = vpack.c.b16 %v1235, %v1231
      %v1524 = vpack.c.b16 %v1236, %v1232
      %v1525 = vpack.c.b16 %v1237, %v1233
      %v1526 = vpack.c.b16 %v1242, %v1238
      %v1527 = vpack.c.b16 %v1243, %v1239
      %v1528 = vpack.c.b16 %v1244, %v1240
      %v1529 = vpack.c.b16 %v1245, %v1241
      %v1530 = vpack.c.b16 %v1250, %v1246
      %v1531 = vpack.c.b16 %v1251, %v1247
      %v1532 = vpack.c.b16 %v1252, %v1248
      %v1533 = vpack.c.b16 %v1253, %v1249
      %v1534 = vpack.c.b16 %v1258, %v1254
      %v1535 = vpack.c.b16 %v1259, %v1255
      %v1536 = vpack.c.b16 %v1260, %v1256
      %v1537 = vpack.c.b16 %v1261, %v1257
      %v1538 = vpack.c.b16 %v1266, %v1262
      %v1539 = vpack.c.b16 %v1267, %v1263
      %v1540 = vpack.c.b16 %v1268, %v1264
      %v1541 = vpack.c.b16 %v1269, %v1265
      %v1542 = vpack.c.b16 %v1274, %v1270
      %v1543 = vpack.c.b16 %v1275, %v1271
      %v1544 = vpack.c.b16 %v1276, %v1272
      %v1545 = vpack.c.b16 %v1277, %v1273
      %v1546 = vpack.c.b16 %v1282, %v1278
      %v1547 = vpack.c.b16 %v1283, %v1279
      %v1548 = vpack.c.b16 %v1284, %v1280
      %v1549 = vpack.c.b16 %v1285, %v1281
      %v1550 = vpack.c.b16 %v1290, %v1286
      %v1551 = vpack.c.b16 %v1291, %v1287
      %v1552 = vpack.c.b16 %v1292, %v1288
      %v1553 = vpack.c.b16 %v1293, %v1289
      %v1554 = vpack.c.b16 %v1298, %v1294
      %v1555 = vpack.c.b16 %v1299, %v1295
      %v1556 = vpack.c.b16 %v1300, %v1296
      %v1557 = vpack.c.b16 %v1301, %v1297
      %1814 = vmatprep.subr.bf16.mxu0 %v1303
      %1815 = vmatpush1.bf16.msra.mxu0 %v1302
      %1816 = vmatprep.subr.bf16.mxu0 %v1307
      %1817 = vmatpush1.bf16.msra.mxu0 %v1306
      %1818 = vmatprep.subr.bf16.mxu0 %v1311
      %1819 = vmatpush1.bf16.msra.mxu0 %v1310
      %1820 = vmatprep.subr.bf16.mxu0 %v1315
      %1821 = vmatpush1.bf16.msra.mxu0 %v1314
      %1822 = vmatprep.subr.bf16.mxu0 %v1319
      %1823 = vmatpush1.bf16.msra.mxu0 %v1318
      %1824 = vmatprep.subr.bf16.mxu0 %v1323
      %1825 = vmatpush1.bf16.msra.mxu0 %v1322
      %1826 = vmatprep.subr.bf16.mxu0 %v1327
      %1827 = vmatpush1.bf16.msra.mxu0 %v1326
      %1828 = vmatprep.subr.bf16.mxu0 %v1331
      %1829 = vmatpush1.bf16.msra.mxu0 %v1330
      %1830 = vmatprep.subr.bf16.mxu0 %v1335
      %1831 = vmatpush1.bf16.msra.mxu0 %v1334
      %1832 = vmatprep.subr.bf16.mxu0 %v1339
      %1833 = vmatpush1.bf16.msra.mxu0 %v1338
      %1834 = vmatprep.subr.bf16.mxu0 %v1343
      %1835 = vmatpush1.bf16.msra.mxu0 %v1342
      %1836 = vmatprep.subr.bf16.mxu0 %v1347
      %1837 = vmatpush1.bf16.msra.mxu0 %v1346
      %1838 = vmatprep.subr.bf16.mxu0 %v1351
      %1839 = vmatpush1.bf16.msra.mxu0 %v1350
      %1840 = vmatprep.subr.bf16.mxu0 %v1355
      %1841 = vmatpush1.bf16.msra.mxu0 %v1354
      %1842 = vmatprep.subr.bf16.mxu0 %v1359
      %1843 = vmatpush1.bf16.msra.mxu0 %v1358
      %1844 = vmatprep.subr.bf16.mxu0 %v1363
      %1845 = vmatpush1.bf16.msra.mxu0 %v1362
      %1846 = vmatprep.mubr.bf16.mxu0 %v519
      %1847 = vmatmul.mubr.bf16.gmra.mrb[0].mxu0 %v518
      %v1848 = vpop.f32.mrb[0].mxu0
      %v1849 = vadd.f32 %v489, %v1848
      %v1850 = vpop.f32.mrb[0].mxu0
      %v1851 = vadd.f32 %v493, %v1850
      %v1852 = vpop.f32.mrb[0].mxu0
      %v1853 = vpop.f32.mrb[0].mxu0
      %1854 = vdwg.mxu0
      %1855 = vmatprep.subr.bf16.mxu0 %v1367
      %1856 = vmatpush1.bf16.msra.mxu0 %v1366
      %1857 = vmatprep.subr.bf16.mxu0 %v1371
      %1858 = vmatpush1.bf16.msra.mxu0 %v1370
      %1859 = vmatprep.subr.bf16.mxu0 %v1375
      %1860 = vmatpush1.bf16.msra.mxu0 %v1374
      %1861 = vmatprep.subr.bf16.mxu0 %v1379
      %1862 = vmatpush1.bf16.msra.mxu0 %v1378
      %1863 = vmatprep.subr.bf16.mxu0 %v1383
      %1864 = vmatpush1.bf16.msra.mxu0 %v1382
      %1865 = vmatprep.subr.bf16.mxu0 %v1387
      %1866 = vmatpush1.bf16.msra.mxu0 %v1386
      %1867 = vmatprep.subr.bf16.mxu0 %v1391
      %1868 = vmatpush1.bf16.msra.mxu0 %v1390
      %1869 = vmatprep.subr.bf16.mxu0 %v1395
      %1870 = vmatpush1.bf16.msra.mxu0 %v1394
      %1871 = vmatprep.subr.bf16.mxu0 %v1399
      %1872 = vmatpush1.bf16.msra.mxu0 %v1398
      %1873 = vmatprep.subr.bf16.mxu0 %v1403
      %1874 = vmatpush1.bf16.msra.mxu0 %v1402
      %1875 = vmatprep.subr.bf16.mxu0 %v1407
      %1876 = vmatpush1.bf16.msra.mxu0 %v1406
      %1877 = vmatprep.subr.bf16.mxu0 %v1411
      %1878 = vmatpush1.bf16.msra.mxu0 %v1410
      %1879 = vmatprep.subr.bf16.mxu0 %v1415
      %1880 = vmatpush1.bf16.msra.mxu0 %v1414
      %1881 = vmatprep.subr.bf16.mxu0 %v1419
      %1882 = vmatpush1.bf16.msra.mxu0 %v1418
      %1883 = vmatprep.subr.bf16.mxu0 %v1423
      %1884 = vmatpush1.bf16.msra.mxu0 %v1422
      %1885 = vmatprep.subr.bf16.mxu0 %v1427
      %1886 = vmatpush1.bf16.msra.mxu0 %v1426
      %1887 = vmatprep.mubr.bf16.mxu0 %v521
      %1888 = vmatmul.mubr.bf16.gmra.mrb[0].mxu0 %v520
      %v1889 = vpop.f32.mrb[0].mxu0
      %v1890 = vadd.f32 %v1849, %v1889
      %v1891 = vpop.f32.mrb[0].mxu0
      %v1892 = vadd.f32 %v1851, %v1891
      %v1893 = vpop.f32.mrb[0].mxu0
      %v1894 = vpop.f32.mrb[0].mxu0
      %1895 = vdwg.mxu0
      %1896 = vmatprep.subr.bf16.mxu0 %v1431
      %1897 = vmatpush1.bf16.msra.mxu0 %v1430
      %1898 = vmatprep.subr.bf16.mxu0 %v1435
      %1899 = vmatpush1.bf16.msra.mxu0 %v1434
      %1900 = vmatprep.subr.bf16.mxu0 %v1439
      %1901 = vmatpush1.bf16.msra.mxu0 %v1438
      %1902 = vmatprep.subr.bf16.mxu0 %v1443
      %1903 = vmatpush1.bf16.msra.mxu0 %v1442
      %1904 = vmatprep.subr.bf16.mxu0 %v1447
      %1905 = vmatpush1.bf16.msra.mxu0 %v1446
      %1906 = vmatprep.subr.bf16.mxu0 %v1451
      %1907 = vmatpush1.bf16.msra.mxu0 %v1450
      %1908 = vmatprep.subr.bf16.mxu0 %v1455
      %1909 = vmatpush1.bf16.msra.mxu0 %v1454
      %1910 = vmatprep.subr.bf16.mxu0 %v1459
      %1911 = vmatpush1.bf16.msra.mxu0 %v1458
      %1912 = vmatprep.subr.bf16.mxu0 %v1463
      %1913 = vmatpush1.bf16.msra.mxu0 %v1462
      %1914 = vmatprep.subr.bf16.mxu0 %v1467
      %1915 = vmatpush1.bf16.msra.mxu0 %v1466
      %1916 = vmatprep.subr.bf16.mxu0 %v1471
      %1917 = vmatpush1.bf16.msra.mxu0 %v1470
      %1918 = vmatprep.subr.bf16.mxu0 %v1475
      %1919 = vmatpush1.bf16.msra.mxu0 %v1474
      %1920 = vmatprep.subr.bf16.mxu0 %v1479
      %1921 = vmatpush1.bf16.msra.mxu0 %v1478
      %1922 = vmatprep.subr.bf16.mxu0 %v1483
      %1923 = vmatpush1.bf16.msra.mxu0 %v1482
      %1924 = vmatprep.subr.bf16.mxu0 %v1487
      %1925 = vmatpush1.bf16.msra.mxu0 %v1486
      %1926 = vmatprep.subr.bf16.mxu0 %v1491
      %1927 = vmatpush1.bf16.msra.mxu0 %v1490
      %1928 = vmatprep.mubr.bf16.mxu0 %v523
      %1929 = vmatmul.mubr.bf16.gmra.mrb[0].mxu0 %v522
      %v1930 = vpop.f32.mrb[0].mxu0
      %v1931 = vadd.f32 %v1890, %v1930
      %v1932 = vpop.f32.mrb[0].mxu0
      %v1933 = vadd.f32 %v1892, %v1932
      %v1934 = vpop.f32.mrb[0].mxu0
      %v1935 = vpop.f32.mrb[0].mxu0
      %1936 = vdwg.mxu0
      %1937 = vmatprep.subr.bf16.mxu0 %v1495
      %1938 = vmatpush1.bf16.msra.mxu0 %v1494
      %1939 = vmatprep.subr.bf16.mxu0 %v1499
      %1940 = vmatpush1.bf16.msra.mxu0 %v1498
      %1941 = vmatprep.subr.bf16.mxu0 %v1503
      %1942 = vmatpush1.bf16.msra.mxu0 %v1502
      %1943 = vmatprep.subr.bf16.mxu0 %v1507
      %1944 = vmatpush1.bf16.msra.mxu0 %v1506
      %1945 = vmatprep.subr.bf16.mxu0 %v1511
      %1946 = vmatpush1.bf16.msra.mxu0 %v1510
      %1947 = vmatprep.subr.bf16.mxu0 %v1515
      %1948 = vmatpush1.bf16.msra.mxu0 %v1514
      %1949 = vmatprep.subr.bf16.mxu0 %v1519
      %1950 = vmatpush1.bf16.msra.mxu0 %v1518
      %1951 = vmatprep.subr.bf16.mxu0 %v1523
      %1952 = vmatpush1.bf16.msra.mxu0 %v1522
      %1953 = vmatprep.subr.bf16.mxu0 %v1527
      %1954 = vmatpush1.bf16.msra.mxu0 %v1526
      %1955 = vmatprep.subr.bf16.mxu0 %v1531
      %1956 = vmatpush1.bf16.msra.mxu0 %v1530
      %1957 = vmatprep.subr.bf16.mxu0 %v1535
      %1958 = vmatpush1.bf16.msra.mxu0 %v1534
      %1959 = vmatprep.subr.bf16.mxu0 %v1539
      %1960 = vmatpush1.bf16.msra.mxu0 %v1538
      %1961 = vmatprep.subr.bf16.mxu0 %v1543
      %1962 = vmatpush1.bf16.msra.mxu0 %v1542
      %1963 = vmatprep.subr.bf16.mxu0 %v1547
      %1964 = vmatpush1.bf16.msra.mxu0 %v1546
      %1965 = vmatprep.subr.bf16.mxu0 %v1551
      %1966 = vmatpush1.bf16.msra.mxu0 %v1550
      %1967 = vmatprep.subr.bf16.mxu0 %v1555
      %1968 = vmatpush1.bf16.msra.mxu0 %v1554
      %1969 = vmatprep.mubr.bf16.mxu0 %v525
      %1970 = vmatmul.mubr.bf16.gmra.mrb[0].mxu0 %v524
      %v1971 = vpop.f32.mrb[0].mxu0
      %v1972 = vadd.f32 %v1931, %v1971
      %v1973 = vpop.f32.mrb[0].mxu0
      %v1974 = vadd.f32 %v1933, %v1973
      %v1975 = vpop.f32.mrb[0].mxu0
      %v1976 = vpop.f32.mrb[0].mxu0
      %1977 = vdwg.mxu0
      %1978 = vmatprep.subr.bf16.mxu0 %v1305
      %1979 = vmatpush1.bf16.msra.mxu0 %v1304
      %1980 = vmatprep.subr.bf16.mxu0 %v1309
      %1981 = vmatpush1.bf16.msra.mxu0 %v1308
      %1982 = vmatprep.subr.bf16.mxu0 %v1313
      %1983 = vmatpush1.bf16.msra.mxu0 %v1312
      %1984 = vmatprep.subr.bf16.mxu0 %v1317
      %1985 = vmatpush1.bf16.msra.mxu0 %v1316
      %1986 = vmatprep.subr.bf16.mxu0 %v1321
      %1987 = vmatpush1.bf16.msra.mxu0 %v1320
      %1988 = vmatprep.subr.bf16.mxu0 %v1325
      %1989 = vmatpush1.bf16.msra.mxu0 %v1324
      %1990 = vmatprep.subr.bf16.mxu0 %v1329
      %1991 = vmatpush1.bf16.msra.mxu0 %v1328
      %1992 = vmatprep.subr.bf16.mxu0 %v1333
      %1993 = vmatpush1.bf16.msra.mxu0 %v1332
      %1994 = vmatprep.subr.bf16.mxu0 %v1337
      %1995 = vmatpush1.bf16.msra.mxu0 %v1336
      %1996 = vmatprep.subr.bf16.mxu0 %v1341
      %1997 = vmatpush1.bf16.msra.mxu0 %v1340
      %1998 = vmatprep.subr.bf16.mxu0 %v1345
      %1999 = vmatpush1.bf16.msra.mxu0 %v1344
      %2000 = vmatprep.subr.bf16.mxu0 %v1349
      %2001 = vmatpush1.bf16.msra.mxu0 %v1348
      %2002 = vmatprep.subr.bf16.mxu0 %v1353
      %2003 = vmatpush1.bf16.msra.mxu0 %v1352
      %2004 = vmatprep.subr.bf16.mxu0 %v1357
      %2005 = vmatpush1.bf16.msra.mxu0 %v1356
      %2006 = vmatprep.subr.bf16.mxu0 %v1361
      %2007 = vmatpush1.bf16.msra.mxu0 %v1360
      %2008 = vmatprep.subr.bf16.mxu0 %v1365
      %2009 = vmatpush1.bf16.msra.mxu0 %v1364
      %2010 = vmatprep.mubr.bf16.mxu0 %v519
      %2011 = vmatmul.mubr.bf16.gmra.mrb[0].mxu0 %v518
      %v2012 = vpop.f32.mrb[0].mxu0
      %v2013 = vadd.f32 %v497, %v2012
      %v2014 = vpop.f32.mrb[0].mxu0
      %v2015 = vadd.f32 %v501, %v2014
      %v2016 = vpop.f32.mrb[0].mxu0
      %v2017 = vpop.f32.mrb[0].mxu0
      %2018 = vdwg.mxu0
      %2019 = vmatprep.subr.bf16.mxu0 %v1369
      %2020 = vmatpush1.bf16.msra.mxu0 %v1368
      %2021 = vmatprep.subr.bf16.mxu0 %v1373
      %2022 = vmatpush1.bf16.msra.mxu0 %v1372
      %2023 = vmatprep.subr.bf16.mxu0 %v1377
      %2024 = vmatpush1.bf16.msra.mxu0 %v1376
      %2025 = vmatprep.subr.bf16.mxu0 %v1381
      %2026 = vmatpush1.bf16.msra.mxu0 %v1380
      %2027 = vmatprep.subr.bf16.mxu0 %v1385
      %2028 = vmatpush1.bf16.msra.mxu0 %v1384
      %2029 = vmatprep.subr.bf16.mxu0 %v1389
      %2030 = vmatpush1.bf16.msra.mxu0 %v1388
      %2031 = vmatprep.subr.bf16.mxu0 %v1393
      %2032 = vmatpush1.bf16.msra.mxu0 %v1392
      %2033 = vmatprep.subr.bf16.mxu0 %v1397
      %2034 = vmatpush1.bf16.msra.mxu0 %v1396
      %2035 = vmatprep.subr.bf16.mxu0 %v1401
      %2036 = vmatpush1.bf16.msra.mxu0 %v1400
      %2037 = vmatprep.subr.bf16.mxu0 %v1405
      %2038 = vmatpush1.bf16.msra.mxu0 %v1404
      %2039 = vmatprep.subr.bf16.mxu0 %v1409
      %2040 = vmatpush1.bf16.msra.mxu0 %v1408
      %2041 = vmatprep.subr.bf16.mxu0 %v1413
      %2042 = vmatpush1.bf16.msra.mxu0 %v1412
      %2043 = vmatprep.subr.bf16.mxu0 %v1417
      %2044 = vmatpush1.bf16.msra.mxu0 %v1416
      %2045 = vmatprep.subr.bf16.mxu0 %v1421
      %2046 = vmatpush1.bf16.msra.mxu0 %v1420
      %2047 = vmatprep.subr.bf16.mxu0 %v1425
      %2048 = vmatpush1.bf16.msra.mxu0 %v1424
      %2049 = vmatprep.subr.bf16.mxu0 %v1429
      %2050 = vmatpush1.bf16.msra.mxu0 %v1428
      %2051 = vmatprep.mubr.bf16.mxu0 %v521
      %2052 = vmatmul.mubr.bf16.gmra.mrb[0].mxu0 %v520
      %v2053 = vpop.f32.mrb[0].mxu0
      %v2054 = vadd.f32 %v2013, %v2053
      %v2055 = vpop.f32.mrb[0].mxu0
      %v2056 = vadd.f32 %v2015, %v2055
      %v2057 = vpop.f32.mrb[0].mxu0
      %v2058 = vpop.f32.mrb[0].mxu0
      %2059 = vdwg.mxu0
      %2060 = vmatprep.subr.bf16.mxu0 %v1433
      %2061 = vmatpush1.bf16.msra.mxu0 %v1432
      %2062 = vmatprep.subr.bf16.mxu0 %v1437
      %2063 = vmatpush1.bf16.msra.mxu0 %v1436
      %2064 = vmatprep.subr.bf16.mxu0 %v1441
      %2065 = vmatpush1.bf16.msra.mxu0 %v1440
      %2066 = vmatprep.subr.bf16.mxu0 %v1445
      %2067 = vmatpush1.bf16.msra.mxu0 %v1444
      %2068 = vmatprep.subr.bf16.mxu0 %v1449
      %2069 = vmatpush1.bf16.msra.mxu0 %v1448
      %2070 = vmatprep.subr.bf16.mxu0 %v1453
      %2071 = vmatpush1.bf16.msra.mxu0 %v1452
      %2072 = vmatprep.subr.bf16.mxu0 %v1457
      %2073 = vmatpush1.bf16.msra.mxu0 %v1456
      %2074 = vmatprep.subr.bf16.mxu0 %v1461
      %2075 = vmatpush1.bf16.msra.mxu0 %v1460
      %2076 = vmatprep.subr.bf16.mxu0 %v1465
      %2077 = vmatpush1.bf16.msra.mxu0 %v1464
      %2078 = vmatprep.subr.bf16.mxu0 %v1469
      %2079 = vmatpush1.bf16.msra.mxu0 %v1468
      %2080 = vmatprep.subr.bf16.mxu0 %v1473
      %2081 = vmatpush1.bf16.msra.mxu0 %v1472
      %2082 = vmatprep.subr.bf16.mxu0 %v1477
      %2083 = vmatpush1.bf16.msra.mxu0 %v1476
      %2084 = vmatprep.subr.bf16.mxu0 %v1481
      %2085 = vmatpush1.bf16.msra.mxu0 %v1480
      %2086 = vmatprep.subr.bf16.mxu0 %v1485
      %2087 = vmatpush1.bf16.msra.mxu0 %v1484
      %2088 = vmatprep.subr.bf16.mxu0 %v1489
      %2089 = vmatpush1.bf16.msra.mxu0 %v1488
      %2090 = vmatprep.subr.bf16.mxu0 %v1493
      %2091 = vmatpush1.bf16.msra.mxu0 %v1492
      %2092 = vmatprep.mubr.bf16.mxu0 %v523
      %2093 = vmatmul.mubr.bf16.gmra.mrb[0].mxu0 %v522
      %v2094 = vpop.f32.mrb[0].mxu0
      %v2095 = vadd.f32 %v2054, %v2094
      %v2096 = vpop.f32.mrb[0].mxu0
      %v2097 = vadd.f32 %v2056, %v2096
      %v2098 = vpop.f32.mrb[0].mxu0
      %v2099 = vpop.f32.mrb[0].mxu0
      %2100 = vdwg.mxu0
      %2101 = vmatprep.subr.bf16.mxu0 %v1497
      %2102 = vmatpush1.bf16.msra.mxu0 %v1496
      %2103 = vmatprep.subr.bf16.mxu0 %v1501
      %2104 = vmatpush1.bf16.msra.mxu0 %v1500
      %2105 = vmatprep.subr.bf16.mxu0 %v1505
      %2106 = vmatpush1.bf16.msra.mxu0 %v1504
      %2107 = vmatprep.subr.bf16.mxu0 %v1509
      %2108 = vmatpush1.bf16.msra.mxu0 %v1508
      %2109 = vmatprep.subr.bf16.mxu0 %v1513
      %2110 = vmatpush1.bf16.msra.mxu0 %v1512
      %2111 = vmatprep.subr.bf16.mxu0 %v1517
      %2112 = vmatpush1.bf16.msra.mxu0 %v1516
      %2113 = vmatprep.subr.bf16.mxu0 %v1521
      %2114 = vmatpush1.bf16.msra.mxu0 %v1520
      %2115 = vmatprep.subr.bf16.mxu0 %v1525
      %2116 = vmatpush1.bf16.msra.mxu0 %v1524
      %2117 = vmatprep.subr.bf16.mxu0 %v1529
      %2118 = vmatpush1.bf16.msra.mxu0 %v1528
      %2119 = vmatprep.subr.bf16.mxu0 %v1533
      %2120 = vmatpush1.bf16.msra.mxu0 %v1532
      %2121 = vmatprep.subr.bf16.mxu0 %v1537
      %2122 = vmatpush1.bf16.msra.mxu0 %v1536
      %2123 = vmatprep.subr.bf16.mxu0 %v1541
      %2124 = vmatpush1.bf16.msra.mxu0 %v1540
      %2125 = vmatprep.subr.bf16.mxu0 %v1545
      %2126 = vmatpush1.bf16.msra.mxu0 %v1544
      %2127 = vmatprep.subr.bf16.mxu0 %v1549
      %2128 = vmatpush1.bf16.msra.mxu0 %v1548
      %2129 = vmatprep.subr.bf16.mxu0 %v1553
      %2130 = vmatpush1.bf16.msra.mxu0 %v1552
      %2131 = vmatprep.subr.bf16.mxu0 %v1557
      %2132 = vmatpush1.bf16.msra.mxu0 %v1556
      %2133 = vmatprep.mubr.bf16.mxu0 %v525
      %2134 = vmatmul.mubr.bf16.gmra.mrb[0].mxu0 %v524
      %v2135 = vpop.f32.mrb[0].mxu0
      %v2136 = vadd.f32 %v2095, %v2135
      %v2137 = vpop.f32.mrb[0].mxu0
      %v2138 = vadd.f32 %v2097, %v2137
      %v2139 = vpop.f32.mrb[0].mxu0
      %v2140 = vpop.f32.mrb[0].mxu0
      %2141 = vdwg.mxu0
      %v2142 = vmax.f32 %v1972, 0.0
      %v2143 = vmax.f32 %v1974, 0.0
      %v2144 = vmax.f32 %v2136, 0.0
      %v2145 = vmax.f32 %v2138, 0.0
      %v2146 = vpack.c.bf16 %v2142, %v2142
      %v2147 = vpack.c.bf16 %v2143, %v2143
      %v2148 = vpack.c.bf16 %v2144, %v2144
      %v2149 = vpack.c.bf16 %v2145, %v2145
      %v2150 = vld [vmem:[%s3] sm:$0xf]
      %v2151 = vld [vmem:[%s3 + $0x4] sm:$0xf]
      %v2152 = vld [vmem:[%s3 + $0x8] sm:$0xf]
      %v2153 = vld [vmem:[%s3 + $0xc] sm:$0xf]
      %v2154 = vld [vmem:[%s3 + $0x10] sm:$0xf]
      %v2155 = vld [vmem:[%s3 + $0x14] sm:$0xf]
      %v2156 = vld [vmem:[%s3 + $0x18] sm:$0xf]
      %v2157 = vld [vmem:[%s3 + $0x1c] sm:$0xf]
      %v2158 = vld [vmem:[%s3 + $0x20] sm:$0xf]
      %v2159 = vld [vmem:[%s3 + $0x24] sm:$0xf]
      %v2160 = vld [vmem:[%s3 + $0x28] sm:$0xf]
      %v2161 = vld [vmem:[%s3 + $0x2c] sm:$0xf]
      %v2162 = vld [vmem:[%s3 + $0x30] sm:$0xf]
      %v2163 = vld [vmem:[%s3 + $0x34] sm:$0xf]
      %v2164 = vld [vmem:[%s3 + $0x38] sm:$0xf]
      %v2165 = vld [vmem:[%s3 + $0x3c] sm:$0xf]
      %v2166 = vld [vmem:[%s3 + $0x40] sm:$0xf]
      %v2167 = vld [vmem:[%s3 + $0x44] sm:$0xf]
      %v2168 = vld [vmem:[%s3 + $0x48] sm:$0xf]
      %v2169 = vld [vmem:[%s3 + $0x4c] sm:$0xf]
      %v2170 = vld [vmem:[%s3 + $0x50] sm:$0xf]
      %v2171 = vld [vmem:[%s3 + $0x54] sm:$0xf]
      %v2172 = vld [vmem:[%s3 + $0x58] sm:$0xf]
      %v2173 = vld [vmem:[%s3 + $0x5c] sm:$0xf]
      %v2174 = vld [vmem:[%s3 + $0x60] sm:$0xf]
      %v2175 = vld [vmem:[%s3 + $0x64] sm:$0xf]
      %v2176 = vld [vmem:[%s3 + $0x68] sm:$0xf]
      %v2177 = vld [vmem:[%s3 + $0x6c] sm:$0xf]
      %v2178 = vld [vmem:[%s3 + $0x70] sm:$0xf]
      %v2179 = vld [vmem:[%s3 + $0x74] sm:$0xf]
      %v2180 = vld [vmem:[%s3 + $0x78] sm:$0xf]
      %v2181 = vld [vmem:[%s3 + $0x7c] sm:$0xf]
      %v2182 = vld [vmem:[%s3 + $0x80] sm:$0xf]
      %v2183 = vld [vmem:[%s3 + $0x84] sm:$0xf]
      %v2184 = vld [vmem:[%s3 + $0x88] sm:$0xf]
      %v2185 = vld [vmem:[%s3 + $0x8c] sm:$0xf]
      %v2186 = vld [vmem:[%s3 + $0x90] sm:$0xf]
      %v2187 = vld [vmem:[%s3 + $0x94] sm:$0xf]
      %v2188 = vld [vmem:[%s3 + $0x98] sm:$0xf]
      %v2189 = vld [vmem:[%s3 + $0x9c] sm:$0xf]
      %v2190 = vld [vmem:[%s3 + $0xa0] sm:$0xf]
      %v2191 = vld [vmem:[%s3 + $0xa4] sm:$0xf]
      %v2192 = vld [vmem:[%s3 + $0xa8] sm:$0xf]
      %v2193 = vld [vmem:[%s3 + $0xac] sm:$0xf]
      %v2194 = vld [vmem:[%s3 + $0xb0] sm:$0xf]
      %v2195 = vld [vmem:[%s3 + $0xb4] sm:$0xf]
      %v2196 = vld [vmem:[%s3 + $0xb8] sm:$0xf]
      %v2197 = vld [vmem:[%s3 + $0xbc] sm:$0xf]
      %v2198 = vld [vmem:[%s3 + $0xc0] sm:$0xf]
      %v2199 = vld [vmem:[%s3 + $0xc4] sm:$0xf]
      %v2200 = vld [vmem:[%s3 + $0xc8] sm:$0xf]
      %v2201 = vld [vmem:[%s3 + $0xcc] sm:$0xf]
      %v2202 = vld [vmem:[%s3 + $0xd0] sm:$0xf]
      %v2203 = vld [vmem:[%s3 + $0xd4] sm:$0xf]
      %v2204 = vld [vmem:[%s3 + $0xd8] sm:$0xf]
      %v2205 = vld [vmem:[%s3 + $0xdc] sm:$0xf]
      %v2206 = vld [vmem:[%s3 + $0xe0] sm:$0xf]
      %v2207 = vld [vmem:[%s3 + $0xe4] sm:$0xf]
      %v2208 = vld [vmem:[%s3 + $0xe8] sm:$0xf]
      %v2209 = vld [vmem:[%s3 + $0xec] sm:$0xf]
      %v2210 = vld [vmem:[%s3 + $0xf0] sm:$0xf]
      %v2211 = vld [vmem:[%s3 + $0xf4] sm:$0xf]
      %v2212 = vld [vmem:[%s3 + $0xf8] sm:$0xf]
      %v2213 = vld [vmem:[%s3 + $0xfc] sm:$0xf]
      %v2214 = vld [vmem:[%s4] sm:$0x1]
      %v2216 = vlaneseq
      %v2217 = vshrl.u32 %v2216, 7
      %v2218 = vsub.s32 0, %v2217
      %v2219 = vrot.slane %v2214, %v2218
      %v2285 = vunpack.c.l.b16 %v2150
      %v2286 = vunpack.c.l.b16 %v2151
      %v2287 = vunpack.c.l.b16 %v2152
      %v2288 = vunpack.c.l.b16 %v2153
      %v2289 = vunpack.c.l.b16 %v2154
      %v2290 = vunpack.c.l.b16 %v2155
      %v2291 = vunpack.c.l.b16 %v2156
      %v2292 = vunpack.c.l.b16 %v2157
      %v2293 = vunpack.c.l.b16 %v2158
      %v2294 = vunpack.c.l.b16 %v2159
      %v2295 = vunpack.c.l.b16 %v2160
      %v2296 = vunpack.c.l.b16 %v2161
      %v2297 = vunpack.c.l.b16 %v2162
      %v2298 = vunpack.c.l.b16 %v2163
      %v2299 = vunpack.c.l.b16 %v2164
      %v2300 = vunpack.c.l.b16 %v2165
      %v2301 = vunpack.c.l.b16 %v2166
      %v2302 = vunpack.c.l.b16 %v2167
      %v2303 = vunpack.c.l.b16 %v2168
      %v2304 = vunpack.c.l.b16 %v2169
      %v2305 = vunpack.c.l.b16 %v2170
      %v2306 = vunpack.c.l.b16 %v2171
      %v2307 = vunpack.c.l.b16 %v2172
      %v2308 = vunpack.c.l.b16 %v2173
      %v2309 = vunpack.c.l.b16 %v2174
      %v2310 = vunpack.c.l.b16 %v2175
      %v2311 = vunpack.c.l.b16 %v2176
      %v2312 = vunpack.c.l.b16 %v2177
      %v2313 = vunpack.c.l.b16 %v2178
      %v2314 = vunpack.c.l.b16 %v2179
      %v2315 = vunpack.c.l.b16 %v2180
      %v2316 = vunpack.c.l.b16 %v2181
      %v2317 = vunpack.c.l.b16 %v2182
      %v2318 = vunpack.c.l.b16 %v2183
      %v2319 = vunpack.c.l.b16 %v2184
      %v2320 = vunpack.c.l.b16 %v2185
      %v2321 = vunpack.c.l.b16 %v2186
      %v2322 = vunpack.c.l.b16 %v2187
      %v2323 = vunpack.c.l.b16 %v2188
      %v2324 = vunpack.c.l.b16 %v2189
      %v2325 = vunpack.c.l.b16 %v2190
      %v2326 = vunpack.c.l.b16 %v2191
      %v2327 = vunpack.c.l.b16 %v2192
      %v2328 = vunpack.c.l.b16 %v2193
      %v2329 = vunpack.c.l.b16 %v2194
      %v2330 = vunpack.c.l.b16 %v2195
      %v2331 = vunpack.c.l.b16 %v2196
      %v2332 = vunpack.c.l.b16 %v2197
      %v2333 = vunpack.c.l.b16 %v2198
      %v2334 = vunpack.c.l.b16 %v2199
      %v2335 = vunpack.c.l.b16 %v2200
      %v2336 = vunpack.c.l.b16 %v2201
      %v2337 = vunpack.c.l.b16 %v2202
      %v2338 = vunpack.c.l.b16 %v2203
      %v2339 = vunpack.c.l.b16 %v2204
      %v2340 = vunpack.c.l.b16 %v2205
      %v2341 = vunpack.c.l.b16 %v2206
      %v2342 = vunpack.c.l.b16 %v2207
      %v2343 = vunpack.c.l.b16 %v2208
      %v2344 = vunpack.c.l.b16 %v2209
      %v2345 = vunpack.c.l.b16 %v2210
      %v2346 = vunpack.c.l.b16 %v2211
      %v2347 = vunpack.c.l.b16 %v2212
      %v2348 = vunpack.c.l.b16 %v2213
      %v2349 = vpack.c.b16 %v2286, %v2285
      %v2350 = vpack.c.b16 %v2288, %v2287
      %v2351 = vpack.c.b16 %v2290, %v2289
      %v2352 = vpack.c.b16 %v2292, %v2291
      %v2353 = vpack.c.b16 %v2294, %v2293
      %v2354 = vpack.c.b16 %v2296, %v2295
      %v2355 = vpack.c.b16 %v2298, %v2297
      %v2356 = vpack.c.b16 %v2300, %v2299
      %v2357 = vpack.c.b16 %v2302, %v2301
      %v2358 = vpack.c.b16 %v2304, %v2303
      %v2359 = vpack.c.b16 %v2306, %v2305
      %v2360 = vpack.c.b16 %v2308, %v2307
      %v2361 = vpack.c.b16 %v2310, %v2309
      %v2362 = vpack.c.b16 %v2312, %v2311
      %v2363 = vpack.c.b16 %v2314, %v2313
      %v2364 = vpack.c.b16 %v2316, %v2315
      %v2365 = vpack.c.b16 %v2318, %v2317
      %v2366 = vpack.c.b16 %v2320, %v2319
      %v2367 = vpack.c.b16 %v2322, %v2321
      %v2368 = vpack.c.b16 %v2324, %v2323
      %v2369 = vpack.c.b16 %v2326, %v2325
      %v2370 = vpack.c.b16 %v2328, %v2327
      %v2371 = vpack.c.b16 %v2330, %v2329
      %v2372 = vpack.c.b16 %v2332, %v2331
      %v2373 = vpack.c.b16 %v2334, %v2333
      %v2374 = vpack.c.b16 %v2336, %v2335
      %v2375 = vpack.c.b16 %v2338, %v2337
      %v2376 = vpack.c.b16 %v2340, %v2339
      %v2377 = vpack.c.b16 %v2342, %v2341
      %v2378 = vpack.c.b16 %v2344, %v2343
      %v2379 = vpack.c.b16 %v2346, %v2345
      %v2380 = vpack.c.b16 %v2348, %v2347
      %2413 = vmatprep.subr.bf16.mxu0 0
      %2414 = vmatpush1.bf16.msra.mxu0 %v2349
      %2415 = vmatprep.subr.bf16.mxu0 0
      %2416 = vmatpush1.bf16.msra.mxu0 %v2350
      %2417 = vmatprep.subr.bf16.mxu0 0
      %2418 = vmatpush1.bf16.msra.mxu0 %v2351
      %2419 = vmatprep.subr.bf16.mxu0 0
      %2420 = vmatpush1.bf16.msra.mxu0 %v2352
      %2421 = vmatprep.subr.bf16.mxu0 0
      %2422 = vmatpush1.bf16.msra.mxu0 %v2353
      %2423 = vmatprep.subr.bf16.mxu0 0
      %2424 = vmatpush1.bf16.msra.mxu0 %v2354
      %2425 = vmatprep.subr.bf16.mxu0 0
      %2426 = vmatpush1.bf16.msra.mxu0 %v2355
      %2427 = vmatprep.subr.bf16.mxu0 0
      %2428 = vmatpush1.bf16.msra.mxu0 %v2356
      %2429 = vmatprep.subr.bf16.mxu0 0
      %2430 = vmatpush1.bf16.msra.mxu0 %v2357
      %2431 = vmatprep.subr.bf16.mxu0 0
      %2432 = vmatpush1.bf16.msra.mxu0 %v2358
      %2433 = vmatprep.subr.bf16.mxu0 0
      %2434 = vmatpush1.bf16.msra.mxu0 %v2359
      %2435 = vmatprep.subr.bf16.mxu0 0
      %2436 = vmatpush1.bf16.msra.mxu0 %v2360
      %2437 = vmatprep.subr.bf16.mxu0 0
      %2438 = vmatpush1.bf16.msra.mxu0 %v2361
      %2439 = vmatprep.subr.bf16.mxu0 0
      %2440 = vmatpush1.bf16.msra.mxu0 %v2362
      %2441 = vmatprep.subr.bf16.mxu0 0
      %2442 = vmatpush1.bf16.msra.mxu0 %v2363
      %2443 = vmatprep.subr.bf16.mxu0 0
      %2444 = vmatpush1.bf16.msra.mxu0 %v2364
      %2445 = vmatprep.mubr.bf16.mxu0 %v2147
      %2446 = vmatmul.mubr.bf16.gmra.mrb[0].mxu0 %v2146
      %v2447 = vpop.f32.mrb[0].mxu0
      %v2448 = vadd.f32 %v2219, %v2447
      %v2449 = vpop.f32.mrb[0].mxu0
      %v2450 = vpop.f32.mrb[0].mxu0
      %v2451 = vpop.f32.mrb[0].mxu0
      %2452 = vdwg.mxu0
      %2453 = vmatprep.subr.bf16.mxu0 0
      %2454 = vmatpush1.bf16.msra.mxu0 %v2365
      %2455 = vmatprep.subr.bf16.mxu0 0
      %2456 = vmatpush1.bf16.msra.mxu0 %v2366
      %2457 = vmatprep.subr.bf16.mxu0 0
      %2458 = vmatpush1.bf16.msra.mxu0 %v2367
      %2459 = vmatprep.subr.bf16.mxu0 0
      %2460 = vmatpush1.bf16.msra.mxu0 %v2368
      %2461 = vmatprep.subr.bf16.mxu0 0
      %2462 = vmatpush1.bf16.msra.mxu0 %v2369
      %2463 = vmatprep.subr.bf16.mxu0 0
      %2464 = vmatpush1.bf16.msra.mxu0 %v2370
      %2465 = vmatprep.subr.bf16.mxu0 0
      %2466 = vmatpush1.bf16.msra.mxu0 %v2371
      %2467 = vmatprep.subr.bf16.mxu0 0
      %2468 = vmatpush1.bf16.msra.mxu0 %v2372
      %2469 = vmatprep.subr.bf16.mxu0 0
      %2470 = vmatpush1.bf16.msra.mxu0 %v2373
      %2471 = vmatprep.subr.bf16.mxu0 0
      %2472 = vmatpush1.bf16.msra.mxu0 %v2374
      %2473 = vmatprep.subr.bf16.mxu0 0
      %2474 = vmatpush1.bf16.msra.mxu0 %v2375
      %2475 = vmatprep.subr.bf16.mxu0 0
      %2476 = vmatpush1.bf16.msra.mxu0 %v2376
      %2477 = vmatprep.subr.bf16.mxu0 0
      %2478 = vmatpush1.bf16.msra.mxu0 %v2377
      %2479 = vmatprep.subr.bf16.mxu0 0
      %2480 = vmatpush1.bf16.msra.mxu0 %v2378
      %2481 = vmatprep.subr.bf16.mxu0 0
      %2482 = vmatpush1.bf16.msra.mxu0 %v2379
      %2483 = vmatprep.subr.bf16.mxu0 0
      %2484 = vmatpush1.bf16.msra.mxu0 %v2380
      %2485 = vmatprep.mubr.bf16.mxu0 %v2149
      %2486 = vmatmul.mubr.bf16.gmra.mrb[0].mxu0 %v2148
      %v2487 = vpop.f32.mrb[0].mxu0
      %v2488 = vadd.f32 %v2448, %v2487
      %v2489 = vpop.f32.mrb[0].mxu0
      %v2490 = vpop.f32.mrb[0].mxu0
      %v2491 = vpop.f32.mrb[0].mxu0
      %2492 = vdwg.mxu0
      %2493 = vst [vmem:[%s222] sm:$0xff] %v2488
      %p2494 = scmp.lt.s32.totalorder %s16, 1
      %s2495 = scalar_select %p2494, %s16, 1
      %s2496 = smul.addr %s2495, 8
      %s2497 = scalar_lea.vmem %s5, %s2496
      // Predicated region
      $region41: #{image_cnn_forward.3} parent=39 // pred_check
        %p2498 = pneg %p144
      $region42: #{image_cnn_forward.3} parent=39 // pred_check_branch
        %2500 = sbr.rel (%p2498) target = $region44
      $region43: #{image_cnn_forward.3} parent=39 // pred_region
        _
      $region44: #{image_cnn_forward.3} parent=39 // pred_fallthru
        _
    $region40: #{image_cnn_forward.3} parent=5 // pred_fallthru
      _
    %p2501 = scmp.le.s32.totalorder 2, %s11
    // Predicated region
    $region45: #{image_cnn_forward.3} parent=5 // pred_check
      %p2502 = pneg %p2501
    $region46: #{image_cnn_forward.3} parent=5 // pred_check_branch
      %2504 = sbr.rel (%p2502) target = $region48
    $region47: #{image_cnn_forward.3} parent=5 // pred_region
      %s2505 = ssub.s32 %s11, 2
      // Predicated region
      $region49: #{image_cnn_forward.3} parent=47 // pred_check
        %p2506 = pneg %p150
      $region50: #{image_cnn_forward.3} parent=47 // pred_check_branch
        %2508 = sbr.rel (%p2506) target = $region52
      $region51: #{image_cnn_forward.3} parent=47 // pred_region
        %p2509 = scmp.lt.s32.totalorder %s17, 1
        %s2510 = scalar_select %p2509, %s17, 1
        %s2511 = smul.addr %s2510, 8
        %s2512 = scalar_lea.vmem %s5, %s2511
      $region52: #{image_cnn_forward.3} parent=47 // pred_fallthru
        _
    $region48: #{image_cnn_forward.3} parent=5 // pred_fallthru
      _
  $region6: #{image_cnn_forward.3} parent=0 // loop_footer
    %s15 = sadd.s32 1, %s11
  $region7: #{image_cnn_forward.3} parent=0 // loop_footer_branch
    %10 = sbr.rel target = $region3
  $region8: #{image_cnn_forward.3} parent=0 // loop_exit
    _

// kernel: image_cnn_forward.2
$region0: #{image_cnn_forward.2}
  #allocation0 [shape = 'u32[]', space=smem, size = 0x4, offset = 0x4, fixed_abs, tag = 'smem constant byte address 0x4 - core index']
  #allocation1 [shape = 'u32[144,128]{1,0:T(1,128)}', space=vmem, size = 0x12000, scoped, tag = 'internal scratch']
  %s0 = inlined_call_operand.vmem [shape: bf16[2,8,1024], index: 0, kind: input, shape index: {}]
  %s1 = inlined_call_operand.vmem [shape: bf16[16,72], index: 1, kind: input, shape index: {}]
  %s2 = inlined_call_operand.vmem [shape: f32[16,1], index: 2, kind: input, shape index: {}]
  %s3 = inlined_call_operand.vmem [shape: f32[16,1], index: 3, kind: input, shape index: {}]
  %s4 = inlined_call_operand.vmem [shape: f32[9,1,1024], index: 4, kind: input, shape index: {}]
  %s5 = inlined_call_operand.vmem [shape: bf16[1024,256], index: 5, kind: input, shape index: {}]
  %s6 = inlined_call_operand.vmem [shape: bf16[32,144], index: 6, kind: input, shape index: {}]
  %s7 = inlined_call_operand.vmem [shape: f32[32,1], index: 7, kind: input, shape index: {}]
  %s8 = inlined_call_operand.vmem [shape: f32[32,1], index: 8, kind: input, shape index: {}]
  %s9 = inlined_call_operand.vmem [shape: f32[9,1,256], index: 9, kind: input, shape index: {}]
  %s10 = inlined_call_operand.vmem [shape: bf16[256,128], index: 10, kind: input, shape index: {}]
  %s11 = inlined_call_operand.vmem [shape: bf16[64,288], index: 11, kind: input, shape index: {}]
  %s12 = inlined_call_operand.vmem [shape: f32[64,1], index: 12, kind: input, shape index: {}]
  %s13 = inlined_call_operand.vmem [shape: f32[64,1], index: 13, kind: input, shape index: {}]
  %s14 = inlined_call_operand.vmem [shape: f32[9,1,128], index: 14, kind: input, shape index: {}]
  %s15 = inlined_call_operand.vmem [shape: bf16[128,128], index: 15, kind: input, shape index: {}]
  %s16 = inlined_call_operand.vmem [shape: f32[2,64,128], index: 16, kind: output, shape index: {}]
  %s17 = sld [smem:[#allocation0]]
  $region97: #{image_cnn_forward.2} parent=0
    _
  %s19 = ssub.s32 1, %s17
  %s20 = scalar_select 0, %s19, %s17
  loop: start=0, step=1, limit=4
  $region2: #{image_cnn_forward.2} parent=0 // loop_pre_header
    _
  $region3: #{image_cnn_forward.2} parent=0 // loop_header
    %s22 = sphi 0, %s26
    %p23 = scmp.ge.s32.totalorder %s22, 4
    %s32 = sphi 0, %s34
    %s35 = sphi 0, %s32
    %s36 = sphi 0, %s35
    %s52 = sphi 0, %s36
    %s56 = sphi 0, %s56
    %s58 = sphi 0, %s56
    %s59 = sphi 0, %s58
    %s73 = sphi 0, %s59
    %s77 = sphi 0, %s77
    %s79 = sphi 0, %s77
    %s80 = sphi 0, %s79
    %s94 = sphi 0, %s80
    %s98 = sphi 0, %s98
    %s100 = sphi 0, %s98
    %s101 = sphi 0, %s100
    %s115 = sphi 0, %s101
    %s119 = sphi 0, %s119
    %s121 = sphi 0, %s119
    %s122 = sphi 0, %s121
    %s136 = sphi 0, %s122
    %s140 = sphi 0, %s140
    %s142 = sphi 0, %s140
    %s143 = sphi 0, %s142
    %s157 = sphi 0, %s143
    %s161 = sphi 0, %s161
    %s163 = sphi 0, %s161
    %s164 = sphi 0, %s163
    %s178 = sphi 0, %s164
    %s182 = sphi 0, %s182
    %s184 = sphi 0, %s182
    %s185 = sphi 0, %s184
    %s199 = sphi 0, %s185
    %s203 = sphi 0, %s203
    %s205 = sphi 0, %s203
    %s206 = sphi 0, %s205
    %s220 = sphi 0, %s206
    %s224 = sphi 0, %s224
    %s226 = sphi 0, %s224
    %s227 = sphi 0, %s226
    %s241 = sphi 0, %s227
    %s245 = sphi 0, %s245
    %s247 = sphi 0, %s245
    %s248 = sphi 0, %s247
    %s262 = sphi 0, %s248
    %s266 = sphi 0, %s266
    %s268 = sphi 0, %s266
    %s269 = sphi 0, %s268
    %s283 = sphi 0, %s269
    %s287 = sphi 0, %s287
    %s289 = sphi 0, %s287
    %s290 = sphi 0, %s289
    %s304 = sphi 0, %s290
    %s308 = sphi 0, %s308
    %s310 = sphi 0, %s308
    %s311 = sphi 0, %s310
    %s325 = sphi 0, %s311
    %s329 = sphi 0, %s329
    %s331 = sphi 0, %s329
    %s332 = sphi 0, %s331
    %s346 = sphi 0, %s332
    %s350 = sphi 0, %s350
    %s352 = sphi 0, %s350
    %s353 = sphi 0, %s352
    %s367 = sphi 0, %s353
    %s373 = sphi 0, %s375
    %s376 = sphi 0, %s373
    %s377 = sphi 0, %s376
    %s393 = sphi 0, %s377
  $region4: #{image_cnn_forward.2} parent=0 // loop_header_branch
    %25 = sbr.rel (%p23) target = $region8
  $region5: #{image_cnn_forward.2} parent=0 // loop_body
    %s27 = ssub.s32 %s22, 1
    %s28 = ssub.s32 %s22, 2
    %s29 = sadd.s32 %s22, 1
    %s30 = ssub.s32 %s22, %s29
    %p31 = scmp.eq.s32.totalorder %s30, 0
    %s33 = sadd.s32 %s32, 1
    %s34 = scalar_select %p31, %s32, %s33
    %p37 = pneg %p31
    %p38 = scmp.eq.s32.totalorder %s22, 1
    %p39 = por %p37, %p38
    %p40 = scmp.ne.s32.totalorder %s32, %s35
    %p41 = scmp.eq.s32.totalorder %s22, 0
    %p42 = por %p40, %p41
    %p43 = scmp.ne.s32.totalorder %s32, %s35
    %p44 = scmp.eq.s32.totalorder %s27, 1
    %p45 = por %p43, %p44
    %p46 = scmp.ne.s32.totalorder %s35, %s36
    %p47 = scmp.eq.s32.totalorder %s27, 0
    %p48 = por %p46, %p47
    %p49 = scmp.ne.s32.totalorder %s35, %s36
    %p50 = scmp.eq.s32.totalorder %s28, 1
    %p51 = por %p49, %p50
    %p53 = scmp.ne.s32.totalorder %s36, %s52
    %p54 = scmp.eq.s32.totalorder %s28, 0
    %p55 = por %p53, %p54
    %s57 = sadd.s32 %s56, 1
    %p60 = scmp.eq.s32.totalorder %s22, 1
    %p61 = scmp.ne.s32.totalorder %s56, %s58
    %p62 = scmp.eq.s32.totalorder %s22, 0
    %p63 = por %p61, %p62
    %p64 = scmp.ne.s32.totalorder %s56, %s58
    %p65 = scmp.eq.s32.totalorder %s27, 1
    %p66 = por %p64, %p65
    %p67 = scmp.ne.s32.totalorder %s58, %s59
    %p68 = scmp.eq.s32.totalorder %s27, 0
    %p69 = por %p67, %p68
    %p70 = scmp.ne.s32.totalorder %s58, %s59
    %p71 = scmp.eq.s32.totalorder %s28, 1
    %p72 = por %p70, %p71
    %p74 = scmp.ne.s32.totalorder %s59, %s73
    %p75 = scmp.eq.s32.totalorder %s28, 0
    %p76 = por %p74, %p75
    %s78 = sadd.s32 %s77, 1
    %p81 = scmp.eq.s32.totalorder %s22, 1
    %p82 = scmp.ne.s32.totalorder %s77, %s79
    %p83 = scmp.eq.s32.totalorder %s22, 0
    %p84 = por %p82, %p83
    %p85 = scmp.ne.s32.totalorder %s77, %s79
    %p86 = scmp.eq.s32.totalorder %s27, 1
    %p87 = por %p85, %p86
    %p88 = scmp.ne.s32.totalorder %s79, %s80
    %p89 = scmp.eq.s32.totalorder %s27, 0
    %p90 = por %p88, %p89
    %p91 = scmp.ne.s32.totalorder %s79, %s80
    %p92 = scmp.eq.s32.totalorder %s28, 1
    %p93 = por %p91, %p92
    %p95 = scmp.ne.s32.totalorder %s80, %s94
    %p96 = scmp.eq.s32.totalorder %s28, 0
    %p97 = por %p95, %p96
    %s99 = sadd.s32 %s98, 1
    %p102 = scmp.eq.s32.totalorder %s22, 1
    %p103 = scmp.ne.s32.totalorder %s98, %s100
    %p104 = scmp.eq.s32.totalorder %s22, 0
    %p105 = por %p103, %p104
    %p106 = scmp.ne.s32.totalorder %s98, %s100
    %p107 = scmp.eq.s32.totalorder %s27, 1
    %p108 = por %p106, %p107
    %p109 = scmp.ne.s32.totalorder %s100, %s101
    %p110 = scmp.eq.s32.totalorder %s27, 0
    %p111 = por %p109, %p110
    %p112 = scmp.ne.s32.totalorder %s100, %s101
    %p113 = scmp.eq.s32.totalorder %s28, 1
    %p114 = por %p112, %p113
    %p116 = scmp.ne.s32.totalorder %s101, %s115
    %p117 = scmp.eq.s32.totalorder %s28, 0
    %p118 = por %p116, %p117
    %s120 = sadd.s32 %s119, 1
    %p123 = scmp.eq.s32.totalorder %s22, 1
    %p124 = scmp.ne.s32.totalorder %s119, %s121
    %p125 = scmp.eq.s32.totalorder %s22, 0
    %p126 = por %p124, %p125
    %p127 = scmp.ne.s32.totalorder %s119, %s121
    %p128 = scmp.eq.s32.totalorder %s27, 1
    %p129 = por %p127, %p128
    %p130 = scmp.ne.s32.totalorder %s121, %s122
    %p131 = scmp.eq.s32.totalorder %s27, 0
    %p132 = por %p130, %p131
    %p133 = scmp.ne.s32.totalorder %s121, %s122
    %p134 = scmp.eq.s32.totalorder %s28, 1
    %p135 = por %p133, %p134
    %p137 = scmp.ne.s32.totalorder %s122, %s136
    %p138 = scmp.eq.s32.totalorder %s28, 0
    %p139 = por %p137, %p138
    %s141 = sadd.s32 %s140, 1
    %p144 = scmp.eq.s32.totalorder %s22, 1
    %p145 = scmp.ne.s32.totalorder %s140, %s142
    %p146 = scmp.eq.s32.totalorder %s22, 0
    %p147 = por %p145, %p146
    %p148 = scmp.ne.s32.totalorder %s140, %s142
    %p149 = scmp.eq.s32.totalorder %s27, 1
    %p150 = por %p148, %p149
    %p151 = scmp.ne.s32.totalorder %s142, %s143
    %p152 = scmp.eq.s32.totalorder %s27, 0
    %p153 = por %p151, %p152
    %p154 = scmp.ne.s32.totalorder %s142, %s143
    %p155 = scmp.eq.s32.totalorder %s28, 1
    %p156 = por %p154, %p155
    %p158 = scmp.ne.s32.totalorder %s143, %s157
    %p159 = scmp.eq.s32.totalorder %s28, 0
    %p160 = por %p158, %p159
    %s162 = sadd.s32 %s161, 1
    %p165 = scmp.eq.s32.totalorder %s22, 1
    %p166 = scmp.ne.s32.totalorder %s161, %s163
    %p167 = scmp.eq.s32.totalorder %s22, 0
    %p168 = por %p166, %p167
    %p169 = scmp.ne.s32.totalorder %s161, %s163
    %p170 = scmp.eq.s32.totalorder %s27, 1
    %p171 = por %p169, %p170
    %p172 = scmp.ne.s32.totalorder %s163, %s164
    %p173 = scmp.eq.s32.totalorder %s27, 0
    %p174 = por %p172, %p173
    %p175 = scmp.ne.s32.totalorder %s163, %s164
    %p176 = scmp.eq.s32.totalorder %s28, 1
    %p177 = por %p175, %p176
    %p179 = scmp.ne.s32.totalorder %s164, %s178
    %p180 = scmp.eq.s32.totalorder %s28, 0
    %p181 = por %p179, %p180
    %s183 = sadd.s32 %s182, 1
    %p186 = scmp.eq.s32.totalorder %s22, 1
    %p187 = scmp.ne.s32.totalorder %s182, %s184
    %p188 = scmp.eq.s32.totalorder %s22, 0
    %p189 = por %p187, %p188
    %p190 = scmp.ne.s32.totalorder %s182, %s184
    %p191 = scmp.eq.s32.totalorder %s27, 1
    %p192 = por %p190, %p191
    %p193 = scmp.ne.s32.totalorder %s184, %s185
    %p194 = scmp.eq.s32.totalorder %s27, 0
    %p195 = por %p193, %p194
    %p196 = scmp.ne.s32.totalorder %s184, %s185
    %p197 = scmp.eq.s32.totalorder %s28, 1
    %p198 = por %p196, %p197
    %p200 = scmp.ne.s32.totalorder %s185, %s199
    %p201 = scmp.eq.s32.totalorder %s28, 0
    %p202 = por %p200, %p201
    %s204 = sadd.s32 %s203, 1
    %p207 = scmp.eq.s32.totalorder %s22, 1
    %p208 = scmp.ne.s32.totalorder %s203, %s205
    %p209 = scmp.eq.s32.totalorder %s22, 0
    %p210 = por %p208, %p209
    %p211 = scmp.ne.s32.totalorder %s203, %s205
    %p212 = scmp.eq.s32.totalorder %s27, 1
    %p213 = por %p211, %p212
    %p214 = scmp.ne.s32.totalorder %s205, %s206
    %p215 = scmp.eq.s32.totalorder %s27, 0
    %p216 = por %p214, %p215
    %p217 = scmp.ne.s32.totalorder %s205, %s206
    %p218 = scmp.eq.s32.totalorder %s28, 1
    %p219 = por %p217, %p218
    %p221 = scmp.ne.s32.totalorder %s206, %s220
    %p222 = scmp.eq.s32.totalorder %s28, 0
    %p223 = por %p221, %p222
    %s225 = sadd.s32 %s224, 1
    %p228 = scmp.eq.s32.totalorder %s22, 1
    %p229 = scmp.ne.s32.totalorder %s224, %s226
    %p230 = scmp.eq.s32.totalorder %s22, 0
    %p231 = por %p229, %p230
    %p232 = scmp.ne.s32.totalorder %s224, %s226
    %p233 = scmp.eq.s32.totalorder %s27, 1
    %p234 = por %p232, %p233
    %p235 = scmp.ne.s32.totalorder %s226, %s227
    %p236 = scmp.eq.s32.totalorder %s27, 0
    %p237 = por %p235, %p236
    %p238 = scmp.ne.s32.totalorder %s226, %s227
    %p239 = scmp.eq.s32.totalorder %s28, 1
    %p240 = por %p238, %p239
    %p242 = scmp.ne.s32.totalorder %s227, %s241
    %p243 = scmp.eq.s32.totalorder %s28, 0
    %p244 = por %p242, %p243
    %s246 = sadd.s32 %s245, 1
    %p249 = scmp.eq.s32.totalorder %s22, 1
    %p250 = scmp.ne.s32.totalorder %s245, %s247
    %p251 = scmp.eq.s32.totalorder %s22, 0
    %p252 = por %p250, %p251
    %p253 = scmp.ne.s32.totalorder %s245, %s247
    %p254 = scmp.eq.s32.totalorder %s27, 1
    %p255 = por %p253, %p254
    %p256 = scmp.ne.s32.totalorder %s247, %s248
    %p257 = scmp.eq.s32.totalorder %s27, 0
    %p258 = por %p256, %p257
    %p259 = scmp.ne.s32.totalorder %s247, %s248
    %p260 = scmp.eq.s32.totalorder %s28, 1
    %p261 = por %p259, %p260
    %p263 = scmp.ne.s32.totalorder %s248, %s262
    %p264 = scmp.eq.s32.totalorder %s28, 0
    %p265 = por %p263, %p264
    %s267 = sadd.s32 %s266, 1
    %p270 = scmp.eq.s32.totalorder %s22, 1
    %p271 = scmp.ne.s32.totalorder %s266, %s268
    %p272 = scmp.eq.s32.totalorder %s22, 0
    %p273 = por %p271, %p272
    %p274 = scmp.ne.s32.totalorder %s266, %s268
    %p275 = scmp.eq.s32.totalorder %s27, 1
    %p276 = por %p274, %p275
    %p277 = scmp.ne.s32.totalorder %s268, %s269
    %p278 = scmp.eq.s32.totalorder %s27, 0
    %p279 = por %p277, %p278
    %p280 = scmp.ne.s32.totalorder %s268, %s269
    %p281 = scmp.eq.s32.totalorder %s28, 1
    %p282 = por %p280, %p281
    %p284 = scmp.ne.s32.totalorder %s269, %s283
    %p285 = scmp.eq.s32.totalorder %s28, 0
    %p286 = por %p284, %p285
    %s288 = sadd.s32 %s287, 1
    %p291 = scmp.eq.s32.totalorder %s22, 1
    %p292 = scmp.ne.s32.totalorder %s287, %s289
    %p293 = scmp.eq.s32.totalorder %s22, 0
    %p294 = por %p292, %p293
    %p295 = scmp.ne.s32.totalorder %s287, %s289
    %p296 = scmp.eq.s32.totalorder %s27, 1
    %p297 = por %p295, %p296
    %p298 = scmp.ne.s32.totalorder %s289, %s290
    %p299 = scmp.eq.s32.totalorder %s27, 0
    %p300 = por %p298, %p299
    %p301 = scmp.ne.s32.totalorder %s289, %s290
    %p302 = scmp.eq.s32.totalorder %s28, 1
    %p303 = por %p301, %p302
    %p305 = scmp.ne.s32.totalorder %s290, %s304
    %p306 = scmp.eq.s32.totalorder %s28, 0
    %p307 = por %p305, %p306
    %s309 = sadd.s32 %s308, 1
    %p312 = scmp.eq.s32.totalorder %s22, 1
    %p313 = scmp.ne.s32.totalorder %s308, %s310
    %p314 = scmp.eq.s32.totalorder %s22, 0
    %p315 = por %p313, %p314
    %p316 = scmp.ne.s32.totalorder %s308, %s310
    %p317 = scmp.eq.s32.totalorder %s27, 1
    %p318 = por %p316, %p317
    %p319 = scmp.ne.s32.totalorder %s310, %s311
    %p320 = scmp.eq.s32.totalorder %s27, 0
    %p321 = por %p319, %p320
    %p322 = scmp.ne.s32.totalorder %s310, %s311
    %p323 = scmp.eq.s32.totalorder %s28, 1
    %p324 = por %p322, %p323
    %p326 = scmp.ne.s32.totalorder %s311, %s325
    %p327 = scmp.eq.s32.totalorder %s28, 0
    %p328 = por %p326, %p327
    %s330 = sadd.s32 %s329, 1
    %p333 = scmp.eq.s32.totalorder %s22, 1
    %p334 = scmp.ne.s32.totalorder %s329, %s331
    %p335 = scmp.eq.s32.totalorder %s22, 0
    %p336 = por %p334, %p335
    %p337 = scmp.ne.s32.totalorder %s329, %s331
    %p338 = scmp.eq.s32.totalorder %s27, 1
    %p339 = por %p337, %p338
    %p340 = scmp.ne.s32.totalorder %s331, %s332
    %p341 = scmp.eq.s32.totalorder %s27, 0
    %p342 = por %p340, %p341
    %p343 = scmp.ne.s32.totalorder %s331, %s332
    %p344 = scmp.eq.s32.totalorder %s28, 1
    %p345 = por %p343, %p344
    %p347 = scmp.ne.s32.totalorder %s332, %s346
    %p348 = scmp.eq.s32.totalorder %s28, 0
    %p349 = por %p347, %p348
    %s351 = sadd.s32 %s350, 1
    %p354 = scmp.eq.s32.totalorder %s22, 1
    %p355 = scmp.ne.s32.totalorder %s350, %s352
    %p356 = scmp.eq.s32.totalorder %s22, 0
    %p357 = por %p355, %p356
    %p358 = scmp.ne.s32.totalorder %s350, %s352
    %p359 = scmp.eq.s32.totalorder %s27, 1
    %p360 = por %p358, %p359
    %p361 = scmp.ne.s32.totalorder %s352, %s353
    %p362 = scmp.eq.s32.totalorder %s27, 0
    %p363 = por %p361, %p362
    %p364 = scmp.ne.s32.totalorder %s352, %s353
    %p365 = scmp.eq.s32.totalorder %s28, 1
    %p366 = por %p364, %p365
    %p368 = scmp.ne.s32.totalorder %s353, %s367
    %p369 = scmp.eq.s32.totalorder %s28, 0
    %p370 = por %p368, %p369
    %s371 = ssub.s32 %s22, %s29
    %p372 = scmp.eq.s32.totalorder %s371, 0
    %s374 = sadd.s32 %s373, 1
    %s375 = scalar_select %p372, %s373, %s374
    %p378 = pneg %p372
    %p379 = scmp.eq.s32.totalorder %s22, 1
    %p380 = por %p378, %p379
    %p381 = scmp.ne.s32.totalorder %s373, %s376
    %p382 = scmp.eq.s32.totalorder %s22, 0
    %p383 = por %p381, %p382
    %p384 = scmp.ne.s32.totalorder %s373, %s376
    %p385 = scmp.eq.s32.totalorder %s27, 1
    %p386 = por %p384, %p385
    %p387 = scmp.ne.s32.totalorder %s376, %s377
    %p388 = scmp.eq.s32.totalorder %s27, 0
    %p389 = por %p387, %p388
    %p390 = scmp.ne.s32.totalorder %s376, %s377
    %p391 = scmp.eq.s32.totalorder %s28, 1
    %p392 = por %p390, %p391
    %p394 = scmp.ne.s32.totalorder %s377, %s393
    %p395 = scmp.eq.s32.totalorder %s28, 0
    %p396 = por %p394, %p395
    %p397 = scmp.le.s32.totalorder 1, %s22
    %p398 = scmp.lt.s32.totalorder %s22, 3
    %p399 = pnand %p397, %p398
    %p400 = pneg %p399
    // Predicated region
    $region9: #{image_cnn_forward.2} parent=5 // pred_check
      _
    $region10: #{image_cnn_forward.2} parent=5 // pred_check_branch
      %402 = sbr.rel (%p399) target = $region12
    $region11: #{image_cnn_forward.2} parent=5 // pred_region
      %s403 = ssub.s32 %s22, 1
      // Predicated region
      $region13: #{image_cnn_forward.2} parent=11 // pred_check
        %p404 = pneg %p69
      $region14: #{image_cnn_forward.2} parent=11 // pred_check_branch
        %406 = sbr.rel (%p404) target = $region16
      $region15: #{image_cnn_forward.2} parent=11 // pred_region
        _
      $region16: #{image_cnn_forward.2} parent=11 // pred_fallthru
        _
      // Predicated region
      $region17: #{image_cnn_forward.2} parent=11 // pred_check
        %p407 = pneg %p90
      $region18: #{image_cnn_forward.2} parent=11 // pred_check_branch
        %409 = sbr.rel (%p407) target = $region20
      $region19: #{image_cnn_forward.2} parent=11 // pred_region
        _
      $region20: #{image_cnn_forward.2} parent=11 // pred_fallthru
        _
      // Predicated region
      $region21: #{image_cnn_forward.2} parent=11 // pred_check
        %p410 = pneg %p111
      $region22: #{image_cnn_forward.2} parent=11 // pred_check_branch
        %412 = sbr.rel (%p410) target = $region24
      $region23: #{image_cnn_forward.2} parent=11 // pred_region
        _
      $region24: #{image_cnn_forward.2} parent=11 // pred_fallthru
        _
      // Predicated region
      $region25: #{image_cnn_forward.2} parent=11 // pred_check
        %p413 = pneg %p132
      $region26: #{image_cnn_forward.2} parent=11 // pred_check_branch
        %415 = sbr.rel (%p413) target = $region28
      $region27: #{image_cnn_forward.2} parent=11 // pred_region
        _
      $region28: #{image_cnn_forward.2} parent=11 // pred_fallthru
        _
      // Predicated region
      $region29: #{image_cnn_forward.2} parent=11 // pred_check
        %p416 = pneg %p153
      $region30: #{image_cnn_forward.2} parent=11 // pred_check_branch
        %418 = sbr.rel (%p416) target = $region32
      $region31: #{image_cnn_forward.2} parent=11 // pred_region
        _
      $region32: #{image_cnn_forward.2} parent=11 // pred_fallthru
        _
      // Predicated region
      $region33: #{image_cnn_forward.2} parent=11 // pred_check
        %p419 = pneg %p174
      $region34: #{image_cnn_forward.2} parent=11 // pred_check_branch
        %421 = sbr.rel (%p419) target = $region36
      $region35: #{image_cnn_forward.2} parent=11 // pred_region
        _
      $region36: #{image_cnn_forward.2} parent=11 // pred_fallthru
        _
      // Predicated region
      $region37: #{image_cnn_forward.2} parent=11 // pred_check
        %p422 = pneg %p195
      $region38: #{image_cnn_forward.2} parent=11 // pred_check_branch
        %424 = sbr.rel (%p422) target = $region40
      $region39: #{image_cnn_forward.2} parent=11 // pred_region
        _
      $region40: #{image_cnn_forward.2} parent=11 // pred_fallthru
        _
      // Predicated region
      $region41: #{image_cnn_forward.2} parent=11 // pred_check
        %p425 = pneg %p216
      $region42: #{image_cnn_forward.2} parent=11 // pred_check_branch
        %427 = sbr.rel (%p425) target = $region44
      $region43: #{image_cnn_forward.2} parent=11 // pred_region
        _
      $region44: #{image_cnn_forward.2} parent=11 // pred_fallthru
        _
      // Predicated region
      $region45: #{image_cnn_forward.2} parent=11 // pred_check
        %p428 = pneg %p237
      $region46: #{image_cnn_forward.2} parent=11 // pred_check_branch
        %430 = sbr.rel (%p428) target = $region48
      $region47: #{image_cnn_forward.2} parent=11 // pred_region
        _
      $region48: #{image_cnn_forward.2} parent=11 // pred_fallthru
        _
      // Predicated region
      $region49: #{image_cnn_forward.2} parent=11 // pred_check
        %p431 = pneg %p258
      $region50: #{image_cnn_forward.2} parent=11 // pred_check_branch
        %433 = sbr.rel (%p431) target = $region52
      $region51: #{image_cnn_forward.2} parent=11 // pred_region
        _
      $region52: #{image_cnn_forward.2} parent=11 // pred_fallthru
        _
      // Predicated region
      $region53: #{image_cnn_forward.2} parent=11 // pred_check
        %p434 = pneg %p279
      $region54: #{image_cnn_forward.2} parent=11 // pred_check_branch
        %436 = sbr.rel (%p434) target = $region56
      $region55: #{image_cnn_forward.2} parent=11 // pred_region
        _
      $region56: #{image_cnn_forward.2} parent=11 // pred_fallthru
        _
      // Predicated region
      $region57: #{image_cnn_forward.2} parent=11 // pred_check
        %p437 = pneg %p300
      $region58: #{image_cnn_forward.2} parent=11 // pred_check_branch
        %439 = sbr.rel (%p437) target = $region60
      $region59: #{image_cnn_forward.2} parent=11 // pred_region
        _
      $region60: #{image_cnn_forward.2} parent=11 // pred_fallthru
        _
      // Predicated region
      $region61: #{image_cnn_forward.2} parent=11 // pred_check
        %p440 = pneg %p321
      $region62: #{image_cnn_forward.2} parent=11 // pred_check_branch
        %442 = sbr.rel (%p440) target = $region64
      $region63: #{image_cnn_forward.2} parent=11 // pred_region
        _
      $region64: #{image_cnn_forward.2} parent=11 // pred_fallthru
        _
      // Predicated region
      $region65: #{image_cnn_forward.2} parent=11 // pred_check
        %p443 = pneg %p342
      $region66: #{image_cnn_forward.2} parent=11 // pred_check_branch
        %445 = sbr.rel (%p443) target = $region68
      $region67: #{image_cnn_forward.2} parent=11 // pred_region
        _
      $region68: #{image_cnn_forward.2} parent=11 // pred_fallthru
        _
      // Predicated region
      $region69: #{image_cnn_forward.2} parent=11 // pred_check
        %p446 = pneg %p363
      $region70: #{image_cnn_forward.2} parent=11 // pred_check_branch
        %448 = sbr.rel (%p446) target = $region72
      $region71: #{image_cnn_forward.2} parent=11 // pred_region
        _
      $region72: #{image_cnn_forward.2} parent=11 // pred_fallthru
        _
    $region12: #{image_cnn_forward.2} parent=5 // pred_fallthru
      _
    %p449 = scmp.lt.s32.totalorder %s22, 2
    // Predicated region
    $region73: #{image_cnn_forward.2} parent=5 // pred_check
      %p450 = pneg %p449
    $region74: #{image_cnn_forward.2} parent=5 // pred_check_branch
      %452 = sbr.rel (%p450) target = $region76
    $region75: #{image_cnn_forward.2} parent=5 // pred_region
      // Predicated region
      $region77: #{image_cnn_forward.2} parent=75 // pred_check
        %p453 = pneg %p42
      $region78: #{image_cnn_forward.2} parent=75 // pred_check_branch
        %455 = sbr.rel (%p453) target = $region80
      $region79: #{image_cnn_forward.2} parent=75 // pred_region
        %p456 = scmp.lt.s32.totalorder %s22, 1
        %s457 = scalar_select %p456, %s22, 1
        %s458 = smul.addr %s457, 8
        %s459 = smul.addr %s458, 4
        %s460 = scalar_lea.vmem %s0, %s459
      $region80: #{image_cnn_forward.2} parent=75 // pred_fallthru
        _
    $region76: #{image_cnn_forward.2} parent=5 // pred_fallthru
      _
    %p461 = scmp.le.s32.totalorder 1, %s22
    %p462 = scmp.lt.s32.totalorder %s22, 3
    %p463 = pnand %p461, %p462
    %p464 = pneg %p463
    // Predicated region
    $region81: #{image_cnn_forward.2} parent=5 // pred_check
      _
    $region82: #{image_cnn_forward.2} parent=5 // pred_check_branch
      %466 = sbr.rel (%p463) target = $region84
    $region83: #{image_cnn_forward.2} parent=5 // pred_region
      %s467 = ssub.s32 %s22, 1
      %p468 = scmp.lt.s32.totalorder %s27, 1
      %s469 = scalar_select %p468, %s27, 1
      %s470 = smul.addr %s469, 8
      %s471 = smul.addr %s470, 4
      %s472 = scalar_lea.vmem %s0, %s471
      %p473 = pneg %p48
      %p474 = pneg %p45
      %p475 = pneg %p69
      %p476 = pneg %p66
      %p477 = pneg %p90
      %p478 = pneg %p87
      %p479 = pneg %p111
      %p480 = pneg %p108
      %p481 = pneg %p132
      %p482 = pneg %p129
      %p483 = pneg %p153
      %p484 = pneg %p150
      %p485 = pneg %p174
      %p486 = pneg %p171
      %p487 = pneg %p195
      %p488 = pneg %p192
      %p489 = pneg %p216
      %p490 = pneg %p213
      %p491 = pneg %p237
      %p492 = pneg %p234
      %p493 = pneg %p258
      %p494 = pneg %p255
      %p495 = pneg %p279
      %p496 = pneg %p276
      %p497 = pneg %p300
      %p498 = pneg %p297
      %p499 = pneg %p321
      %p500 = pneg %p318
      %p501 = pneg %p342
      %p502 = pneg %p339
      %p503 = pneg %p363
      %p504 = pneg %p360
      %p505 = pneg %p389
      %p506 = pneg %p386
      %p507 = scmp.lt.s32.totalorder %s27, 1
      %s508 = scalar_select %p507, %s27, 1
      %s509 = smul.addr %s508, 8
      %s510 = smul.addr %s509, 8
      %s511 = scalar_lea.vmem %s16, %s510
      %p512 = scmp.lt.s32.totalorder %s27, 1
      %s513 = scalar_select %p512, %s27, 1
      %s514 = smul.addr %s513, 8
      %s515 = smul.addr %s514, 4
      %s516 = scalar_lea.vmem %s0, %s515
      %p517 = scmp.lt.s32.totalorder %s27, 1
      %s518 = scalar_select %p517, %s27, 1
      %s519 = smul.addr %s518, 8
      %s520 = smul.addr %s519, 8
      %s521 = scalar_lea.vmem %s16, %s520
      %v523 = vld [vmem:[%s516] sm:$0xff]
      %v524 = vld [vmem:[%s516 + $0x8] sm:$0xff]
      %v525 = vld [vmem:[%s516 + $0x10] sm:$0xff]
      %v526 = vld [vmem:[%s516 + $0x18] sm:$0xff]
      %v527 = vunpack.c.l.bf16 %v523
      %v528 = vunpack.c.h.bf16 %v523
      %v529 = vunpack.c.l.bf16 %v524
      %v530 = vunpack.c.h.bf16 %v524
      %v531 = vunpack.c.l.bf16 %v525
      %v532 = vunpack.c.h.bf16 %v525
      %v533 = vunpack.c.l.bf16 %v526
      %v534 = vunpack.c.h.bf16 %v526
      %535 = vrot.lane.b32.xlu0 %v527, 33
      %v536 = vpop.permute.xlu0 %535
      %537 = vrot.lane.b32.xlu0 %v528, 33
      %v538 = vpop.permute.xlu0 %537
      %539 = vrot.lane.b32.xlu0 %v529, 33
      %v540 = vpop.permute.xlu0 %539
      %541 = vrot.lane.b32.xlu0 %v530, 33
      %v542 = vpop.permute.xlu0 %541
      %543 = vrot.lane.b32.xlu0 %v531, 33
      %v544 = vpop.permute.xlu0 %543
      %545 = vrot.lane.b32.xlu0 %v532, 33
      %v546 = vpop.permute.xlu0 %545
      %547 = vrot.lane.b32.xlu0 %v533, 33
      %v548 = vpop.permute.xlu0 %547
      %549 = vrot.lane.b32.xlu0 %v534, 33
      %v550 = vpop.permute.xlu0 %549
      %v551 = vlaneseq
      %v552 = vand.u32 %v551, 127
      %vm553 = vcmp.lt.s32.totalorder %v552, 33
      %v554 = vsel %vm553, %v548, %v550
      %v555 = vsel %vm553, %v546, %v548
      %v556 = vsel %vm553, %v544, %v546
      %v557 = vsel %vm553, %v542, %v544
      %v558 = vsel %vm553, %v540, %v542
      %v559 = vsel %vm553, %v538, %v540
      %v560 = vsel %vm553, %v536, %v538
      %v561 = vsel %vm553, %v550, %v536
      %v562 = vld [vmem:[%s4] sm:$0xff]
      %v564 = vlaneseq
      %v565 = vshrl.u32 %v564, 7
      %v566 = vsub.s32 0, %v565
      %v567 = vrot.slane %v562, %v566
      %v568 = vlaneseq
      %v569 = vshrl.u32 %v568, 7
      %v570 = vsub.s32 1, %v569
      %v571 = vrot.slane %v562, %v570
      %v572 = vlaneseq
      %v573 = vshrl.u32 %v572, 7
      %v574 = vsub.s32 2, %v573
      %v575 = vrot.slane %v562, %v574
      %v576 = vlaneseq
      %v577 = vshrl.u32 %v576, 7
      %v578 = vsub.s32 3, %v577
      %v579 = vrot.slane %v562, %v578
      %v580 = vlaneseq
      %v581 = vshrl.u32 %v580, 7
      %v582 = vsub.s32 4, %v581
      %v583 = vrot.slane %v562, %v582
      %v584 = vlaneseq
      %v585 = vshrl.u32 %v584, 7
      %v586 = vsub.s32 5, %v585
      %v587 = vrot.slane %v562, %v586
      %v588 = vlaneseq
      %v589 = vshrl.u32 %v588, 7
      %v590 = vsub.s32 6, %v589
      %v591 = vrot.slane %v562, %v590
      %v592 = vlaneseq
      %v593 = vshrl.u32 %v592, 7
      %v594 = vsub.s32 7, %v593
      %v595 = vrot.slane %v562, %v594
      %v604 = vmul.f32 %v561, %v567
      %v605 = vmul.f32 %v560, %v571
      %v606 = vmul.f32 %v559, %v575
      %v607 = vmul.f32 %v558, %v579
      %v608 = vmul.f32 %v557, %v583
      %v609 = vmul.f32 %v556, %v587
      %v610 = vmul.f32 %v555, %v591
      %v611 = vmul.f32 %v554, %v595
      %612 = vrot.lane.b32.xlu0 %v527, 32
      %v613 = vpop.permute.xlu0 %612
      %614 = vrot.lane.b32.xlu0 %v528, 32
      %v615 = vpop.permute.xlu0 %614
      %616 = vrot.lane.b32.xlu0 %v529, 32
      %v617 = vpop.permute.xlu0 %616
      %618 = vrot.lane.b32.xlu0 %v530, 32
      %v619 = vpop.permute.xlu0 %618
      %620 = vrot.lane.b32.xlu0 %v531, 32
      %v621 = vpop.permute.xlu0 %620
      %622 = vrot.lane.b32.xlu0 %v532, 32
      %v623 = vpop.permute.xlu0 %622
      %624 = vrot.lane.b32.xlu0 %v533, 32
      %v625 = vpop.permute.xlu0 %624
      %626 = vrot.lane.b32.xlu0 %v534, 32
      %v627 = vpop.permute.xlu0 %626
      %vm628 = vcmp.lt.s32.totalorder %v552, 32
      %v629 = vsel %vm628, %v625, %v627
      %v630 = vsel %vm628, %v623, %v625
      %v631 = vsel %vm628, %v621, %v623
      %v632 = vsel %vm628, %v619, %v621
      %v633 = vsel %vm628, %v617, %v619
      %v634 = vsel %vm628, %v615, %v617
      %v635 = vsel %vm628, %v613, %v615
      %v636 = vsel %vm628, %v627, %v613
      %s637 = scalar_lea.vmem %s4, 8
      %v638 = vld [vmem:[%s637] sm:$0xff]
      %v640 = vlaneseq
      %v641 = vshrl.u32 %v640, 7
      %v642 = vsub.s32 0, %v641
      %v643 = vrot.slane %v638, %v642
      %v644 = vlaneseq
      %v645 = vshrl.u32 %v644, 7
      %v646 = vsub.s32 1, %v645
      %v647 = vrot.slane %v638, %v646
      %v648 = vlaneseq
      %v649 = vshrl.u32 %v648, 7
      %v650 = vsub.s32 2, %v649
      %v651 = vrot.slane %v638, %v650
      %v652 = vlaneseq
      %v653 = vshrl.u32 %v652, 7
      %v654 = vsub.s32 3, %v653
      %v655 = vrot.slane %v638, %v654
      %v656 = vlaneseq
      %v657 = vshrl.u32 %v656, 7
      %v658 = vsub.s32 4, %v657
      %v659 = vrot.slane %v638, %v658
      %v660 = vlaneseq
      %v661 = vshrl.u32 %v660, 7
      %v662 = vsub.s32 5, %v661
      %v663 = vrot.slane %v638, %v662
      %v664 = vlaneseq
      %v665 = vshrl.u32 %v664, 7
      %v666 = vsub.s32 6, %v665
      %v667 = vrot.slane %v638, %v666
      %v668 = vlaneseq
      %v669 = vshrl.u32 %v668, 7
      %v670 = vsub.s32 7, %v669
      %v671 = vrot.slane %v638, %v670
      %v680 = vmul.f32 %v636, %v643
      %v681 = vmul.f32 %v635, %v647
      %v682 = vmul.f32 %v634, %v651
      %v683 = vmul.f32 %v633, %v655
      %v684 = vmul.f32 %v632, %v659
      %v685 = vmul.f32 %v631, %v663
      %v686 = vmul.f32 %v630, %v667
      %v687 = vmul.f32 %v629, %v671
      %688 = vrot.lane.b32.xlu0 %v527, 31
      %v689 = vpop.permute.xlu0 %688
      %690 = vrot.lane.b32.xlu0 %v528, 31
      %v691 = vpop.permute.xlu0 %690
      %692 = vrot.lane.b32.xlu0 %v529, 31
      %v693 = vpop.permute.xlu0 %692
      %694 = vrot.lane.b32.xlu0 %v530, 31
      %v695 = vpop.permute.xlu0 %694
      %696 = vrot.lane.b32.xlu0 %v531, 31
      %v697 = vpop.permute.xlu0 %696
      %698 = vrot.lane.b32.xlu0 %v532, 31
      %v699 = vpop.permute.xlu0 %698
      %700 = vrot.lane.b32.xlu0 %v533, 31
      %v701 = vpop.permute.xlu0 %700
      %702 = vrot.lane.b32.xlu0 %v534, 31
      %v703 = vpop.permute.xlu0 %702
      %vm704 = vcmp.lt.s32.totalorder %v552, 31
      %v705 = vsel %vm704, %v701, %v703
      %v706 = vsel %vm704, %v699, %v701
      %v707 = vsel %vm704, %v697, %v699
      %v708 = vsel %vm704, %v695, %v697
      %v709 = vsel %vm704, %v693, %v695
      %v710 = vsel %vm704, %v691, %v693
      %v711 = vsel %vm704, %v689, %v691
      %v712 = vsel %vm704, %v703, %v689
      %s713 = scalar_lea.vmem %s4, 16
      %v714 = vld [vmem:[%s713] sm:$0xff]
      %v716 = vlaneseq
      %v717 = vshrl.u32 %v716, 7
      %v718 = vsub.s32 0, %v717
      %v719 = vrot.slane %v714, %v718
      %v720 = vlaneseq
      %v721 = vshrl.u32 %v720, 7
      %v722 = vsub.s32 1, %v721
      %v723 = vrot.slane %v714, %v722
      %v724 = vlaneseq
      %v725 = vshrl.u32 %v724, 7
      %v726 = vsub.s32 2, %v725
      %v727 = vrot.slane %v714, %v726
      %v728 = vlaneseq
      %v729 = vshrl.u32 %v728, 7
      %v730 = vsub.s32 3, %v729
      %v731 = vrot.slane %v714, %v730
      %v732 = vlaneseq
      %v733 = vshrl.u32 %v732, 7
      %v734 = vsub.s32 4, %v733
      %v735 = vrot.slane %v714, %v734
      %v736 = vlaneseq
      %v737 = vshrl.u32 %v736, 7
      %v738 = vsub.s32 5, %v737
      %v739 = vrot.slane %v714, %v738
      %v740 = vlaneseq
      %v741 = vshrl.u32 %v740, 7
      %v742 = vsub.s32 6, %v741
      %v743 = vrot.slane %v714, %v742
      %v744 = vlaneseq
      %v745 = vshrl.u32 %v744, 7
      %v746 = vsub.s32 7, %v745
      %v747 = vrot.slane %v714, %v746
      %v756 = vmul.f32 %v712, %v719
      %v757 = vmul.f32 %v711, %v723
      %v758 = vmul.f32 %v710, %v727
      %v759 = vmul.f32 %v709, %v731
      %v760 = vmul.f32 %v708, %v735
      %v761 = vmul.f32 %v707, %v739
      %v762 = vmul.f32 %v706, %v743
      %v763 = vmul.f32 %v705, %v747
      %764 = vrot.lane.b32.xlu0 %v527, 1
      %v765 = vpop.permute.xlu0 %764
      %766 = vrot.lane.b32.xlu0 %v528, 1
      %v767 = vpop.permute.xlu0 %766
      %768 = vrot.lane.b32.xlu0 %v529, 1
      %v769 = vpop.permute.xlu0 %768
      %770 = vrot.lane.b32.xlu0 %v530, 1
      %v771 = vpop.permute.xlu0 %770
      %772 = vrot.lane.b32.xlu0 %v531, 1
      %v773 = vpop.permute.xlu0 %772
      %774 = vrot.lane.b32.xlu0 %v532, 1
      %v775 = vpop.permute.xlu0 %774
      %776 = vrot.lane.b32.xlu0 %v533, 1
      %v777 = vpop.permute.xlu0 %776
      %778 = vrot.lane.b32.xlu0 %v534, 1
      %v779 = vpop.permute.xlu0 %778
      %vm780 = vcmp.lt.s32.totalorder %v552, 1
      %v781 = vsel %vm780, %v777, %v779
      %v782 = vsel %vm780, %v775, %v777
      %v783 = vsel %vm780, %v773, %v775
      %v784 = vsel %vm780, %v771, %v773
      %v785 = vsel %vm780, %v769, %v771
      %v786 = vsel %vm780, %v767, %v769
      %v787 = vsel %vm780, %v765, %v767
      %v788 = vsel %vm780, %v779, %v765
      %s789 = scalar_lea.vmem %s4, 24
      %v790 = vld [vmem:[%s789] sm:$0xff]
      %v792 = vlaneseq
      %v793 = vshrl.u32 %v792, 7
      %v794 = vsub.s32 0, %v793
      %v795 = vrot.slane %v790, %v794
      %v796 = vlaneseq
      %v797 = vshrl.u32 %v796, 7
      %v798 = vsub.s32 1, %v797
      %v799 = vrot.slane %v790, %v798
      %v800 = vlaneseq
      %v801 = vshrl.u32 %v800, 7
      %v802 = vsub.s32 2, %v801
      %v803 = vrot.slane %v790, %v802
      %v804 = vlaneseq
      %v805 = vshrl.u32 %v804, 7
      %v806 = vsub.s32 3, %v805
      %v807 = vrot.slane %v790, %v806
      %v808 = vlaneseq
      %v809 = vshrl.u32 %v808, 7
      %v810 = vsub.s32 4, %v809
      %v811 = vrot.slane %v790, %v810
      %v812 = vlaneseq
      %v813 = vshrl.u32 %v812, 7
      %v814 = vsub.s32 5, %v813
      %v815 = vrot.slane %v790, %v814
      %v816 = vlaneseq
      %v817 = vshrl.u32 %v816, 7
      %v818 = vsub.s32 6, %v817
      %v819 = vrot.slane %v790, %v818
      %v820 = vlaneseq
      %v821 = vshrl.u32 %v820, 7
      %v822 = vsub.s32 7, %v821
      %v823 = vrot.slane %v790, %v822
      %v832 = vmul.f32 %v788, %v795
      %v833 = vmul.f32 %v787, %v799
      %v834 = vmul.f32 %v786, %v803
      %v835 = vmul.f32 %v785, %v807
      %v836 = vmul.f32 %v784, %v811
      %v837 = vmul.f32 %v783, %v815
      %v838 = vmul.f32 %v782, %v819
      %v839 = vmul.f32 %v781, %v823
      %s840 = scalar_lea.vmem %s4, 32
      %v841 = vld [vmem:[%s840] sm:$0xff]
      %v843 = vlaneseq
      %v844 = vshrl.u32 %v843, 7
      %v845 = vsub.s32 0, %v844
      %v846 = vrot.slane %v841, %v845
      %v847 = vlaneseq
      %v848 = vshrl.u32 %v847, 7
      %v849 = vsub.s32 1, %v848
      %v850 = vrot.slane %v841, %v849
      %v851 = vlaneseq
      %v852 = vshrl.u32 %v851, 7
      %v853 = vsub.s32 2, %v852
      %v854 = vrot.slane %v841, %v853
      %v855 = vlaneseq
      %v856 = vshrl.u32 %v855, 7
      %v857 = vsub.s32 3, %v856
      %v858 = vrot.slane %v841, %v857
      %v859 = vlaneseq
      %v860 = vshrl.u32 %v859, 7
      %v861 = vsub.s32 4, %v860
      %v862 = vrot.slane %v841, %v861
      %v863 = vlaneseq
      %v864 = vshrl.u32 %v863, 7
      %v865 = vsub.s32 5, %v864
      %v866 = vrot.slane %v841, %v865
      %v867 = vlaneseq
      %v868 = vshrl.u32 %v867, 7
      %v869 = vsub.s32 6, %v868
      %v870 = vrot.slane %v841, %v869
      %v871 = vlaneseq
      %v872 = vshrl.u32 %v871, 7
      %v873 = vsub.s32 7, %v872
      %v874 = vrot.slane %v841, %v873
      %v883 = vmul.f32 %v527, %v846
      %v884 = vmul.f32 %v528, %v850
      %v885 = vmul.f32 %v529, %v854
      %v886 = vmul.f32 %v530, %v858
      %v887 = vmul.f32 %v531, %v862
      %v888 = vmul.f32 %v532, %v866
      %v889 = vmul.f32 %v533, %v870
      %v890 = vmul.f32 %v534, %v874
      %891 = vrot.lane.b32.xlu0 %v527, 127
      %v892 = vpop.permute.xlu0 %891
      %893 = vrot.lane.b32.xlu0 %v528, 127
      %v894 = vpop.permute.xlu0 %893
      %895 = vrot.lane.b32.xlu0 %v529, 127
      %v896 = vpop.permute.xlu0 %895
      %897 = vrot.lane.b32.xlu0 %v530, 127
      %v898 = vpop.permute.xlu0 %897
      %899 = vrot.lane.b32.xlu0 %v531, 127
      %v900 = vpop.permute.xlu0 %899
      %901 = vrot.lane.b32.xlu0 %v532, 127
      %v902 = vpop.permute.xlu0 %901
      %903 = vrot.lane.b32.xlu0 %v533, 127
      %v904 = vpop.permute.xlu0 %903
      %905 = vrot.lane.b32.xlu0 %v534, 127
      %v906 = vpop.permute.xlu0 %905
      %vm907 = vcmp.lt.s32.totalorder %v552, 127
      %v908 = vsel %vm907, %v904, %v906
      %v909 = vsel %vm907, %v902, %v904
      %v910 = vsel %vm907, %v900, %v902
      %v911 = vsel %vm907, %v898, %v900
      %v912 = vsel %vm907, %v896, %v898
      %v913 = vsel %vm907, %v894, %v896
      %v914 = vsel %vm907, %v892, %v894
      %v915 = vsel %vm907, %v906, %v892
      %s916 = scalar_lea.vmem %s4, 40
      %v917 = vld [vmem:[%s916] sm:$0xff]
      %v919 = vlaneseq
      %v920 = vshrl.u32 %v919, 7
      %v921 = vsub.s32 0, %v920
      %v922 = vrot.slane %v917, %v921
      %v923 = vlaneseq
      %v924 = vshrl.u32 %v923, 7
      %v925 = vsub.s32 1, %v924
      %v926 = vrot.slane %v917, %v925
      %v927 = vlaneseq
      %v928 = vshrl.u32 %v927, 7
      %v929 = vsub.s32 2, %v928
      %v930 = vrot.slane %v917, %v929
      %v931 = vlaneseq
      %v932 = vshrl.u32 %v931, 7
      %v933 = vsub.s32 3, %v932
      %v934 = vrot.slane %v917, %v933
      %v935 = vlaneseq
      %v936 = vshrl.u32 %v935, 7
      %v937 = vsub.s32 4, %v936
      %v938 = vrot.slane %v917, %v937
      %v939 = vlaneseq
      %v940 = vshrl.u32 %v939, 7
      %v941 = vsub.s32 5, %v940
      %v942 = vrot.slane %v917, %v941
      %v943 = vlaneseq
      %v944 = vshrl.u32 %v943, 7
      %v945 = vsub.s32 6, %v944
      %v946 = vrot.slane %v917, %v945
      %v947 = vlaneseq
      %v948 = vshrl.u32 %v947, 7
      %v949 = vsub.s32 7, %v948
      %v950 = vrot.slane %v917, %v949
      %v959 = vmul.f32 %v914, %v922
      %v960 = vmul.f32 %v913, %v926
      %v961 = vmul.f32 %v912, %v930
      %v962 = vmul.f32 %v911, %v934
      %v963 = vmul.f32 %v910, %v938
      %v964 = vmul.f32 %v909, %v942
      %v965 = vmul.f32 %v908, %v946
      %v966 = vmul.f32 %v915, %v950
      %967 = vrot.lane.b32.xlu0 %v527, 97
      %v968 = vpop.permute.xlu0 %967
      %969 = vrot.lane.b32.xlu0 %v528, 97
      %v970 = vpop.permute.xlu0 %969
      %971 = vrot.lane.b32.xlu0 %v529, 97
      %v972 = vpop.permute.xlu0 %971
      %973 = vrot.lane.b32.xlu0 %v530, 97
      %v974 = vpop.permute.xlu0 %973
      %975 = vrot.lane.b32.xlu0 %v531, 97
      %v976 = vpop.permute.xlu0 %975
      %977 = vrot.lane.b32.xlu0 %v532, 97
      %v978 = vpop.permute.xlu0 %977
      %979 = vrot.lane.b32.xlu0 %v533, 97
      %v980 = vpop.permute.xlu0 %979
      %981 = vrot.lane.b32.xlu0 %v534, 97
      %v982 = vpop.permute.xlu0 %981
      %vm983 = vcmp.lt.s32.totalorder %v552, 97
      %v984 = vsel %vm983, %v980, %v982
      %v985 = vsel %vm983, %v978, %v980
      %v986 = vsel %vm983, %v976, %v978
      %v987 = vsel %vm983, %v974, %v976
      %v988 = vsel %vm983, %v972, %v974
      %v989 = vsel %vm983, %v970, %v972
      %v990 = vsel %vm983, %v968, %v970
      %v991 = vsel %vm983, %v982, %v968
      %s992 = scalar_lea.vmem %s4, 48
      %v993 = vld [vmem:[%s992] sm:$0xff]
      %v995 = vlaneseq
      %v996 = vshrl.u32 %v995, 7
      %v997 = vsub.s32 0, %v996
      %v998 = vrot.slane %v993, %v997
      %v999 = vlaneseq
      %v1000 = vshrl.u32 %v999, 7
      %v1001 = vsub.s32 1, %v1000
      %v1002 = vrot.slane %v993, %v1001
      %v1003 = vlaneseq
      %v1004 = vshrl.u32 %v1003, 7
      %v1005 = vsub.s32 2, %v1004
      %v1006 = vrot.slane %v993, %v1005
      %v1007 = vlaneseq
      %v1008 = vshrl.u32 %v1007, 7
      %v1009 = vsub.s32 3, %v1008
      %v1010 = vrot.slane %v993, %v1009
      %v1011 = vlaneseq
      %v1012 = vshrl.u32 %v1011, 7
      %v1013 = vsub.s32 4, %v1012
      %v1014 = vrot.slane %v993, %v1013
      %v1015 = vlaneseq
      %v1016 = vshrl.u32 %v1015, 7
      %v1017 = vsub.s32 5, %v1016
      %v1018 = vrot.slane %v993, %v1017
      %v1019 = vlaneseq
      %v1020 = vshrl.u32 %v1019, 7
      %v1021 = vsub.s32 6, %v1020
      %v1022 = vrot.slane %v993, %v1021
      %v1023 = vlaneseq
      %v1024 = vshrl.u32 %v1023, 7
      %v1025 = vsub.s32 7, %v1024
      %v1026 = vrot.slane %v993, %v1025
      %v1035 = vmul.f32 %v990, %v998
      %v1036 = vmul.f32 %v989, %v1002
      %v1037 = vmul.f32 %v988, %v1006
      %v1038 = vmul.f32 %v987, %v1010
      %v1039 = vmul.f32 %v986, %v1014
      %v1040 = vmul.f32 %v985, %v1018
      %v1041 = vmul.f32 %v984, %v1022
      %v1042 = vmul.f32 %v991, %v1026
      %1043 = vrot.lane.b32.xlu0 %v527, 96
      %v1044 = vpop.permute.xlu0 %1043
      %1045 = vrot.lane.b32.xlu0 %v528, 96
      %v1046 = vpop.permute.xlu0 %1045
      %1047 = vrot.lane.b32.xlu0 %v529, 96
      %v1048 = vpop.permute.xlu0 %1047
      %1049 = vrot.lane.b32.xlu0 %v530, 96
      %v1050 = vpop.permute.xlu0 %1049
      %1051 = vrot.lane.b32.xlu0 %v531, 96
      %v1052 = vpop.permute.xlu0 %1051
      %1053 = vrot.lane.b32.xlu0 %v532, 96
      %v1054 = vpop.permute.xlu0 %1053
      %1055 = vrot.lane.b32.xlu0 %v533, 96
      %v1056 = vpop.permute.xlu0 %1055
      %1057 = vrot.lane.b32.xlu0 %v534, 96
      %v1058 = vpop.permute.xlu0 %1057
      %vm1059 = vcmp.lt.s32.totalorder %v552, 96
      %v1060 = vsel %vm1059, %v1056, %v1058
      %v1061 = vsel %vm1059, %v1054, %v1056
      %v1062 = vsel %vm1059, %v1052, %v1054
      %v1063 = vsel %vm1059, %v1050, %v1052
      %v1064 = vsel %vm1059, %v1048, %v1050
      %v1065 = vsel %vm1059, %v1046, %v1048
      %v1066 = vsel %vm1059, %v1044, %v1046
      %v1067 = vsel %vm1059, %v1058, %v1044
      %s1068 = scalar_lea.vmem %s4, 56
      %v1069 = vld [vmem:[%s1068] sm:$0xff]
      %v1071 = vlaneseq
      %v1072 = vshrl.u32 %v1071, 7
      %v1073 = vsub.s32 0, %v1072
      %v1074 = vrot.slane %v1069, %v1073
      %v1075 = vlaneseq
      %v1076 = vshrl.u32 %v1075, 7
      %v1077 = vsub.s32 1, %v1076
      %v1078 = vrot.slane %v1069, %v1077
      %v1079 = vlaneseq
      %v1080 = vshrl.u32 %v1079, 7
      %v1081 = vsub.s32 2, %v1080
      %v1082 = vrot.slane %v1069, %v1081
      %v1083 = vlaneseq
      %v1084 = vshrl.u32 %v1083, 7
      %v1085 = vsub.s32 3, %v1084
      %v1086 = vrot.slane %v1069, %v1085
      %v1087 = vlaneseq
      %v1088 = vshrl.u32 %v1087, 7
      %v1089 = vsub.s32 4, %v1088
      %v1090 = vrot.slane %v1069, %v1089
      %v1091 = vlaneseq
      %v1092 = vshrl.u32 %v1091, 7
      %v1093 = vsub.s32 5, %v1092
      %v1094 = vrot.slane %v1069, %v1093
      %v1095 = vlaneseq
      %v1096 = vshrl.u32 %v1095, 7
      %v1097 = vsub.s32 6, %v1096
      %v1098 = vrot.slane %v1069, %v1097
      %v1099 = vlaneseq
      %v1100 = vshrl.u32 %v1099, 7
      %v1101 = vsub.s32 7, %v1100
      %v1102 = vrot.slane %v1069, %v1101
      %v1111 = vmul.f32 %v1066, %v1074
      %v1112 = vmul.f32 %v1065, %v1078
      %v1113 = vmul.f32 %v1064, %v1082
      %v1114 = vmul.f32 %v1063, %v1086
      %v1115 = vmul.f32 %v1062, %v1090
      %v1116 = vmul.f32 %v1061, %v1094
      %v1117 = vmul.f32 %v1060, %v1098
      %v1118 = vmul.f32 %v1067, %v1102
      %1119 = vrot.lane.b32.xlu0 %v527, 95
      %v1120 = vpop.permute.xlu0 %1119
      %1121 = vrot.lane.b32.xlu0 %v528, 95
      %v1122 = vpop.permute.xlu0 %1121
      %1123 = vrot.lane.b32.xlu0 %v529, 95
      %v1124 = vpop.permute.xlu0 %1123
      %1125 = vrot.lane.b32.xlu0 %v530, 95
      %v1126 = vpop.permute.xlu0 %1125
      %1127 = vrot.lane.b32.xlu0 %v531, 95
      %v1128 = vpop.permute.xlu0 %1127
      %1129 = vrot.lane.b32.xlu0 %v532, 95
      %v1130 = vpop.permute.xlu0 %1129
      %1131 = vrot.lane.b32.xlu0 %v533, 95
      %v1132 = vpop.permute.xlu0 %1131
      %1133 = vrot.lane.b32.xlu0 %v534, 95
      %v1134 = vpop.permute.xlu0 %1133
      %vm1135 = vcmp.lt.s32.totalorder %v552, 95
      %v1136 = vsel %vm1135, %v1132, %v1134
      %v1137 = vsel %vm1135, %v1130, %v1132
      %v1138 = vsel %vm1135, %v1128, %v1130
      %v1139 = vsel %vm1135, %v1126, %v1128
      %v1140 = vsel %vm1135, %v1124, %v1126
      %v1141 = vsel %vm1135, %v1122, %v1124
      %v1142 = vsel %vm1135, %v1120, %v1122
      %v1143 = vsel %vm1135, %v1134, %v1120
      %s1144 = scalar_lea.vmem %s4, 64
      %v1145 = vld [vmem:[%s1144] sm:$0xff]
      %v1147 = vlaneseq
      %v1148 = vshrl.u32 %v1147, 7
      %v1149 = vsub.s32 0, %v1148
      %v1150 = vrot.slane %v1145, %v1149
      %v1151 = vlaneseq
      %v1152 = vshrl.u32 %v1151, 7
      %v1153 = vsub.s32 1, %v1152
      %v1154 = vrot.slane %v1145, %v1153
      %v1155 = vlaneseq
      %v1156 = vshrl.u32 %v1155, 7
      %v1157 = vsub.s32 2, %v1156
      %v1158 = vrot.slane %v1145, %v1157
      %v1159 = vlaneseq
      %v1160 = vshrl.u32 %v1159, 7
      %v1161 = vsub.s32 3, %v1160
      %v1162 = vrot.slane %v1145, %v1161
      %v1163 = vlaneseq
      %v1164 = vshrl.u32 %v1163, 7
      %v1165 = vsub.s32 4, %v1164
      %v1166 = vrot.slane %v1145, %v1165
      %v1167 = vlaneseq
      %v1168 = vshrl.u32 %v1167, 7
      %v1169 = vsub.s32 5, %v1168
      %v1170 = vrot.slane %v1145, %v1169
      %v1171 = vlaneseq
      %v1172 = vshrl.u32 %v1171, 7
      %v1173 = vsub.s32 6, %v1172
      %v1174 = vrot.slane %v1145, %v1173
      %v1175 = vlaneseq
      %v1176 = vshrl.u32 %v1175, 7
      %v1177 = vsub.s32 7, %v1176
      %v1178 = vrot.slane %v1145, %v1177
      %v1187 = vmul.f32 %v1142, %v1150
      %v1188 = vmul.f32 %v1141, %v1154
      %v1189 = vmul.f32 %v1140, %v1158
      %v1190 = vmul.f32 %v1139, %v1162
      %v1191 = vmul.f32 %v1138, %v1166
      %v1192 = vmul.f32 %v1137, %v1170
      %v1193 = vmul.f32 %v1136, %v1174
      %v1194 = vmul.f32 %v1143, %v1178
      %v1195 = vpack.c.bf16 %v680, %v604
      %v1196 = vpack.c.bf16 %v681, %v605
      %v1197 = vpack.c.bf16 %v682, %v606
      %v1198 = vpack.c.bf16 %v683, %v607
      %v1199 = vpack.c.bf16 %v684, %v608
      %v1200 = vpack.c.bf16 %v685, %v609
      %v1201 = vpack.c.bf16 %v686, %v610
      %v1202 = vpack.c.bf16 %v687, %v611
      %v1203 = vpack.c.bf16 %v832, %v756
      %v1204 = vpack.c.bf16 %v833, %v757
      %v1205 = vpack.c.bf16 %v834, %v758
      %v1206 = vpack.c.bf16 %v835, %v759
      %v1207 = vpack.c.bf16 %v836, %v760
      %v1208 = vpack.c.bf16 %v837, %v761
      %v1209 = vpack.c.bf16 %v838, %v762
      %v1210 = vpack.c.bf16 %v839, %v763
      %v1211 = vpack.c.bf16 %v959, %v883
      %v1212 = vpack.c.bf16 %v960, %v884
      %v1213 = vpack.c.bf16 %v961, %v885
      %v1214 = vpack.c.bf16 %v962, %v886
      %v1215 = vpack.c.bf16 %v963, %v887
      %v1216 = vpack.c.bf16 %v964, %v888
      %v1217 = vpack.c.bf16 %v965, %v889
      %v1218 = vpack.c.bf16 %v966, %v890
      %v1219 = vpack.c.bf16 %v1111, %v1035
      %v1220 = vpack.c.bf16 %v1112, %v1036
      %v1221 = vpack.c.bf16 %v1113, %v1037
      %v1222 = vpack.c.bf16 %v1114, %v1038
      %v1223 = vpack.c.bf16 %v1115, %v1039
      %v1224 = vpack.c.bf16 %v1116, %v1040
      %v1225 = vpack.c.bf16 %v1117, %v1041
      %v1226 = vpack.c.bf16 %v1118, %v1042
      %v1227 = vpack.c.bf16 %v1187, %v1187
      %v1228 = vpack.c.bf16 %v1188, %v1188
      %v1229 = vpack.c.bf16 %v1189, %v1189
      %v1230 = vpack.c.bf16 %v1190, %v1190
      %v1231 = vpack.c.bf16 %v1191, %v1191
      %v1232 = vpack.c.bf16 %v1192, %v1192
      %v1233 = vpack.c.bf16 %v1193, %v1193
      %v1234 = vpack.c.bf16 %v1194, %v1194
      %v1235 = vld [vmem:[%s1] sm:$0xf]
      %v1236 = vld [vmem:[%s1 + $0x4] sm:$0xf]
      %v1239 = vunpack.c.l.b16 %v1235
      %v1240 = vunpack.c.l.b16 %v1236
      %v1241 = vpack.c.b16 %v1240, %v1239
      %vm1242 = vcmask 588800
      %v1244 = vsel %vm1242, %v1241, 0
      %vm1246 = vcmask 1043456
      %v1248 = vsel %vm1246, %v1227, 0
      %v1251 = vsel %vm1246, %v1228, 0
      %v1254 = vsel %vm1246, %v1229, 0
      %v1257 = vsel %vm1246, %v1230, 0
      %v1260 = vsel %vm1246, %v1231, 0
      %v1263 = vsel %vm1246, %v1232, 0
      %v1266 = vsel %vm1246, %v1233, 0
      %v1269 = vsel %vm1246, %v1234, 0
      %1271 = vmatprep.subr.bf16.mxu0 %v1196
      %1272 = vmatpush1.bf16.msra.mxu0 %v1195
      %1273 = vmatprep.subr.bf16.mxu0 %v1204
      %1274 = vmatpush1.bf16.msra.mxu0 %v1203
      %1275 = vmatprep.subr.bf16.mxu0 %v1212
      %1276 = vmatpush1.bf16.msra.mxu0 %v1211
      %1277 = vmatprep.subr.bf16.mxu0 %v1220
      %1278 = vmatpush1.bf16.msra.mxu0 %v1219
      %1279 = vmatprep.subr.bf16.mxu0 %v1251
      %1280 = vmatpush1.bf16.msra.mxu0 %v1248
      %1281 = vmatprep.subr.bf16.mxu0 0
      %1282 = vmatpush1.bf16.msra.mxu0 0
      %1283 = vmatprep.subr.bf16.mxu0 0
      %1284 = vmatpush1.bf16.msra.mxu0 0
      %1285 = vmatprep.subr.bf16.mxu0 0
      %1286 = vmatpush1.bf16.msra.mxu0 0
      %1287 = vmatprep.subr.bf16.mxu0 0
      %1288 = vmatpush1.bf16.msra.mxu0 0
      %1289 = vmatprep.subr.bf16.mxu0 0
      %1290 = vmatpush1.bf16.msra.mxu0 0
      %1291 = vmatprep.subr.bf16.mxu0 0
      %1292 = vmatpush1.bf16.msra.mxu0 0
      %1293 = vmatprep.subr.bf16.mxu0 0
      %1294 = vmatpush1.bf16.msra.mxu0 0
      %1295 = vmatprep.subr.bf16.mxu0 0
      %1296 = vmatpush1.bf16.msra.mxu0 0
      %1297 = vmatprep.subr.bf16.mxu0 0
      %1298 = vmatpush1.bf16.msra.mxu0 0
      %1299 = vmatprep.subr.bf16.mxu0 0
      %1300 = vmatpush1.bf16.msra.mxu0 0
      %1301 = vmatprep.subr.bf16.mxu0 0
      %1302 = vmatpush1.bf16.msra.mxu0 0
      %1303 = vmatprep.mubr.bf16.mxu0 0
      %1304 = vmatmul.mubr.bf16.gmra.mrb[0].mxu0 %v1244
      %v1305 = vpop.f32.mrb[0].mxu0
      %v1306 = vadd.f32 0.0, %v1305
      %v1307 = vpop.f32.mrb[0].mxu0
      %v1308 = vadd.f32 0.0, %v1307
      %v1309 = vpop.f32.mrb[0].mxu0
      %v1310 = vadd.f32 0.0, %v1309
      %v1311 = vpop.f32.mrb[0].mxu0
      %v1312 = vadd.f32 0.0, %v1311
      %1313 = vdwg.mxu0
      %1314 = vmatprep.subr.bf16.mxu0 %v1198
      %1315 = vmatpush1.bf16.msra.mxu0 %v1197
      %1316 = vmatprep.subr.bf16.mxu0 %v1206
      %1317 = vmatpush1.bf16.msra.mxu0 %v1205
      %1318 = vmatprep.subr.bf16.mxu0 %v1214
      %1319 = vmatpush1.bf16.msra.mxu0 %v1213
      %1320 = vmatprep.subr.bf16.mxu0 %v1222
      %1321 = vmatpush1.bf16.msra.mxu0 %v1221
      %1322 = vmatprep.subr.bf16.mxu0 %v1257
      %1323 = vmatpush1.bf16.msra.mxu0 %v1254
      %1324 = vmatprep.subr.bf16.mxu0 0
      %1325 = vmatpush1.bf16.msra.mxu0 0
      %1326 = vmatprep.subr.bf16.mxu0 0
      %1327 = vmatpush1.bf16.msra.mxu0 0
      %1328 = vmatprep.subr.bf16.mxu0 0
      %1329 = vmatpush1.bf16.msra.mxu0 0
      %1330 = vmatprep.subr.bf16.mxu0 0
      %1331 = vmatpush1.bf16.msra.mxu0 0
      %1332 = vmatprep.subr.bf16.mxu0 0
      %1333 = vmatpush1.bf16.msra.mxu0 0
      %1334 = vmatprep.subr.bf16.mxu0 0
      %1335 = vmatpush1.bf16.msra.mxu0 0
      %1336 = vmatprep.subr.bf16.mxu0 0
      %1337 = vmatpush1.bf16.msra.mxu0 0
      %1338 = vmatprep.subr.bf16.mxu0 0
      %1339 = vmatpush1.bf16.msra.mxu0 0
      %1340 = vmatprep.subr.bf16.mxu0 0
      %1341 = vmatpush1.bf16.msra.mxu0 0
      %1342 = vmatprep.subr.bf16.mxu0 0
      %1343 = vmatpush1.bf16.msra.mxu0 0
      %1344 = vmatprep.subr.bf16.mxu0 0
      %1345 = vmatpush1.bf16.msra.mxu0 0
      %1346 = vmatprep.mubr.bf16.mxu0 0
      %1347 = vmatmul.mubr.bf16.gmra.mrb[0].mxu0 %v1244
      %v1348 = vpop.f32.mrb[0].mxu0
      %v1349 = vadd.f32 0.0, %v1348
      %v1350 = vpop.f32.mrb[0].mxu0
      %v1351 = vadd.f32 0.0, %v1350
      %v1352 = vpop.f32.mrb[0].mxu0
      %v1353 = vadd.f32 0.0, %v1352
      %v1354 = vpop.f32.mrb[0].mxu0
      %v1355 = vadd.f32 0.0, %v1354
      %1356 = vdwg.mxu0
      %1357 = vmatprep.subr.bf16.mxu0 %v1200
      %1358 = vmatpush1.bf16.msra.mxu0 %v1199
      %1359 = vmatprep.subr.bf16.mxu0 %v1208
      %1360 = vmatpush1.bf16.msra.mxu0 %v1207
      %1361 = vmatprep.subr.bf16.mxu0 %v1216
      %1362 = vmatpush1.bf16.msra.mxu0 %v1215
      %1363 = vmatprep.subr.bf16.mxu0 %v1224
      %1364 = vmatpush1.bf16.msra.mxu0 %v1223
      %1365 = vmatprep.subr.bf16.mxu0 %v1263
      %1366 = vmatpush1.bf16.msra.mxu0 %v1260
      %1367 = vmatprep.subr.bf16.mxu0 0
      %1368 = vmatpush1.bf16.msra.mxu0 0
      %1369 = vmatprep.subr.bf16.mxu0 0
      %1370 = vmatpush1.bf16.msra.mxu0 0
      %1371 = vmatprep.subr.bf16.mxu0 0
      %1372 = vmatpush1.bf16.msra.mxu0 0
      %1373 = vmatprep.subr.bf16.mxu0 0
      %1374 = vmatpush1.bf16.msra.mxu0 0
      %1375 = vmatprep.subr.bf16.mxu0 0
      %1376 = vmatpush1.bf16.msra.mxu0 0
      %1377 = vmatprep.subr.bf16.mxu0 0
      %1378 = vmatpush1.bf16.msra.mxu0 0
      %1379 = vmatprep.subr.bf16.mxu0 0
      %1380 = vmatpush1.bf16.msra.mxu0 0
      %1381 = vmatprep.subr.bf16.mxu0 0
      %1382 = vmatpush1.bf16.msra.mxu0 0
      %1383 = vmatprep.subr.bf16.mxu0 0
      %1384 = vmatpush1.bf16.msra.mxu0 0
      %1385 = vmatprep.subr.bf16.mxu0 0
      %1386 = vmatpush1.bf16.msra.mxu0 0
      %1387 = vmatprep.subr.bf16.mxu0 0
      %1388 = vmatpush1.bf16.msra.mxu0 0
      %1389 = vmatprep.mubr.bf16.mxu0 0
      %1390 = vmatmul.mubr.bf16.gmra.mrb[0].mxu0 %v1244
      %v1391 = vpop.f32.mrb[0].mxu0
      %v1392 = vadd.f32 0.0, %v1391
      %v1393 = vpop.f32.mrb[0].mxu0
      %v1394 = vadd.f32 0.0, %v1393
      %v1395 = vpop.f32.mrb[0].mxu0
      %v1396 = vadd.f32 0.0, %v1395
      %v1397 = vpop.f32.mrb[0].mxu0
      %v1398 = vadd.f32 0.0, %v1397
      %1399 = vdwg.mxu0
      %1400 = vmatprep.subr.bf16.mxu0 %v1202
      %1401 = vmatpush1.bf16.msra.mxu0 %v1201
      %1402 = vmatprep.subr.bf16.mxu0 %v1210
      %1403 = vmatpush1.bf16.msra.mxu0 %v1209
      %1404 = vmatprep.subr.bf16.mxu0 %v1218
      %1405 = vmatpush1.bf16.msra.mxu0 %v1217
      %1406 = vmatprep.subr.bf16.mxu0 %v1226
      %1407 = vmatpush1.bf16.msra.mxu0 %v1225
      %1408 = vmatprep.subr.bf16.mxu0 %v1269
      %1409 = vmatpush1.bf16.msra.mxu0 %v1266
      %1410 = vmatprep.subr.bf16.mxu0 0
      %1411 = vmatpush1.bf16.msra.mxu0 0
      %1412 = vmatprep.subr.bf16.mxu0 0
      %1413 = vmatpush1.bf16.msra.mxu0 0
      %1414 = vmatprep.subr.bf16.mxu0 0
      %1415 = vmatpush1.bf16.msra.mxu0 0
      %1416 = vmatprep.subr.bf16.mxu0 0
      %1417 = vmatpush1.bf16.msra.mxu0 0
      %1418 = vmatprep.subr.bf16.mxu0 0
      %1419 = vmatpush1.bf16.msra.mxu0 0
      %1420 = vmatprep.subr.bf16.mxu0 0
      %1421 = vmatpush1.bf16.msra.mxu0 0
      %1422 = vmatprep.subr.bf16.mxu0 0
      %1423 = vmatpush1.bf16.msra.mxu0 0
      %1424 = vmatprep.subr.bf16.mxu0 0
      %1425 = vmatpush1.bf16.msra.mxu0 0
      %1426 = vmatprep.subr.bf16.mxu0 0
      %1427 = vmatpush1.bf16.msra.mxu0 0
      %1428 = vmatprep.subr.bf16.mxu0 0
      %1429 = vmatpush1.bf16.msra.mxu0 0
      %1430 = vmatprep.subr.bf16.mxu0 0
      %1431 = vmatpush1.bf16.msra.mxu0 0
      %1432 = vmatprep.mubr.bf16.mxu0 0
      %1433 = vmatmul.mubr.bf16.gmra.mrb[0].mxu0 %v1244
      %v1434 = vpop.f32.mrb[0].mxu0
      %v1435 = vadd.f32 0.0, %v1434
      %v1436 = vpop.f32.mrb[0].mxu0
      %v1437 = vadd.f32 0.0, %v1436
      %v1438 = vpop.f32.mrb[0].mxu0
      %v1439 = vadd.f32 0.0, %v1438
      %v1440 = vpop.f32.mrb[0].mxu0
      %v1441 = vadd.f32 0.0, %v1440
      %1442 = vdwg.mxu0
      %v1443 = vld [vmem:[%s2] sm:$0xff]
      %v1444 = vld [vmem:[%s2 + $0x8] sm:$0xff]
      %1446 = vset.pattern.permute.xlu0 0
      %1447 = vperm.xlu0 %1446, %v1443
      %v1448 = vpop.permute.xlu0 %1447
      %1451 = vset.pattern.permute.xlu0 0
      %1452 = vperm.xlu0 %1451, %v1444
      %v1453 = vpop.permute.xlu0 %1452
      %v1455 = vmul.f32 %v1306, %v1448
      %v1456 = vmul.f32 %v1308, %v1448
      %v1457 = vmul.f32 %v1349, %v1448
      %v1458 = vmul.f32 %v1351, %v1448
      %v1459 = vmul.f32 %v1392, %v1448
      %v1460 = vmul.f32 %v1394, %v1448
      %v1461 = vmul.f32 %v1435, %v1448
      %v1462 = vmul.f32 %v1437, %v1448
      %v1463 = vmul.f32 %v1310, %v1453
      %v1464 = vmul.f32 %v1312, %v1453
      %v1465 = vmul.f32 %v1353, %v1453
      %v1466 = vmul.f32 %v1355, %v1453
      %v1467 = vmul.f32 %v1396, %v1453
      %v1468 = vmul.f32 %v1398, %v1453
      %v1469 = vmul.f32 %v1439, %v1453
      %v1470 = vmul.f32 %v1441, %v1453
      %v1471 = vld [vmem:[%s3] sm:$0xff]
      %v1472 = vld [vmem:[%s3 + $0x8] sm:$0xff]
      %1474 = vset.pattern.permute.xlu0 0
      %1475 = vperm.xlu0 %1474, %v1471
      %v1476 = vpop.permute.xlu0 %1475
      %1479 = vset.pattern.permute.xlu0 0
      %1480 = vperm.xlu0 %1479, %v1472
      %v1481 = vpop.permute.xlu0 %1480
      %v1483 = vadd.f32 %v1455, %v1476
      %v1484 = vadd.f32 %v1456, %v1476
      %v1485 = vadd.f32 %v1457, %v1476
      %v1486 = vadd.f32 %v1458, %v1476
      %v1487 = vadd.f32 %v1459, %v1476
      %v1488 = vadd.f32 %v1460, %v1476
      %v1489 = vadd.f32 %v1461, %v1476
      %v1490 = vadd.f32 %v1462, %v1476
      %v1491 = vadd.f32 %v1463, %v1481
      %v1492 = vadd.f32 %v1464, %v1481
      %v1493 = vadd.f32 %v1465, %v1481
      %v1494 = vadd.f32 %v1466, %v1481
      %v1495 = vadd.f32 %v1467, %v1481
      %v1496 = vadd.f32 %v1468, %v1481
      %v1497 = vadd.f32 %v1469, %v1481
      %v1498 = vadd.f32 %v1470, %v1481
      %v1499 = vmax.f32 %v1483, 0.0
      %v1500 = vmax.f32 %v1484, 0.0
      %v1501 = vmax.f32 %v1485, 0.0
      %v1502 = vmax.f32 %v1486, 0.0
      %v1503 = vmax.f32 %v1487, 0.0
      %v1504 = vmax.f32 %v1488, 0.0
      %v1505 = vmax.f32 %v1489, 0.0
      %v1506 = vmax.f32 %v1490, 0.0
      %v1507 = vmax.f32 %v1491, 0.0
      %v1508 = vmax.f32 %v1492, 0.0
      %v1509 = vmax.f32 %v1493, 0.0
      %v1510 = vmax.f32 %v1494, 0.0
      %v1511 = vmax.f32 %v1495, 0.0
      %v1512 = vmax.f32 %v1496, 0.0
      %v1513 = vmax.f32 %v1497, 0.0
      %v1514 = vmax.f32 %v1498, 0.0
      %1515 = vrot.lane.b32.xlu0 %v1499, 127
      %v1516 = vpop.permute.xlu0 %1515
      %1517 = vrot.lane.b32.xlu0 %v1507, 127
      %v1518 = vpop.permute.xlu0 %1517
      %1519 = vrot.lane.b32.xlu0 %v1500, 127
      %v1520 = vpop.permute.xlu0 %1519
      %1521 = vrot.lane.b32.xlu0 %v1508, 127
      %v1522 = vpop.permute.xlu0 %1521
      %1523 = vrot.lane.b32.xlu0 %v1501, 127
      %v1524 = vpop.permute.xlu0 %1523
      %1525 = vrot.lane.b32.xlu0 %v1509, 127
      %v1526 = vpop.permute.xlu0 %1525
      %1527 = vrot.lane.b32.xlu0 %v1502, 127
      %v1528 = vpop.permute.xlu0 %1527
      %1529 = vrot.lane.b32.xlu0 %v1510, 127
      %v1530 = vpop.permute.xlu0 %1529
      %1531 = vrot.lane.b32.xlu0 %v1503, 127
      %v1532 = vpop.permute.xlu0 %1531
      %1533 = vrot.lane.b32.xlu0 %v1511, 127
      %v1534 = vpop.permute.xlu0 %1533
      %1535 = vrot.lane.b32.xlu0 %v1504, 127
      %v1536 = vpop.permute.xlu0 %1535
      %1537 = vrot.lane.b32.xlu0 %v1512, 127
      %v1538 = vpop.permute.xlu0 %1537
      %1539 = vrot.lane.b32.xlu0 %v1505, 127
      %v1540 = vpop.permute.xlu0 %1539
      %1541 = vrot.lane.b32.xlu0 %v1513, 127
      %v1542 = vpop.permute.xlu0 %1541
      %1543 = vrot.lane.b32.xlu0 %v1506, 127
      %v1544 = vpop.permute.xlu0 %1543
      %1545 = vrot.lane.b32.xlu0 %v1514, 127
      %v1546 = vpop.permute.xlu0 %1545
      %v1547 = vsel %vm907, %v1540, %v1544
      %v1548 = vsel %vm907, %v1542, %v1546
      %v1549 = vsel %vm907, %v1536, %v1540
      %v1550 = vsel %vm907, %v1538, %v1542
      %v1551 = vsel %vm907, %v1532, %v1536
      %v1552 = vsel %vm907, %v1534, %v1538
      %v1553 = vsel %vm907, %v1528, %v1532
      %v1554 = vsel %vm907, %v1530, %v1534
      %v1555 = vsel %vm907, %v1524, %v1528
      %v1556 = vsel %vm907, %v1526, %v1530
      %v1557 = vsel %vm907, %v1520, %v1524
      %v1558 = vsel %vm907, %v1522, %v1526
      %v1559 = vsel %vm907, %v1516, %v1520
      %v1560 = vsel %vm907, %v1518, %v1522
      %v1561 = vsel %vm907, %v1544, %v1516
      %v1562 = vsel %vm907, %v1546, %v1518
      %v1563 = vmax.f32 %v1499, %v1559
      %v1564 = vmax.f32 %v1500, %v1557
      %v1565 = vmax.f32 %v1501, %v1555
      %v1566 = vmax.f32 %v1502, %v1553
      %v1567 = vmax.f32 %v1503, %v1551
      %v1568 = vmax.f32 %v1504, %v1549
      %v1569 = vmax.f32 %v1505, %v1547
      %v1570 = vmax.f32 %v1506, %v1561
      %v1571 = vmax.f32 %v1507, %v1560
      %v1572 = vmax.f32 %v1508, %v1558
      %v1573 = vmax.f32 %v1509, %v1556
      %v1574 = vmax.f32 %v1510, %v1554
      %v1575 = vmax.f32 %v1511, %v1552
      %v1576 = vmax.f32 %v1512, %v1550
      %v1577 = vmax.f32 %v1513, %v1548
      %v1578 = vmax.f32 %v1514, %v1562
      %1579 = vrot.lane.b32.xlu0 %v1499, 96
      %v1580 = vpop.permute.xlu0 %1579
      %1581 = vrot.lane.b32.xlu0 %v1507, 96
      %v1582 = vpop.permute.xlu0 %1581
      %1583 = vrot.lane.b32.xlu0 %v1500, 96
      %v1584 = vpop.permute.xlu0 %1583
      %1585 = vrot.lane.b32.xlu0 %v1508, 96
      %v1586 = vpop.permute.xlu0 %1585
      %1587 = vrot.lane.b32.xlu0 %v1501, 96
      %v1588 = vpop.permute.xlu0 %1587
      %1589 = vrot.lane.b32.xlu0 %v1509, 96
      %v1590 = vpop.permute.xlu0 %1589
      %1591 = vrot.lane.b32.xlu0 %v1502, 96
      %v1592 = vpop.permute.xlu0 %1591
      %1593 = vrot.lane.b32.xlu0 %v1510, 96
      %v1594 = vpop.permute.xlu0 %1593
      %1595 = vrot.lane.b32.xlu0 %v1503, 96
      %v1596 = vpop.permute.xlu0 %1595
      %1597 = vrot.lane.b32.xlu0 %v1511, 96
      %v1598 = vpop.permute.xlu0 %1597
      %1599 = vrot.lane.b32.xlu0 %v1504, 96
      %v1600 = vpop.permute.xlu0 %1599
      %1601 = vrot.lane.b32.xlu0 %v1512, 96
      %v1602 = vpop.permute.xlu0 %1601
      %1603 = vrot.lane.b32.xlu0 %v1505, 96
      %v1604 = vpop.permute.xlu0 %1603
      %1605 = vrot.lane.b32.xlu0 %v1513, 96
      %v1606 = vpop.permute.xlu0 %1605
      %1607 = vrot.lane.b32.xlu0 %v1506, 96
      %v1608 = vpop.permute.xlu0 %1607
      %1609 = vrot.lane.b32.xlu0 %v1514, 96
      %v1610 = vpop.permute.xlu0 %1609
      %v1611 = vsel %vm1059, %v1604, %v1608
      %v1612 = vsel %vm1059, %v1606, %v1610
      %v1613 = vsel %vm1059, %v1600, %v1604
      %v1614 = vsel %vm1059, %v1602, %v1606
      %v1615 = vsel %vm1059, %v1596, %v1600
      %v1616 = vsel %vm1059, %v1598, %v1602
      %v1617 = vsel %vm1059, %v1592, %v1596
      %v1618 = vsel %vm1059, %v1594, %v1598
      %v1619 = vsel %vm1059, %v1588, %v1592
      %v1620 = vsel %vm1059, %v1590, %v1594
      %v1621 = vsel %vm1059, %v1584, %v1588
      %v1622 = vsel %vm1059, %v1586, %v1590
      %v1623 = vsel %vm1059, %v1580, %v1584
      %v1624 = vsel %vm1059, %v1582, %v1586
      %v1625 = vsel %vm1059, %v1608, %v1580
      %v1626 = vsel %vm1059, %v1610, %v1582
      %v1627 = vmax.f32 %v1563, %v1623
      %v1628 = vmax.f32 %v1564, %v1621
      %v1629 = vmax.f32 %v1565, %v1619
      %v1630 = vmax.f32 %v1566, %v1617
      %v1631 = vmax.f32 %v1567, %v1615
      %v1632 = vmax.f32 %v1568, %v1613
      %v1633 = vmax.f32 %v1569, %v1611
      %v1634 = vmax.f32 %v1570, %v1625
      %v1635 = vmax.f32 %v1571, %v1624
      %v1636 = vmax.f32 %v1572, %v1622
      %v1637 = vmax.f32 %v1573, %v1620
      %v1638 = vmax.f32 %v1574, %v1618
      %v1639 = vmax.f32 %v1575, %v1616
      %v1640 = vmax.f32 %v1576, %v1614
      %v1641 = vmax.f32 %v1577, %v1612
      %v1642 = vmax.f32 %v1578, %v1626
      %1643 = vrot.lane.b32.xlu0 %v1499, 95
      %v1644 = vpop.permute.xlu0 %1643
      %1645 = vrot.lane.b32.xlu0 %v1507, 95
      %v1646 = vpop.permute.xlu0 %1645
      %1647 = vrot.lane.b32.xlu0 %v1500, 95
      %v1648 = vpop.permute.xlu0 %1647
      %1649 = vrot.lane.b32.xlu0 %v1508, 95
      %v1650 = vpop.permute.xlu0 %1649
      %1651 = vrot.lane.b32.xlu0 %v1501, 95
      %v1652 = vpop.permute.xlu0 %1651
      %1653 = vrot.lane.b32.xlu0 %v1509, 95
      %v1654 = vpop.permute.xlu0 %1653
      %1655 = vrot.lane.b32.xlu0 %v1502, 95
      %v1656 = vpop.permute.xlu0 %1655
      %1657 = vrot.lane.b32.xlu0 %v1510, 95
      %v1658 = vpop.permute.xlu0 %1657
      %1659 = vrot.lane.b32.xlu0 %v1503, 95
      %v1660 = vpop.permute.xlu0 %1659
      %1661 = vrot.lane.b32.xlu0 %v1511, 95
      %v1662 = vpop.permute.xlu0 %1661
      %1663 = vrot.lane.b32.xlu0 %v1504, 95
      %v1664 = vpop.permute.xlu0 %1663
      %1665 = vrot.lane.b32.xlu0 %v1512, 95
      %v1666 = vpop.permute.xlu0 %1665
      %1667 = vrot.lane.b32.xlu0 %v1505, 95
      %v1668 = vpop.permute.xlu0 %1667
      %1669 = vrot.lane.b32.xlu0 %v1513, 95
      %v1670 = vpop.permute.xlu0 %1669
      %1671 = vrot.lane.b32.xlu0 %v1506, 95
      %v1672 = vpop.permute.xlu0 %1671
      %1673 = vrot.lane.b32.xlu0 %v1514, 95
      %v1674 = vpop.permute.xlu0 %1673
      %v1675 = vsel %vm1135, %v1668, %v1672
      %v1676 = vsel %vm1135, %v1670, %v1674
      %v1677 = vsel %vm1135, %v1664, %v1668
      %v1678 = vsel %vm1135, %v1666, %v1670
      %v1679 = vsel %vm1135, %v1660, %v1664
      %v1680 = vsel %vm1135, %v1662, %v1666
      %v1681 = vsel %vm1135, %v1656, %v1660
      %v1682 = vsel %vm1135, %v1658, %v1662
      %v1683 = vsel %vm1135, %v1652, %v1656
      %v1684 = vsel %vm1135, %v1654, %v1658
      %v1685 = vsel %vm1135, %v1648, %v1652
      %v1686 = vsel %vm1135, %v1650, %v1654
      %v1687 = vsel %vm1135, %v1644, %v1648
      %v1688 = vsel %vm1135, %v1646, %v1650
      %v1689 = vsel %vm1135, %v1672, %v1644
      %v1690 = vsel %vm1135, %v1674, %v1646
      %v1691 = vmax.f32 %v1627, %v1687
      %v1692 = vmax.f32 %v1628, %v1685
      %v1693 = vmax.f32 %v1629, %v1683
      %v1694 = vmax.f32 %v1630, %v1681
      %v1695 = vmax.f32 %v1631, %v1679
      %v1696 = vmax.f32 %v1632, %v1677
      %v1697 = vmax.f32 %v1633, %v1675
      %v1698 = vmax.f32 %v1634, %v1689
      %v1699 = vmax.f32 %v1635, %v1688
      %v1700 = vmax.f32 %v1636, %v1686
      %v1701 = vmax.f32 %v1637, %v1684
      %v1702 = vmax.f32 %v1638, %v1682
      %v1703 = vmax.f32 %v1639, %v1680
      %v1704 = vmax.f32 %v1640, %v1678
      %v1705 = vmax.f32 %v1641, %v1676
      %v1706 = vmax.f32 %v1642, %v1690
      %v1707 = vpack.c.bf16 %v1699, %v1691
      %v1708 = vpack.c.bf16 %v1700, %v1692
      %v1709 = vpack.c.bf16 %v1701, %v1693
      %v1710 = vpack.c.bf16 %v1702, %v1694
      %v1711 = vpack.c.bf16 %v1703, %v1695
      %v1712 = vpack.c.bf16 %v1704, %v1696
      %v1713 = vpack.c.bf16 %v1705, %v1697
      %v1714 = vpack.c.bf16 %v1706, %v1698
      %v1715 = vld [vmem:[%s5] sm:$0xff]
      %v1716 = vld [vmem:[%s5 + $0x8] sm:$0xff]
      %v1717 = vld [vmem:[%s5 + $0x10] sm:$0xff]
      %v1718 = vld [vmem:[%s5 + $0x18] sm:$0xff]
      %v1719 = vld [vmem:[%s5 + $0x20] sm:$0xff]
      %v1720 = vld [vmem:[%s5 + $0x28] sm:$0xff]
      %v1721 = vld [vmem:[%s5 + $0x30] sm:$0xff]
      %v1722 = vld [vmem:[%s5 + $0x38] sm:$0xff]
      %v1723 = vld [vmem:[%s5 + $0x40] sm:$0xff]
      %v1724 = vld [vmem:[%s5 + $0x48] sm:$0xff]
      %v1725 = vld [vmem:[%s5 + $0x50] sm:$0xff]
      %v1726 = vld [vmem:[%s5 + $0x58] sm:$0xff]
      %v1727 = vld [vmem:[%s5 + $0x60] sm:$0xff]
      %v1728 = vld [vmem:[%s5 + $0x68] sm:$0xff]
      %v1729 = vld [vmem:[%s5 + $0x70] sm:$0xff]
      %v1730 = vld [vmem:[%s5 + $0x78] sm:$0xff]
      %v1731 = vld [vmem:[%s5 + $0x80] sm:$0xff]
      %v1732 = vld [vmem:[%s5 + $0x88] sm:$0xff]
      %v1733 = vld [vmem:[%s5 + $0x90] sm:$0xff]
      %v1734 = vld [vmem:[%s5 + $0x98] sm:$0xff]
      %v1735 = vld [vmem:[%s5 + $0xa0] sm:$0xff]
      %v1736 = vld [vmem:[%s5 + $0xa8] sm:$0xff]
      %v1737 = vld [vmem:[%s5 + $0xb0] sm:$0xff]
      %v1738 = vld [vmem:[%s5 + $0xb8] sm:$0xff]
      %v1739 = vld [vmem:[%s5 + $0xc0] sm:$0xff]
      %v1740 = vld [vmem:[%s5 + $0xc8] sm:$0xff]
      %v1741 = vld [vmem:[%s5 + $0xd0] sm:$0xff]
      %v1742 = vld [vmem:[%s5 + $0xd8] sm:$0xff]
      %v1743 = vld [vmem:[%s5 + $0xe0] sm:$0xff]
      %v1744 = vld [vmem:[%s5 + $0xe8] sm:$0xff]
      %v1745 = vld [vmem:[%s5 + $0xf0] sm:$0xff]
      %v1746 = vld [vmem:[%s5 + $0xf8] sm:$0xff]
      %v1747 = vld [vmem:[%s5 + $0x100] sm:$0xff]
      %v1748 = vld [vmem:[%s5 + $0x108] sm:$0xff]
      %v1749 = vld [vmem:[%s5 + $0x110] sm:$0xff]
      %v1750 = vld [vmem:[%s5 + $0x118] sm:$0xff]
      %v1751 = vld [vmem:[%s5 + $0x120] sm:$0xff]
      %v1752 = vld [vmem:[%s5 + $0x128] sm:$0xff]
      %v1753 = vld [vmem:[%s5 + $0x130] sm:$0xff]
      %v1754 = vld [vmem:[%s5 + $0x138] sm:$0xff]
      %v1755 = vld [vmem:[%s5 + $0x140] sm:$0xff]
      %v1756 = vld [vmem:[%s5 + $0x148] sm:$0xff]
      %v1757 = vld [vmem:[%s5 + $0x150] sm:$0xff]
      %v1758 = vld [vmem:[%s5 + $0x158] sm:$0xff]
      %v1759 = vld [vmem:[%s5 + $0x160] sm:$0xff]
      %v1760 = vld [vmem:[%s5 + $0x168] sm:$0xff]
      %v1761 = vld [vmem:[%s5 + $0x170] sm:$0xff]
      %v1762 = vld [vmem:[%s5 + $0x178] sm:$0xff]
      %v1763 = vld [vmem:[%s5 + $0x180] sm:$0xff]
      %v1764 = vld [vmem:[%s5 + $0x188] sm:$0xff]
      %v1765 = vld [vmem:[%s5 + $0x190] sm:$0xff]
      %v1766 = vld [vmem:[%s5 + $0x198] sm:$0xff]
      %v1767 = vld [vmem:[%s5 + $0x1a0] sm:$0xff]
      %v1768 = vld [vmem:[%s5 + $0x1a8] sm:$0xff]
      %v1769 = vld [vmem:[%s5 + $0x1b0] sm:$0xff]
      %v1770 = vld [vmem:[%s5 + $0x1b8] sm:$0xff]
      %v1771 = vld [vmem:[%s5 + $0x1c0] sm:$0xff]
      %v1772 = vld [vmem:[%s5 + $0x1c8] sm:$0xff]
      %v1773 = vld [vmem:[%s5 + $0x1d0] sm:$0xff]
      %v1774 = vld [vmem:[%s5 + $0x1d8] sm:$0xff]
      %v1775 = vld [vmem:[%s5 + $0x1e0] sm:$0xff]
      %v1776 = vld [vmem:[%s5 + $0x1e8] sm:$0xff]
      %v1777 = vld [vmem:[%s5 + $0x1f0] sm:$0xff]
      %v1778 = vld [vmem:[%s5 + $0x1f8] sm:$0xff]
      %v1779 = vld [vmem:[%s5 + $0x200] sm:$0xff]
      %v1780 = vld [vmem:[%s5 + $0x208] sm:$0xff]
      %v1781 = vld [vmem:[%s5 + $0x210] sm:$0xff]
      %v1782 = vld [vmem:[%s5 + $0x218] sm:$0xff]
      %v1783 = vld [vmem:[%s5 + $0x220] sm:$0xff]
      %v1784 = vld [vmem:[%s5 + $0x228] sm:$0xff]
      %v1785 = vld [vmem:[%s5 + $0x230] sm:$0xff]
      %v1786 = vld [vmem:[%s5 + $0x238] sm:$0xff]
      %v1787 = vld [vmem:[%s5 + $0x240] sm:$0xff]
      %v1788 = vld [vmem:[%s5 + $0x248] sm:$0xff]
      %v1789 = vld [vmem:[%s5 + $0x250] sm:$0xff]
      %v1790 = vld [vmem:[%s5 + $0x258] sm:$0xff]
      %v1791 = vld [vmem:[%s5 + $0x260] sm:$0xff]
      %v1792 = vld [vmem:[%s5 + $0x268] sm:$0xff]
      %v1793 = vld [vmem:[%s5 + $0x270] sm:$0xff]
      %v1794 = vld [vmem:[%s5 + $0x278] sm:$0xff]
      %v1795 = vld [vmem:[%s5 + $0x280] sm:$0xff]
      %v1796 = vld [vmem:[%s5 + $0x288] sm:$0xff]
      %v1797 = vld [vmem:[%s5 + $0x290] sm:$0xff]
      %v1798 = vld [vmem:[%s5 + $0x298] sm:$0xff]
      %v1799 = vld [vmem:[%s5 + $0x2a0] sm:$0xff]
      %v1800 = vld [vmem:[%s5 + $0x2a8] sm:$0xff]
      %v1801 = vld [vmem:[%s5 + $0x2b0] sm:$0xff]
      %v1802 = vld [vmem:[%s5 + $0x2b8] sm:$0xff]
      %v1803 = vld [vmem:[%s5 + $0x2c0] sm:$0xff]
      %v1804 = vld [vmem:[%s5 + $0x2c8] sm:$0xff]
      %v1805 = vld [vmem:[%s5 + $0x2d0] sm:$0xff]
      %v1806 = vld [vmem:[%s5 + $0x2d8] sm:$0xff]
      %v1807 = vld [vmem:[%s5 + $0x2e0] sm:$0xff]
      %v1808 = vld [vmem:[%s5 + $0x2e8] sm:$0xff]
      %v1809 = vld [vmem:[%s5 + $0x2f0] sm:$0xff]
      %v1810 = vld [vmem:[%s5 + $0x2f8] sm:$0xff]
      %v1811 = vld [vmem:[%s5 + $0x300] sm:$0xff]
      %v1812 = vld [vmem:[%s5 + $0x308] sm:$0xff]
      %v1813 = vld [vmem:[%s5 + $0x310] sm:$0xff]
      %v1814 = vld [vmem:[%s5 + $0x318] sm:$0xff]
      %v1815 = vld [vmem:[%s5 + $0x320] sm:$0xff]
      %v1816 = vld [vmem:[%s5 + $0x328] sm:$0xff]
      %v1817 = vld [vmem:[%s5 + $0x330] sm:$0xff]
      %v1818 = vld [vmem:[%s5 + $0x338] sm:$0xff]
      %v1819 = vld [vmem:[%s5 + $0x340] sm:$0xff]
      %v1820 = vld [vmem:[%s5 + $0x348] sm:$0xff]
      %v1821 = vld [vmem:[%s5 + $0x350] sm:$0xff]
      %v1822 = vld [vmem:[%s5 + $0x358] sm:$0xff]
      %v1823 = vld [vmem:[%s5 + $0x360] sm:$0xff]
      %v1824 = vld [vmem:[%s5 + $0x368] sm:$0xff]
      %v1825 = vld [vmem:[%s5 + $0x370] sm:$0xff]
      %v1826 = vld [vmem:[%s5 + $0x378] sm:$0xff]
      %v1827 = vld [vmem:[%s5 + $0x380] sm:$0xff]
      %v1828 = vld [vmem:[%s5 + $0x388] sm:$0xff]
      %v1829 = vld [vmem:[%s5 + $0x390] sm:$0xff]
      %v1830 = vld [vmem:[%s5 + $0x398] sm:$0xff]
      %v1831 = vld [vmem:[%s5 + $0x3a0] sm:$0xff]
      %v1832 = vld [vmem:[%s5 + $0x3a8] sm:$0xff]
      %v1833 = vld [vmem:[%s5 + $0x3b0] sm:$0xff]
      %v1834 = vld [vmem:[%s5 + $0x3b8] sm:$0xff]
      %v1835 = vld [vmem:[%s5 + $0x3c0] sm:$0xff]
      %v1836 = vld [vmem:[%s5 + $0x3c8] sm:$0xff]
      %v1837 = vld [vmem:[%s5 + $0x3d0] sm:$0xff]
      %v1838 = vld [vmem:[%s5 + $0x3d8] sm:$0xff]
      %v1839 = vld [vmem:[%s5 + $0x3e0] sm:$0xff]
      %v1840 = vld [vmem:[%s5 + $0x3e8] sm:$0xff]
      %v1841 = vld [vmem:[%s5 + $0x3f0] sm:$0xff]
      %v1842 = vld [vmem:[%s5 + $0x3f8] sm:$0xff]
      %v1971 = vunpack.c.l.b16 %v1715
      %v1972 = vunpack.c.h.b16 %v1715
      %v1973 = vunpack.c.l.b16 %v1716
      %v1974 = vunpack.c.h.b16 %v1716
      %v1975 = vunpack.c.l.b16 %v1717
      %v1976 = vunpack.c.h.b16 %v1717
      %v1977 = vunpack.c.l.b16 %v1718
      %v1978 = vunpack.c.h.b16 %v1718
      %v1979 = vunpack.c.l.b16 %v1719
      %v1980 = vunpack.c.h.b16 %v1719
      %v1981 = vunpack.c.l.b16 %v1720
      %v1982 = vunpack.c.h.b16 %v1720
      %v1983 = vunpack.c.l.b16 %v1721
      %v1984 = vunpack.c.h.b16 %v1721
      %v1985 = vunpack.c.l.b16 %v1722
      %v1986 = vunpack.c.h.b16 %v1722
      %v1987 = vunpack.c.l.b16 %v1723
      %v1988 = vunpack.c.h.b16 %v1723
      %v1989 = vunpack.c.l.b16 %v1724
      %v1990 = vunpack.c.h.b16 %v1724
      %v1991 = vunpack.c.l.b16 %v1725
      %v1992 = vunpack.c.h.b16 %v1725
      %v1993 = vunpack.c.l.b16 %v1726
      %v1994 = vunpack.c.h.b16 %v1726
      %v1995 = vunpack.c.l.b16 %v1727
      %v1996 = vunpack.c.h.b16 %v1727
      %v1997 = vunpack.c.l.b16 %v1728
      %v1998 = vunpack.c.h.b16 %v1728
      %v1999 = vunpack.c.l.b16 %v1729
      %v2000 = vunpack.c.h.b16 %v1729
      %v2001 = vunpack.c.l.b16 %v1730
      %v2002 = vunpack.c.h.b16 %v1730
      %v2003 = vunpack.c.l.b16 %v1731
      %v2004 = vunpack.c.h.b16 %v1731
      %v2005 = vunpack.c.l.b16 %v1732
      %v2006 = vunpack.c.h.b16 %v1732
      %v2007 = vunpack.c.l.b16 %v1733
      %v2008 = vunpack.c.h.b16 %v1733
      %v2009 = vunpack.c.l.b16 %v1734
      %v2010 = vunpack.c.h.b16 %v1734
      %v2011 = vunpack.c.l.b16 %v1735
      %v2012 = vunpack.c.h.b16 %v1735
      %v2013 = vunpack.c.l.b16 %v1736
      %v2014 = vunpack.c.h.b16 %v1736
      %v2015 = vunpack.c.l.b16 %v1737
      %v2016 = vunpack.c.h.b16 %v1737
      %v2017 = vunpack.c.l.b16 %v1738
      %v2018 = vunpack.c.h.b16 %v1738
      %v2019 = vunpack.c.l.b16 %v1739
      %v2020 = vunpack.c.h.b16 %v1739
      %v2021 = vunpack.c.l.b16 %v1740
      %v2022 = vunpack.c.h.b16 %v1740
      %v2023 = vunpack.c.l.b16 %v1741
      %v2024 = vunpack.c.h.b16 %v1741
      %v2025 = vunpack.c.l.b16 %v1742
      %v2026 = vunpack.c.h.b16 %v1742
      %v2027 = vunpack.c.l.b16 %v1743
      %v2028 = vunpack.c.h.b16 %v1743
      %v2029 = vunpack.c.l.b16 %v1744
      %v2030 = vunpack.c.h.b16 %v1744
      %v2031 = vunpack.c.l.b16 %v1745
      %v2032 = vunpack.c.h.b16 %v1745
      %v2033 = vunpack.c.l.b16 %v1746
      %v2034 = vunpack.c.h.b16 %v1746
      %v2035 = vunpack.c.l.b16 %v1747
      %v2036 = vunpack.c.h.b16 %v1747
      %v2037 = vunpack.c.l.b16 %v1748
      %v2038 = vunpack.c.h.b16 %v1748
      %v2039 = vunpack.c.l.b16 %v1749
      %v2040 = vunpack.c.h.b16 %v1749
      %v2041 = vunpack.c.l.b16 %v1750
      %v2042 = vunpack.c.h.b16 %v1750
      %v2043 = vunpack.c.l.b16 %v1751
      %v2044 = vunpack.c.h.b16 %v1751
      %v2045 = vunpack.c.l.b16 %v1752
      %v2046 = vunpack.c.h.b16 %v1752
      %v2047 = vunpack.c.l.b16 %v1753
      %v2048 = vunpack.c.h.b16 %v1753
      %v2049 = vunpack.c.l.b16 %v1754
      %v2050 = vunpack.c.h.b16 %v1754
      %v2051 = vunpack.c.l.b16 %v1755
      %v2052 = vunpack.c.h.b16 %v1755
      %v2053 = vunpack.c.l.b16 %v1756
      %v2054 = vunpack.c.h.b16 %v1756
      %v2055 = vunpack.c.l.b16 %v1757
      %v2056 = vunpack.c.h.b16 %v1757
      %v2057 = vunpack.c.l.b16 %v1758
      %v2058 = vunpack.c.h.b16 %v1758
      %v2059 = vunpack.c.l.b16 %v1759
      %v2060 = vunpack.c.h.b16 %v1759
      %v2061 = vunpack.c.l.b16 %v1760
      %v2062 = vunpack.c.h.b16 %v1760
      %v2063 = vunpack.c.l.b16 %v1761
      %v2064 = vunpack.c.h.b16 %v1761
      %v2065 = vunpack.c.l.b16 %v1762
      %v2066 = vunpack.c.h.b16 %v1762
      %v2067 = vunpack.c.l.b16 %v1763
      %v2068 = vunpack.c.h.b16 %v1763
      %v2069 = vunpack.c.l.b16 %v1764
      %v2070 = vunpack.c.h.b16 %v1764
      %v2071 = vunpack.c.l.b16 %v1765
      %v2072 = vunpack.c.h.b16 %v1765
      %v2073 = vunpack.c.l.b16 %v1766
      %v2074 = vunpack.c.h.b16 %v1766
      %v2075 = vunpack.c.l.b16 %v1767
      %v2076 = vunpack.c.h.b16 %v1767
      %v2077 = vunpack.c.l.b16 %v1768
      %v2078 = vunpack.c.h.b16 %v1768
      %v2079 = vunpack.c.l.b16 %v1769
      %v2080 = vunpack.c.h.b16 %v1769
      %v2081 = vunpack.c.l.b16 %v1770
      %v2082 = vunpack.c.h.b16 %v1770
      %v2083 = vunpack.c.l.b16 %v1771
      %v2084 = vunpack.c.h.b16 %v1771
      %v2085 = vunpack.c.l.b16 %v1772
      %v2086 = vunpack.c.h.b16 %v1772
      %v2087 = vunpack.c.l.b16 %v1773
      %v2088 = vunpack.c.h.b16 %v1773
      %v2089 = vunpack.c.l.b16 %v1774
      %v2090 = vunpack.c.h.b16 %v1774
      %v2091 = vunpack.c.l.b16 %v1775
      %v2092 = vunpack.c.h.b16 %v1775
      %v2093 = vunpack.c.l.b16 %v1776
      %v2094 = vunpack.c.h.b16 %v1776
      %v2095 = vunpack.c.l.b16 %v1777
      %v2096 = vunpack.c.h.b16 %v1777
      %v2097 = vunpack.c.l.b16 %v1778
      %v2098 = vunpack.c.h.b16 %v1778
      %v2099 = vunpack.c.l.b16 %v1779
      %v2100 = vunpack.c.h.b16 %v1779
      %v2101 = vunpack.c.l.b16 %v1780
      %v2102 = vunpack.c.h.b16 %v1780
      %v2103 = vunpack.c.l.b16 %v1781
      %v2104 = vunpack.c.h.b16 %v1781
      %v2105 = vunpack.c.l.b16 %v1782
      %v2106 = vunpack.c.h.b16 %v1782
      %v2107 = vunpack.c.l.b16 %v1783
      %v2108 = vunpack.c.h.b16 %v1783
      %v2109 = vunpack.c.l.b16 %v1784
      %v2110 = vunpack.c.h.b16 %v1784
      %v2111 = vunpack.c.l.b16 %v1785
      %v2112 = vunpack.c.h.b16 %v1785
      %v2113 = vunpack.c.l.b16 %v1786
      %v2114 = vunpack.c.h.b16 %v1786
      %v2115 = vunpack.c.l.b16 %v1787
      %v2116 = vunpack.c.h.b16 %v1787
      %v2117 = vunpack.c.l.b16 %v1788
      %v2118 = vunpack.c.h.b16 %v1788
      %v2119 = vunpack.c.l.b16 %v1789
      %v2120 = vunpack.c.h.b16 %v1789
      %v2121 = vunpack.c.l.b16 %v1790
      %v2122 = vunpack.c.h.b16 %v1790
      %v2123 = vunpack.c.l.b16 %v1791
      %v2124 = vunpack.c.h.b16 %v1791
      %v2125 = vunpack.c.l.b16 %v1792
      %v2126 = vunpack.c.h.b16 %v1792
      %v2127 = vunpack.c.l.b16 %v1793
      %v2128 = vunpack.c.h.b16 %v1793
      %v2129 = vunpack.c.l.b16 %v1794
      %v2130 = vunpack.c.h.b16 %v1794
      %v2131 = vunpack.c.l.b16 %v1795
      %v2132 = vunpack.c.h.b16 %v1795
      %v2133 = vunpack.c.l.b16 %v1796
      %v2134 = vunpack.c.h.b16 %v1796
      %v2135 = vunpack.c.l.b16 %v1797
      %v2136 = vunpack.c.h.b16 %v1797
      %v2137 = vunpack.c.l.b16 %v1798
      %v2138 = vunpack.c.h.b16 %v1798
      %v2139 = vunpack.c.l.b16 %v1799
      %v2140 = vunpack.c.h.b16 %v1799
      %v2141 = vunpack.c.l.b16 %v1800
      %v2142 = vunpack.c.h.b16 %v1800
      %v2143 = vunpack.c.l.b16 %v1801
      %v2144 = vunpack.c.h.b16 %v1801
      %v2145 = vunpack.c.l.b16 %v1802
      %v2146 = vunpack.c.h.b16 %v1802
      %v2147 = vunpack.c.l.b16 %v1803
      %v2148 = vunpack.c.h.b16 %v1803
      %v2149 = vunpack.c.l.b16 %v1804
      %v2150 = vunpack.c.h.b16 %v1804
      %v2151 = vunpack.c.l.b16 %v1805
      %v2152 = vunpack.c.h.b16 %v1805
      %v2153 = vunpack.c.l.b16 %v1806
      %v2154 = vunpack.c.h.b16 %v1806
      %v2155 = vunpack.c.l.b16 %v1807
      %v2156 = vunpack.c.h.b16 %v1807
      %v2157 = vunpack.c.l.b16 %v1808
      %v2158 = vunpack.c.h.b16 %v1808
      %v2159 = vunpack.c.l.b16 %v1809
      %v2160 = vunpack.c.h.b16 %v1809
      %v2161 = vunpack.c.l.b16 %v1810
      %v2162 = vunpack.c.h.b16 %v1810
      %v2163 = vunpack.c.l.b16 %v1811
      %v2164 = vunpack.c.h.b16 %v1811
      %v2165 = vunpack.c.l.b16 %v1812
      %v2166 = vunpack.c.h.b16 %v1812
      %v2167 = vunpack.c.l.b16 %v1813
      %v2168 = vunpack.c.h.b16 %v1813
      %v2169 = vunpack.c.l.b16 %v1814
      %v2170 = vunpack.c.h.b16 %v1814
      %v2171 = vunpack.c.l.b16 %v1815
      %v2172 = vunpack.c.h.b16 %v1815
      %v2173 = vunpack.c.l.b16 %v1816
      %v2174 = vunpack.c.h.b16 %v1816
      %v2175 = vunpack.c.l.b16 %v1817
      %v2176 = vunpack.c.h.b16 %v1817
      %v2177 = vunpack.c.l.b16 %v1818
      %v2178 = vunpack.c.h.b16 %v1818
      %v2179 = vunpack.c.l.b16 %v1819
      %v2180 = vunpack.c.h.b16 %v1819
      %v2181 = vunpack.c.l.b16 %v1820
      %v2182 = vunpack.c.h.b16 %v1820
      %v2183 = vunpack.c.l.b16 %v1821
      %v2184 = vunpack.c.h.b16 %v1821
      %v2185 = vunpack.c.l.b16 %v1822
      %v2186 = vunpack.c.h.b16 %v1822
      %v2187 = vunpack.c.l.b16 %v1823
      %v2188 = vunpack.c.h.b16 %v1823
      %v2189 = vunpack.c.l.b16 %v1824
      %v2190 = vunpack.c.h.b16 %v1824
      %v2191 = vunpack.c.l.b16 %v1825
      %v2192 = vunpack.c.h.b16 %v1825
      %v2193 = vunpack.c.l.b16 %v1826
      %v2194 = vunpack.c.h.b16 %v1826
      %v2195 = vunpack.c.l.b16 %v1827
      %v2196 = vunpack.c.h.b16 %v1827
      %v2197 = vunpack.c.l.b16 %v1828
      %v2198 = vunpack.c.h.b16 %v1828
      %v2199 = vunpack.c.l.b16 %v1829
      %v2200 = vunpack.c.h.b16 %v1829
      %v2201 = vunpack.c.l.b16 %v1830
      %v2202 = vunpack.c.h.b16 %v1830
      %v2203 = vunpack.c.l.b16 %v1831
      %v2204 = vunpack.c.h.b16 %v1831
      %v2205 = vunpack.c.l.b16 %v1832
      %v2206 = vunpack.c.h.b16 %v1832
      %v2207 = vunpack.c.l.b16 %v1833
      %v2208 = vunpack.c.h.b16 %v1833
      %v2209 = vunpack.c.l.b16 %v1834
      %v2210 = vunpack.c.h.b16 %v1834
      %v2211 = vunpack.c.l.b16 %v1835
      %v2212 = vunpack.c.h.b16 %v1835
      %v2213 = vunpack.c.l.b16 %v1836
      %v2214 = vunpack.c.h.b16 %v1836
      %v2215 = vunpack.c.l.b16 %v1837
      %v2216 = vunpack.c.h.b16 %v1837
      %v2217 = vunpack.c.l.b16 %v1838
      %v2218 = vunpack.c.h.b16 %v1838
      %v2219 = vunpack.c.l.b16 %v1839
      %v2220 = vunpack.c.h.b16 %v1839
      %v2221 = vunpack.c.l.b16 %v1840
      %v2222 = vunpack.c.h.b16 %v1840
      %v2223 = vunpack.c.l.b16 %v1841
      %v2224 = vunpack.c.h.b16 %v1841
      %v2225 = vunpack.c.l.b16 %v1842
      %v2226 = vunpack.c.h.b16 %v1842
      %v2227 = vpack.c.b16 %v1973, %v1971
      %v2228 = vpack.c.b16 %v1974, %v1972
      %v2229 = vpack.c.b16 %v1977, %v1975
      %v2230 = vpack.c.b16 %v1978, %v1976
      %v2231 = vpack.c.b16 %v1981, %v1979
      %v2232 = vpack.c.b16 %v1982, %v1980
      %v2233 = vpack.c.b16 %v1985, %v1983
      %v2234 = vpack.c.b16 %v1986, %v1984
      %v2235 = vpack.c.b16 %v1989, %v1987
      %v2236 = vpack.c.b16 %v1990, %v1988
      %v2237 = vpack.c.b16 %v1993, %v1991
      %v2238 = vpack.c.b16 %v1994, %v1992
      %v2239 = vpack.c.b16 %v1997, %v1995
      %v2240 = vpack.c.b16 %v1998, %v1996
      %v2241 = vpack.c.b16 %v2001, %v1999
      %v2242 = vpack.c.b16 %v2002, %v2000
      %v2243 = vpack.c.b16 %v2005, %v2003
      %v2244 = vpack.c.b16 %v2006, %v2004
      %v2245 = vpack.c.b16 %v2009, %v2007
      %v2246 = vpack.c.b16 %v2010, %v2008
      %v2247 = vpack.c.b16 %v2013, %v2011
      %v2248 = vpack.c.b16 %v2014, %v2012
      %v2249 = vpack.c.b16 %v2017, %v2015
      %v2250 = vpack.c.b16 %v2018, %v2016
      %v2251 = vpack.c.b16 %v2021, %v2019
      %v2252 = vpack.c.b16 %v2022, %v2020
      %v2253 = vpack.c.b16 %v2025, %v2023
      %v2254 = vpack.c.b16 %v2026, %v2024
      %v2255 = vpack.c.b16 %v2029, %v2027
      %v2256 = vpack.c.b16 %v2030, %v2028
      %v2257 = vpack.c.b16 %v2033, %v2031
      %v2258 = vpack.c.b16 %v2034, %v2032
      %v2259 = vpack.c.b16 %v2037, %v2035
      %v2260 = vpack.c.b16 %v2038, %v2036
      %v2261 = vpack.c.b16 %v2041, %v2039
      %v2262 = vpack.c.b16 %v2042, %v2040
      %v2263 = vpack.c.b16 %v2045, %v2043
      %v2264 = vpack.c.b16 %v2046, %v2044
      %v2265 = vpack.c.b16 %v2049, %v2047
      %v2266 = vpack.c.b16 %v2050, %v2048
      %v2267 = vpack.c.b16 %v2053, %v2051
      %v2268 = vpack.c.b16 %v2054, %v2052
      %v2269 = vpack.c.b16 %v2057, %v2055
      %v2270 = vpack.c.b16 %v2058, %v2056
      %v2271 = vpack.c.b16 %v2061, %v2059
      %v2272 = vpack.c.b16 %v2062, %v2060
      %v2273 = vpack.c.b16 %v2065, %v2063
      %v2274 = vpack.c.b16 %v2066, %v2064
      %v2275 = vpack.c.b16 %v2069, %v2067
      %v2276 = vpack.c.b16 %v2070, %v2068
      %v2277 = vpack.c.b16 %v2073, %v2071
      %v2278 = vpack.c.b16 %v2074, %v2072
      %v2279 = vpack.c.b16 %v2077, %v2075
      %v2280 = vpack.c.b16 %v2078, %v2076
      %v2281 = vpack.c.b16 %v2081, %v2079
      %v2282 = vpack.c.b16 %v2082, %v2080
      %v2283 = vpack.c.b16 %v2085, %v2083
      %v2284 = vpack.c.b16 %v2086, %v2084
      %v2285 = vpack.c.b16 %v2089, %v2087
      %v2286 = vpack.c.b16 %v2090, %v2088
      %v2287 = vpack.c.b16 %v2093, %v2091
      %v2288 = vpack.c.b16 %v2094, %v2092
      %v2289 = vpack.c.b16 %v2097, %v2095
      %v2290 = vpack.c.b16 %v2098, %v2096
      %v2291 = vpack.c.b16 %v2101, %v2099
      %v2292 = vpack.c.b16 %v2102, %v2100
      %v2293 = vpack.c.b16 %v2105, %v2103
      %v2294 = vpack.c.b16 %v2106, %v2104
      %v2295 = vpack.c.b16 %v2109, %v2107
      %v2296 = vpack.c.b16 %v2110, %v2108
      %v2297 = vpack.c.b16 %v2113, %v2111
      %v2298 = vpack.c.b16 %v2114, %v2112
      %v2299 = vpack.c.b16 %v2117, %v2115
      %v2300 = vpack.c.b16 %v2118, %v2116
      %v2301 = vpack.c.b16 %v2121, %v2119
      %v2302 = vpack.c.b16 %v2122, %v2120
      %v2303 = vpack.c.b16 %v2125, %v2123
      %v2304 = vpack.c.b16 %v2126, %v2124
      %v2305 = vpack.c.b16 %v2129, %v2127
      %v2306 = vpack.c.b16 %v2130, %v2128
      %v2307 = vpack.c.b16 %v2133, %v2131
      %v2308 = vpack.c.b16 %v2134, %v2132
      %v2309 = vpack.c.b16 %v2137, %v2135
      %v2310 = vpack.c.b16 %v2138, %v2136
      %v2311 = vpack.c.b16 %v2141, %v2139
      %v2312 = vpack.c.b16 %v2142, %v2140
      %v2313 = vpack.c.b16 %v2145, %v2143
      %v2314 = vpack.c.b16 %v2146, %v2144
      %v2315 = vpack.c.b16 %v2149, %v2147
      %v2316 = vpack.c.b16 %v2150, %v2148
      %v2317 = vpack.c.b16 %v2153, %v2151
      %v2318 = vpack.c.b16 %v2154, %v2152
      %v2319 = vpack.c.b16 %v2157, %v2155
      %v2320 = vpack.c.b16 %v2158, %v2156
      %v2321 = vpack.c.b16 %v2161, %v2159
      %v2322 = vpack.c.b16 %v2162, %v2160
      %v2323 = vpack.c.b16 %v2165, %v2163
      %v2324 = vpack.c.b16 %v2166, %v2164
      %v2325 = vpack.c.b16 %v2169, %v2167
      %v2326 = vpack.c.b16 %v2170, %v2168
      %v2327 = vpack.c.b16 %v2173, %v2171
      %v2328 = vpack.c.b16 %v2174, %v2172
      %v2329 = vpack.c.b16 %v2177, %v2175
      %v2330 = vpack.c.b16 %v2178, %v2176
      %v2331 = vpack.c.b16 %v2181, %v2179
      %v2332 = vpack.c.b16 %v2182, %v2180
      %v2333 = vpack.c.b16 %v2185, %v2183
      %v2334 = vpack.c.b16 %v2186, %v2184
      %v2335 = vpack.c.b16 %v2189, %v2187
      %v2336 = vpack.c.b16 %v2190, %v2188
      %v2337 = vpack.c.b16 %v2193, %v2191
      %v2338 = vpack.c.b16 %v2194, %v2192
      %v2339 = vpack.c.b16 %v2197, %v2195
      %v2340 = vpack.c.b16 %v2198, %v2196
      %v2341 = vpack.c.b16 %v2201, %v2199
      %v2342 = vpack.c.b16 %v2202, %v2200
      %v2343 = vpack.c.b16 %v2205, %v2203
      %v2344 = vpack.c.b16 %v2206, %v2204
      %v2345 = vpack.c.b16 %v2209, %v2207
      %v2346 = vpack.c.b16 %v2210, %v2208
      %v2347 = vpack.c.b16 %v2213, %v2211
      %v2348 = vpack.c.b16 %v2214, %v2212
      %v2349 = vpack.c.b16 %v2217, %v2215
      %v2350 = vpack.c.b16 %v2218, %v2216
      %v2351 = vpack.c.b16 %v2221, %v2219
      %v2352 = vpack.c.b16 %v2222, %v2220
      %v2353 = vpack.c.b16 %v2225, %v2223
      %v2354 = vpack.c.b16 %v2226, %v2224
      %2483 = vmatprep.subr.bf16.mxu0 %v2228
      %2484 = vmatpush1.bf16.msra.mxu0 %v2227
      %2485 = vmatprep.subr.bf16.mxu0 %v2230
      %2486 = vmatpush1.bf16.msra.mxu0 %v2229
      %2487 = vmatprep.subr.bf16.mxu0 %v2232
      %2488 = vmatpush1.bf16.msra.mxu0 %v2231
      %2489 = vmatprep.subr.bf16.mxu0 %v2234
      %2490 = vmatpush1.bf16.msra.mxu0 %v2233
      %2491 = vmatprep.subr.bf16.mxu0 %v2236
      %2492 = vmatpush1.bf16.msra.mxu0 %v2235
      %2493 = vmatprep.subr.bf16.mxu0 %v2238
      %2494 = vmatpush1.bf16.msra.mxu0 %v2237
      %2495 = vmatprep.subr.bf16.mxu0 %v2240
      %2496 = vmatpush1.bf16.msra.mxu0 %v2239
      %2497 = vmatprep.subr.bf16.mxu0 %v2242
      %2498 = vmatpush1.bf16.msra.mxu0 %v2241
      %2499 = vmatprep.subr.bf16.mxu0 %v2244
      %2500 = vmatpush1.bf16.msra.mxu0 %v2243
      %2501 = vmatprep.subr.bf16.mxu0 %v2246
      %2502 = vmatpush1.bf16.msra.mxu0 %v2245
      %2503 = vmatprep.subr.bf16.mxu0 %v2248
      %2504 = vmatpush1.bf16.msra.mxu0 %v2247
      %2505 = vmatprep.subr.bf16.mxu0 %v2250
      %2506 = vmatpush1.bf16.msra.mxu0 %v2249
      %2507 = vmatprep.subr.bf16.mxu0 %v2252
      %2508 = vmatpush1.bf16.msra.mxu0 %v2251
      %2509 = vmatprep.subr.bf16.mxu0 %v2254
      %2510 = vmatpush1.bf16.msra.mxu0 %v2253
      %2511 = vmatprep.subr.bf16.mxu0 %v2256
      %2512 = vmatpush1.bf16.msra.mxu0 %v2255
      %2513 = vmatprep.subr.bf16.mxu0 %v2258
      %2514 = vmatpush1.bf16.msra.mxu0 %v2257
      %2515 = vmatprep.mubr.bf16.mxu0 %v1708
      %2516 = vmatmul.mubr.bf16.gmra.mrb[0].mxu0 %v1707
      %v2517 = vpop.f32.mrb[0].mxu0
      %v2518 = vadd.f32 0.0, %v2517
      %v2519 = vpop.f32.mrb[0].mxu0
      %v2520 = vadd.f32 0.0, %v2519
      %v2521 = vpop.f32.mrb[0].mxu0
      %v2522 = vadd.f32 0.0, %v2521
      %v2523 = vpop.f32.mrb[0].mxu0
      %v2524 = vadd.f32 0.0, %v2523
      %2525 = vdwg.mxu0
      %2526 = vmatprep.subr.bf16.mxu0 %v2260
      %2527 = vmatpush1.bf16.msra.mxu0 %v2259
      %2528 = vmatprep.subr.bf16.mxu0 %v2262
      %2529 = vmatpush1.bf16.msra.mxu0 %v2261
      %2530 = vmatprep.subr.bf16.mxu0 %v2264
      %2531 = vmatpush1.bf16.msra.mxu0 %v2263
      %2532 = vmatprep.subr.bf16.mxu0 %v2266
      %2533 = vmatpush1.bf16.msra.mxu0 %v2265
      %2534 = vmatprep.subr.bf16.mxu0 %v2268
      %2535 = vmatpush1.bf16.msra.mxu0 %v2267
      %2536 = vmatprep.subr.bf16.mxu0 %v2270
      %2537 = vmatpush1.bf16.msra.mxu0 %v2269
      %2538 = vmatprep.subr.bf16.mxu0 %v2272
      %2539 = vmatpush1.bf16.msra.mxu0 %v2271
      %2540 = vmatprep.subr.bf16.mxu0 %v2274
      %2541 = vmatpush1.bf16.msra.mxu0 %v2273
      %2542 = vmatprep.subr.bf16.mxu0 %v2276
      %2543 = vmatpush1.bf16.msra.mxu0 %v2275
      %2544 = vmatprep.subr.bf16.mxu0 %v2278
      %2545 = vmatpush1.bf16.msra.mxu0 %v2277
      %2546 = vmatprep.subr.bf16.mxu0 %v2280
      %2547 = vmatpush1.bf16.msra.mxu0 %v2279
      %2548 = vmatprep.subr.bf16.mxu0 %v2282
      %2549 = vmatpush1.bf16.msra.mxu0 %v2281
      %2550 = vmatprep.subr.bf16.mxu0 %v2284
      %2551 = vmatpush1.bf16.msra.mxu0 %v2283
      %2552 = vmatprep.subr.bf16.mxu0 %v2286
      %2553 = vmatpush1.bf16.msra.mxu0 %v2285
      %2554 = vmatprep.subr.bf16.mxu0 %v2288
      %2555 = vmatpush1.bf16.msra.mxu0 %v2287
      %2556 = vmatprep.subr.bf16.mxu0 %v2290
      %2557 = vmatpush1.bf16.msra.mxu0 %v2289
      %2558 = vmatprep.mubr.bf16.mxu0 %v1710
      %2559 = vmatmul.mubr.bf16.gmra.mrb[0].mxu0 %v1709
      %v2560 = vpop.f32.mrb[0].mxu0
      %v2561 = vadd.f32 %v2518, %v2560
      %v2562 = vpop.f32.mrb[0].mxu0
      %v2563 = vadd.f32 %v2520, %v2562
      %v2564 = vpop.f32.mrb[0].mxu0
      %v2565 = vadd.f32 %v2522, %v2564
      %v2566 = vpop.f32.mrb[0].mxu0
      %v2567 = vadd.f32 %v2524, %v2566
      %2568 = vdwg.mxu0
      %2569 = vmatprep.subr.bf16.mxu0 %v2292
      %2570 = vmatpush1.bf16.msra.mxu0 %v2291
      %2571 = vmatprep.subr.bf16.mxu0 %v2294
      %2572 = vmatpush1.bf16.msra.mxu0 %v2293
      %2573 = vmatprep.subr.bf16.mxu0 %v2296
      %2574 = vmatpush1.bf16.msra.mxu0 %v2295
      %2575 = vmatprep.subr.bf16.mxu0 %v2298
      %2576 = vmatpush1.bf16.msra.mxu0 %v2297
      %2577 = vmatprep.subr.bf16.mxu0 %v2300
      %2578 = vmatpush1.bf16.msra.mxu0 %v2299
      %2579 = vmatprep.subr.bf16.mxu0 %v2302
      %2580 = vmatpush1.bf16.msra.mxu0 %v2301
      %2581 = vmatprep.subr.bf16.mxu0 %v2304
      %2582 = vmatpush1.bf16.msra.mxu0 %v2303
      %2583 = vmatprep.subr.bf16.mxu0 %v2306
      %2584 = vmatpush1.bf16.msra.mxu0 %v2305
      %2585 = vmatprep.subr.bf16.mxu0 %v2308
      %2586 = vmatpush1.bf16.msra.mxu0 %v2307
      %2587 = vmatprep.subr.bf16.mxu0 %v2310
      %2588 = vmatpush1.bf16.msra.mxu0 %v2309
      %2589 = vmatprep.subr.bf16.mxu0 %v2312
      %2590 = vmatpush1.bf16.msra.mxu0 %v2311
      %2591 = vmatprep.subr.bf16.mxu0 %v2314
      %2592 = vmatpush1.bf16.msra.mxu0 %v2313
      %2593 = vmatprep.subr.bf16.mxu0 %v2316
      %2594 = vmatpush1.bf16.msra.mxu0 %v2315
      %2595 = vmatprep.subr.bf16.mxu0 %v2318
      %2596 = vmatpush1.bf16.msra.mxu0 %v2317
      %2597 = vmatprep.subr.bf16.mxu0 %v2320
      %2598 = vmatpush1.bf16.msra.mxu0 %v2319
      %2599 = vmatprep.subr.bf16.mxu0 %v2322
      %2600 = vmatpush1.bf16.msra.mxu0 %v2321
      %2601 = vmatprep.mubr.bf16.mxu0 %v1712
      %2602 = vmatmul.mubr.bf16.gmra.mrb[0].mxu0 %v1711
      %v2603 = vpop.f32.mrb[0].mxu0
      %v2604 = vadd.f32 %v2561, %v2603
      %v2605 = vpop.f32.mrb[0].mxu0
      %v2606 = vadd.f32 %v2563, %v2605
      %v2607 = vpop.f32.mrb[0].mxu0
      %v2608 = vadd.f32 %v2565, %v2607
      %v2609 = vpop.f32.mrb[0].mxu0
      %v2610 = vadd.f32 %v2567, %v2609
      %2611 = vdwg.mxu0
      %2612 = vmatprep.subr.bf16.mxu0 %v2324
      %2613 = vmatpush1.bf16.msra.mxu0 %v2323
      %2614 = vmatprep.subr.bf16.mxu0 %v2326
      %2615 = vmatpush1.bf16.msra.mxu0 %v2325
      %2616 = vmatprep.subr.bf16.mxu0 %v2328
      %2617 = vmatpush1.bf16.msra.mxu0 %v2327
      %2618 = vmatprep.subr.bf16.mxu0 %v2330
      %2619 = vmatpush1.bf16.msra.mxu0 %v2329
      %2620 = vmatprep.subr.bf16.mxu0 %v2332
      %2621 = vmatpush1.bf16.msra.mxu0 %v2331
      %2622 = vmatprep.subr.bf16.mxu0 %v2334
      %2623 = vmatpush1.bf16.msra.mxu0 %v2333
      %2624 = vmatprep.subr.bf16.mxu0 %v2336
      %2625 = vmatpush1.bf16.msra.mxu0 %v2335
      %2626 = vmatprep.subr.bf16.mxu0 %v2338
      %2627 = vmatpush1.bf16.msra.mxu0 %v2337
      %2628 = vmatprep.subr.bf16.mxu0 %v2340
      %2629 = vmatpush1.bf16.msra.mxu0 %v2339
      %2630 = vmatprep.subr.bf16.mxu0 %v2342
      %2631 = vmatpush1.bf16.msra.mxu0 %v2341
      %2632 = vmatprep.subr.bf16.mxu0 %v2344
      %2633 = vmatpush1.bf16.msra.mxu0 %v2343
      %2634 = vmatprep.subr.bf16.mxu0 %v2346
      %2635 = vmatpush1.bf16.msra.mxu0 %v2345
      %2636 = vmatprep.subr.bf16.mxu0 %v2348
      %2637 = vmatpush1.bf16.msra.mxu0 %v2347
      %2638 = vmatprep.subr.bf16.mxu0 %v2350
      %2639 = vmatpush1.bf16.msra.mxu0 %v2349
      %2640 = vmatprep.subr.bf16.mxu0 %v2352
      %2641 = vmatpush1.bf16.msra.mxu0 %v2351
      %2642 = vmatprep.subr.bf16.mxu0 %v2354
      %2643 = vmatpush1.bf16.msra.mxu0 %v2353
      %2644 = vmatprep.mubr.bf16.mxu0 %v1714
      %2645 = vmatmul.mubr.bf16.gmra.mrb[0].mxu0 %v1713
      %v2646 = vpop.f32.mrb[0].mxu0
      %v2647 = vadd.f32 %v2604, %v2646
      %v2648 = vpop.f32.mrb[0].mxu0
      %v2649 = vadd.f32 %v2606, %v2648
      %v2650 = vpop.f32.mrb[0].mxu0
      %v2651 = vadd.f32 %v2608, %v2650
      %v2652 = vpop.f32.mrb[0].mxu0
      %v2653 = vadd.f32 %v2610, %v2652
      %2654 = vdwg.mxu0
      %2655 = vrot.lane.b32.xlu0 %v2647, 17
      %v2656 = vpop.permute.xlu0 %2655
      %2657 = vrot.lane.b32.xlu0 %v2651, 17
      %v2658 = vpop.permute.xlu0 %2657
      %2659 = vrot.lane.b32.xlu0 %v2649, 17
      %v2660 = vpop.permute.xlu0 %2659
      %2661 = vrot.lane.b32.xlu0 %v2653, 17
      %v2662 = vpop.permute.xlu0 %2661
      %vm2663 = vcmp.lt.s32.totalorder %v552, 17
      %v2664 = vsel %vm2663, %v2656, %v2660
      %v2665 = vsel %vm2663, %v2658, %v2662
      %v2666 = vsel %vm2663, %v2660, %v2656
      %v2667 = vsel %vm2663, %v2662, %v2658
      %v2668 = vld [vmem:[%s9] sm:$0x3]
      %v2670 = vlaneseq
      %v2671 = vshrl.u32 %v2670, 7
      %v2672 = vsub.s32 0, %v2671
      %v2673 = vrot.slane %v2668, %v2672
      %v2674 = vlaneseq
      %v2675 = vshrl.u32 %v2674, 7
      %v2676 = vsub.s32 1, %v2675
      %v2677 = vrot.slane %v2668, %v2676
      %v2680 = vmul.f32 %v2666, %v2673
      %v2681 = vmul.f32 %v2664, %v2677
      %v2682 = vmul.f32 %v2667, %v2673
      %v2683 = vmul.f32 %v2665, %v2677
      %2684 = vrot.lane.b32.xlu0 %v2647, 16
      %v2685 = vpop.permute.xlu0 %2684
      %2686 = vrot.lane.b32.xlu0 %v2651, 16
      %v2687 = vpop.permute.xlu0 %2686
      %2688 = vrot.lane.b32.xlu0 %v2649, 16
      %v2689 = vpop.permute.xlu0 %2688
      %2690 = vrot.lane.b32.xlu0 %v2653, 16
      %v2691 = vpop.permute.xlu0 %2690
      %vm2692 = vcmp.lt.s32.totalorder %v552, 16
      %v2693 = vsel %vm2692, %v2685, %v2689
      %v2694 = vsel %vm2692, %v2687, %v2691
      %v2695 = vsel %vm2692, %v2689, %v2685
      %v2696 = vsel %vm2692, %v2691, %v2687
      %s2697 = scalar_lea.vmem %s9, 2
      %v2698 = vld [vmem:[%s2697] sm:$0x3]
      %v2700 = vlaneseq
      %v2701 = vshrl.u32 %v2700, 7
      %v2702 = vsub.s32 0, %v2701
      %v2703 = vrot.slane %v2698, %v2702
      %v2704 = vlaneseq
      %v2705 = vshrl.u32 %v2704, 7
      %v2706 = vsub.s32 1, %v2705
      %v2707 = vrot.slane %v2698, %v2706
      %v2710 = vmul.f32 %v2695, %v2703
      %v2711 = vmul.f32 %v2693, %v2707
      %v2712 = vmul.f32 %v2696, %v2703
      %v2713 = vmul.f32 %v2694, %v2707
      %2714 = vrot.lane.b32.xlu0 %v2647, 15
      %v2715 = vpop.permute.xlu0 %2714
      %2716 = vrot.lane.b32.xlu0 %v2651, 15
      %v2717 = vpop.permute.xlu0 %2716
      %2718 = vrot.lane.b32.xlu0 %v2649, 15
      %v2719 = vpop.permute.xlu0 %2718
      %2720 = vrot.lane.b32.xlu0 %v2653, 15
      %v2721 = vpop.permute.xlu0 %2720
      %vm2722 = vcmp.lt.s32.totalorder %v552, 15
      %v2723 = vsel %vm2722, %v2715, %v2719
      %v2724 = vsel %vm2722, %v2717, %v2721
      %v2725 = vsel %vm2722, %v2719, %v2715
      %v2726 = vsel %vm2722, %v2721, %v2717
      %s2727 = scalar_lea.vmem %s9, 4
      %v2728 = vld [vmem:[%s2727] sm:$0x3]
      %v2730 = vlaneseq
      %v2731 = vshrl.u32 %v2730, 7
      %v2732 = vsub.s32 0, %v2731
      %v2733 = vrot.slane %v2728, %v2732
      %v2734 = vlaneseq
      %v2735 = vshrl.u32 %v2734, 7
      %v2736 = vsub.s32 1, %v2735
      %v2737 = vrot.slane %v2728, %v2736
      %v2740 = vmul.f32 %v2725, %v2733
      %v2741 = vmul.f32 %v2723, %v2737
      %v2742 = vmul.f32 %v2726, %v2733
      %v2743 = vmul.f32 %v2724, %v2737
      %2744 = vrot.lane.b32.xlu0 %v2647, 1
      %v2745 = vpop.permute.xlu0 %2744
      %2746 = vrot.lane.b32.xlu0 %v2651, 1
      %v2747 = vpop.permute.xlu0 %2746
      %2748 = vrot.lane.b32.xlu0 %v2649, 1
      %v2749 = vpop.permute.xlu0 %2748
      %2750 = vrot.lane.b32.xlu0 %v2653, 1
      %v2751 = vpop.permute.xlu0 %2750
      %v2752 = vsel %vm780, %v2745, %v2749
      %v2753 = vsel %vm780, %v2747, %v2751
      %v2754 = vsel %vm780, %v2749, %v2745
      %v2755 = vsel %vm780, %v2751, %v2747
      %s2756 = scalar_lea.vmem %s9, 6
      %v2757 = vld [vmem:[%s2756] sm:$0x3]
      %v2759 = vlaneseq
      %v2760 = vshrl.u32 %v2759, 7
      %v2761 = vsub.s32 0, %v2760
      %v2762 = vrot.slane %v2757, %v2761
      %v2763 = vlaneseq
      %v2764 = vshrl.u32 %v2763, 7
      %v2765 = vsub.s32 1, %v2764
      %v2766 = vrot.slane %v2757, %v2765
      %v2769 = vmul.f32 %v2754, %v2762
      %v2770 = vmul.f32 %v2752, %v2766
      %v2771 = vmul.f32 %v2755, %v2762
      %v2772 = vmul.f32 %v2753, %v2766
      %s2773 = scalar_lea.vmem %s9, 8
      %v2774 = vld [vmem:[%s2773] sm:$0x3]
      %v2776 = vlaneseq
      %v2777 = vshrl.u32 %v2776, 7
      %v2778 = vsub.s32 0, %v2777
      %v2779 = vrot.slane %v2774, %v2778
      %v2780 = vlaneseq
      %v2781 = vshrl.u32 %v2780, 7
      %v2782 = vsub.s32 1, %v2781
      %v2783 = vrot.slane %v2774, %v2782
      %v2786 = vmul.f32 %v2647, %v2779
      %v2787 = vmul.f32 %v2649, %v2783
      %v2788 = vmul.f32 %v2651, %v2779
      %v2789 = vmul.f32 %v2653, %v2783
      %2790 = vrot.lane.b32.xlu0 %v2647, 127
      %v2791 = vpop.permute.xlu0 %2790
      %2792 = vrot.lane.b32.xlu0 %v2651, 127
      %v2793 = vpop.permute.xlu0 %2792
      %2794 = vrot.lane.b32.xlu0 %v2649, 127
      %v2795 = vpop.permute.xlu0 %2794
      %2796 = vrot.lane.b32.xlu0 %v2653, 127
      %v2797 = vpop.permute.xlu0 %2796
      %v2798 = vsel %vm907, %v2791, %v2795
      %v2799 = vsel %vm907, %v2793, %v2797
      %v2800 = vsel %vm907, %v2795, %v2791
      %v2801 = vsel %vm907, %v2797, %v2793
      %s2802 = scalar_lea.vmem %s9, 10
      %v2803 = vld [vmem:[%s2802] sm:$0x3]
      %v2805 = vlaneseq
      %v2806 = vshrl.u32 %v2805, 7
      %v2807 = vsub.s32 0, %v2806
      %v2808 = vrot.slane %v2803, %v2807
      %v2809 = vlaneseq
      %v2810 = vshrl.u32 %v2809, 7
      %v2811 = vsub.s32 1, %v2810
      %v2812 = vrot.slane %v2803, %v2811
      %v2815 = vmul.f32 %v2798, %v2808
      %v2816 = vmul.f32 %v2800, %v2812
      %v2817 = vmul.f32 %v2799, %v2808
      %v2818 = vmul.f32 %v2801, %v2812
      %2819 = vrot.lane.b32.xlu0 %v2647, 113
      %v2820 = vpop.permute.xlu0 %2819
      %2821 = vrot.lane.b32.xlu0 %v2651, 113
      %v2822 = vpop.permute.xlu0 %2821
      %2823 = vrot.lane.b32.xlu0 %v2649, 113
      %v2824 = vpop.permute.xlu0 %2823
      %2825 = vrot.lane.b32.xlu0 %v2653, 113
      %v2826 = vpop.permute.xlu0 %2825
      %vm2827 = vcmp.lt.s32.totalorder %v552, 113
      %v2828 = vsel %vm2827, %v2820, %v2824
      %v2829 = vsel %vm2827, %v2822, %v2826
      %v2830 = vsel %vm2827, %v2824, %v2820
      %v2831 = vsel %vm2827, %v2826, %v2822
      %s2832 = scalar_lea.vmem %s9, 12
      %v2833 = vld [vmem:[%s2832] sm:$0x3]
      %v2835 = vlaneseq
      %v2836 = vshrl.u32 %v2835, 7
      %v2837 = vsub.s32 0, %v2836
      %v2838 = vrot.slane %v2833, %v2837
      %v2839 = vlaneseq
      %v2840 = vshrl.u32 %v2839, 7
      %v2841 = vsub.s32 1, %v2840
      %v2842 = vrot.slane %v2833, %v2841
      %v2845 = vmul.f32 %v2828, %v2838
      %v2846 = vmul.f32 %v2830, %v2842
      %v2847 = vmul.f32 %v2829, %v2838
      %v2848 = vmul.f32 %v2831, %v2842
      %2849 = vrot.lane.b32.xlu0 %v2647, 112
      %v2850 = vpop.permute.xlu0 %2849
      %2851 = vrot.lane.b32.xlu0 %v2651, 112
      %v2852 = vpop.permute.xlu0 %2851
      %2853 = vrot.lane.b32.xlu0 %v2649, 112
      %v2854 = vpop.permute.xlu0 %2853
      %2855 = vrot.lane.b32.xlu0 %v2653, 112
      %v2856 = vpop.permute.xlu0 %2855
      %vm2857 = vcmp.lt.s32.totalorder %v552, 112
      %v2858 = vsel %vm2857, %v2850, %v2854
      %v2859 = vsel %vm2857, %v2852, %v2856
      %v2860 = vsel %vm2857, %v2854, %v2850
      %v2861 = vsel %vm2857, %v2856, %v2852
      %s2862 = scalar_lea.vmem %s9, 14
      %v2863 = vld [vmem:[%s2862] sm:$0x3]
      %v2865 = vlaneseq
      %v2866 = vshrl.u32 %v2865, 7
      %v2867 = vsub.s32 0, %v2866
      %v2868 = vrot.slane %v2863, %v2867
      %v2869 = vlaneseq
      %v2870 = vshrl.u32 %v2869, 7
      %v2871 = vsub.s32 1, %v2870
      %v2872 = vrot.slane %v2863, %v2871
      %v2875 = vmul.f32 %v2858, %v2868
      %v2876 = vmul.f32 %v2860, %v2872
      %v2877 = vmul.f32 %v2859, %v2868
      %v2878 = vmul.f32 %v2861, %v2872
      %2879 = vrot.lane.b32.xlu0 %v2647, 111
      %v2880 = vpop.permute.xlu0 %2879
      %2881 = vrot.lane.b32.xlu0 %v2651, 111
      %v2882 = vpop.permute.xlu0 %2881
      %2883 = vrot.lane.b32.xlu0 %v2649, 111
      %v2884 = vpop.permute.xlu0 %2883
      %2885 = vrot.lane.b32.xlu0 %v2653, 111
      %v2886 = vpop.permute.xlu0 %2885
      %vm2887 = vcmp.lt.s32.totalorder %v552, 111
      %v2888 = vsel %vm2887, %v2880, %v2884
      %v2889 = vsel %vm2887, %v2882, %v2886
      %v2890 = vsel %vm2887, %v2884, %v2880
      %v2891 = vsel %vm2887, %v2886, %v2882
      %s2892 = scalar_lea.vmem %s9, 16
      %v2893 = vld [vmem:[%s2892] sm:$0x3]
      %v2895 = vlaneseq
      %v2896 = vshrl.u32 %v2895, 7
      %v2897 = vsub.s32 0, %v2896
      %v2898 = vrot.slane %v2893, %v2897
      %v2899 = vlaneseq
      %v2900 = vshrl.u32 %v2899, 7
      %v2901 = vsub.s32 1, %v2900
      %v2902 = vrot.slane %v2893, %v2901
      %v2905 = vmul.f32 %v2888, %v2898
      %v2906 = vmul.f32 %v2890, %v2902
      %v2907 = vmul.f32 %v2889, %v2898
      %v2908 = vmul.f32 %v2891, %v2902
      %v2909 = vpack.c.bf16 %v2682, %v2680
      %v2910 = vpack.c.bf16 %v2683, %v2681
      %v2911 = vpack.c.bf16 %v2712, %v2710
      %v2912 = vpack.c.bf16 %v2713, %v2711
      %v2913 = vpack.c.bf16 %v2742, %v2740
      %v2914 = vpack.c.bf16 %v2743, %v2741
      %v2915 = vpack.c.bf16 %v2771, %v2769
      %v2916 = vpack.c.bf16 %v2772, %v2770
      %v2917 = vpack.c.bf16 %v2788, %v2786
      %v2918 = vpack.c.bf16 %v2789, %v2787
      %v2919 = vpack.c.bf16 %v2817, %v2815
      %v2920 = vpack.c.bf16 %v2818, %v2816
      %v2921 = vpack.c.bf16 %v2847, %v2845
      %v2922 = vpack.c.bf16 %v2848, %v2846
      %v2923 = vpack.c.bf16 %v2877, %v2875
      %v2924 = vpack.c.bf16 %v2878, %v2876
      %v2925 = vpack.c.bf16 %v2907, %v2905
      %v2926 = vpack.c.bf16 %v2908, %v2906
      %v2927 = vld [vmem:[%s6] sm:$0xff]
      %v2928 = vld [vmem:[%s6 + $0x8] sm:$0xff]
      %v2929 = vld [vmem:[%s6 + $0x10] sm:$0xff]
      %v2930 = vld [vmem:[%s6 + $0x18] sm:$0xff]
      %v2935 = vunpack.c.l.b16 %v2927
      %v2936 = vunpack.c.h.b16 %v2927
      %v2937 = vunpack.c.l.b16 %v2928
      %v2938 = vunpack.c.h.b16 %v2928
      %v2939 = vunpack.c.l.b16 %v2929
      %v2940 = vunpack.c.h.b16 %v2929
      %v2941 = vunpack.c.l.b16 %v2930
      %v2942 = vunpack.c.h.b16 %v2930
      %v2943 = vpack.c.b16 %v2937, %v2935
      %v2944 = vpack.c.b16 %v2938, %v2936
      %v2945 = vpack.c.b16 %v2941, %v2939
      %v2946 = vpack.c.b16 %v2942, %v2940
      %vm2949 = vcmask 130048
      %v2951 = vsel %vm2949, %v2944, 0
      %v2954 = vsel %vm2949, %v2946, 0
      %2956 = vmatprep.subr.bf16.mxu0 %v2910
      %2957 = vmatpush1.bf16.msra.mxu0 %v2909
      %2958 = vmatprep.subr.bf16.mxu0 %v2912
      %2959 = vmatpush1.bf16.msra.mxu0 %v2911
      %2960 = vmatprep.subr.bf16.mxu0 %v2914
      %2961 = vmatpush1.bf16.msra.mxu0 %v2913
      %2962 = vmatprep.subr.bf16.mxu0 %v2916
      %2963 = vmatpush1.bf16.msra.mxu0 %v2915
      %2964 = vmatprep.subr.bf16.mxu0 %v2918
      %2965 = vmatpush1.bf16.msra.mxu0 %v2917
      %2966 = vmatprep.subr.bf16.mxu0 %v2920
      %2967 = vmatpush1.bf16.msra.mxu0 %v2919
      %2968 = vmatprep.subr.bf16.mxu0 %v2922
      %2969 = vmatpush1.bf16.msra.mxu0 %v2921
      %2970 = vmatprep.subr.bf16.mxu0 %v2924
      %2971 = vmatpush1.bf16.msra.mxu0 %v2923
      %2972 = vmatprep.subr.bf16.mxu0 %v2926
      %2973 = vmatpush1.bf16.msra.mxu0 %v2925
      %2974 = vmatprep.subr.bf16.mxu0 0
      %2975 = vmatpush1.bf16.msra.mxu0 0
      %2976 = vmatprep.subr.bf16.mxu0 0
      %2977 = vmatpush1.bf16.msra.mxu0 0
      %2978 = vmatprep.subr.bf16.mxu0 0
      %2979 = vmatpush1.bf16.msra.mxu0 0
      %2980 = vmatprep.subr.bf16.mxu0 0
      %2981 = vmatpush1.bf16.msra.mxu0 0
      %2982 = vmatprep.subr.bf16.mxu0 0
      %2983 = vmatpush1.bf16.msra.mxu0 0
      %2984 = vmatprep.subr.bf16.mxu0 0
      %2985 = vmatpush1.bf16.msra.mxu0 0
      %2986 = vmatprep.subr.bf16.mxu0 0
      %2987 = vmatpush1.bf16.msra.mxu0 0
      %2988 = vmatprep.mubr.bf16.mxu0 %v2951
      %2989 = vmatmul.mubr.bf16.gmra.mrb[0].mxu0 %v2943
      %v2990 = vpop.f32.mrb[0].mxu0
      %v2991 = vadd.f32 0.0, %v2990
      %v2992 = vpop.f32.mrb[0].mxu0
      %v2993 = vadd.f32 0.0, %v2992
      %v2994 = vpop.f32.mrb[0].mxu0
      %v2995 = vadd.f32 0.0, %v2994
      %v2996 = vpop.f32.mrb[0].mxu0
      %v2997 = vadd.f32 0.0, %v2996
      %2998 = vmatprep.mubr.bf16.mxu0 %v2954
      %2999 = vmatmul.mubr.bf16.gmra.mrb[0].mxu0 %v2945
      %v3000 = vpop.f32.mrb[0].mxu0
      %v3001 = vadd.f32 0.0, %v3000
      %v3002 = vpop.f32.mrb[0].mxu0
      %v3003 = vadd.f32 0.0, %v3002
      %v3004 = vpop.f32.mrb[0].mxu0
      %v3005 = vadd.f32 0.0, %v3004
      %v3006 = vpop.f32.mrb[0].mxu0
      %v3007 = vadd.f32 0.0, %v3006
      %3008 = vdwg.mxu0
      %v3009 = vld [vmem:[%s7] sm:$0xff]
      %v3010 = vld [vmem:[%s7 + $0x8] sm:$0xff]
      %v3011 = vld [vmem:[%s7 + $0x10] sm:$0xff]
      %v3012 = vld [vmem:[%s7 + $0x18] sm:$0xff]
      %3014 = vset.pattern.permute.xlu0 0
      %3015 = vperm.xlu0 %3014, %v3009
      %v3016 = vpop.permute.xlu0 %3015
      %3019 = vset.pattern.permute.xlu0 0
      %3020 = vperm.xlu0 %3019, %v3010
      %v3021 = vpop.permute.xlu0 %3020
      %3024 = vset.pattern.permute.xlu0 0
      %3025 = vperm.xlu0 %3024, %v3011
      %v3026 = vpop.permute.xlu0 %3025
      %3029 = vset.pattern.permute.xlu0 0
      %3030 = vperm.xlu0 %3029, %v3012
      %v3031 = vpop.permute.xlu0 %3030
      %v3033 = vmul.f32 %v2991, %v3016
      %v3034 = vmul.f32 %v2993, %v3016
      %v3035 = vmul.f32 %v2995, %v3021
      %v3036 = vmul.f32 %v2997, %v3021
      %v3037 = vmul.f32 %v3001, %v3026
      %v3038 = vmul.f32 %v3003, %v3026
      %v3039 = vmul.f32 %v3005, %v3031
      %v3040 = vmul.f32 %v3007, %v3031
      %v3041 = vld [vmem:[%s8] sm:$0xff]
      %v3042 = vld [vmem:[%s8 + $0x8] sm:$0xff]
      %v3043 = vld [vmem:[%s8 + $0x10] sm:$0xff]
      %v3044 = vld [vmem:[%s8 + $0x18] sm:$0xff]
      %3046 = vset.pattern.permute.xlu0 0
      %3047 = vperm.xlu0 %3046, %v3041
      %v3048 = vpop.permute.xlu0 %3047
      %3051 = vset.pattern.permute.xlu0 0
      %3052 = vperm.xlu0 %3051, %v3042
      %v3053 = vpop.permute.xlu0 %3052
      %3056 = vset.pattern.permute.xlu0 0
      %3057 = vperm.xlu0 %3056, %v3043
      %v3058 = vpop.permute.xlu0 %3057
      %3061 = vset.pattern.permute.xlu0 0
      %3062 = vperm.xlu0 %3061, %v3044
      %v3063 = vpop.permute.xlu0 %3062
      %v3065 = vadd.f32 %v3033, %v3048
      %v3066 = vadd.f32 %v3034, %v3048
      %v3067 = vadd.f32 %v3035, %v3053
      %v3068 = vadd.f32 %v3036, %v3053
      %v3069 = vadd.f32 %v3037, %v3058
      %v3070 = vadd.f32 %v3038, %v3058
      %v3071 = vadd.f32 %v3039, %v3063
      %v3072 = vadd.f32 %v3040, %v3063
      %v3073 = vmax.f32 %v3065, 0.0
      %v3074 = vmax.f32 %v3066, 0.0
      %v3075 = vmax.f32 %v3067, 0.0
      %v3076 = vmax.f32 %v3068, 0.0
      %v3077 = vmax.f32 %v3069, 0.0
      %v3078 = vmax.f32 %v3070, 0.0
      %v3079 = vmax.f32 %v3071, 0.0
      %v3080 = vmax.f32 %v3072, 0.0
      %3081 = vrot.lane.b32.xlu0 %v3073, 127
      %v3082 = vpop.permute.xlu0 %3081
      %3083 = vrot.lane.b32.xlu0 %v3075, 127
      %v3084 = vpop.permute.xlu0 %3083
      %3085 = vrot.lane.b32.xlu0 %v3077, 127
      %v3086 = vpop.permute.xlu0 %3085
      %3087 = vrot.lane.b32.xlu0 %v3079, 127
      %v3088 = vpop.permute.xlu0 %3087
      %3089 = vrot.lane.b32.xlu0 %v3074, 127
      %v3090 = vpop.permute.xlu0 %3089
      %3091 = vrot.lane.b32.xlu0 %v3076, 127
      %v3092 = vpop.permute.xlu0 %3091
      %3093 = vrot.lane.b32.xlu0 %v3078, 127
      %v3094 = vpop.permute.xlu0 %3093
      %3095 = vrot.lane.b32.xlu0 %v3080, 127
      %v3096 = vpop.permute.xlu0 %3095
      %v3097 = vsel %vm907, %v3082, %v3090
      %v3098 = vsel %vm907, %v3084, %v3092
      %v3099 = vsel %vm907, %v3086, %v3094
      %v3100 = vsel %vm907, %v3088, %v3096
      %v3101 = vsel %vm907, %v3090, %v3082
      %v3102 = vsel %vm907, %v3092, %v3084
      %v3103 = vsel %vm907, %v3094, %v3086
      %v3104 = vsel %vm907, %v3096, %v3088
      %v3105 = vmax.f32 %v3073, %v3097
      %v3106 = vmax.f32 %v3074, %v3101
      %v3107 = vmax.f32 %v3075, %v3098
      %v3108 = vmax.f32 %v3076, %v3102
      %v3109 = vmax.f32 %v3077, %v3099
      %v3110 = vmax.f32 %v3078, %v3103
      %v3111 = vmax.f32 %v3079, %v3100
      %v3112 = vmax.f32 %v3080, %v3104
      %3113 = vrot.lane.b32.xlu0 %v3073, 112
      %v3114 = vpop.permute.xlu0 %3113
      %3115 = vrot.lane.b32.xlu0 %v3075, 112
      %v3116 = vpop.permute.xlu0 %3115
      %3117 = vrot.lane.b32.xlu0 %v3077, 112
      %v3118 = vpop.permute.xlu0 %3117
      %3119 = vrot.lane.b32.xlu0 %v3079, 112
      %v3120 = vpop.permute.xlu0 %3119
      %3121 = vrot.lane.b32.xlu0 %v3074, 112
      %v3122 = vpop.permute.xlu0 %3121
      %3123 = vrot.lane.b32.xlu0 %v3076, 112
      %v3124 = vpop.permute.xlu0 %3123
      %3125 = vrot.lane.b32.xlu0 %v3078, 112
      %v3126 = vpop.permute.xlu0 %3125
      %3127 = vrot.lane.b32.xlu0 %v3080, 112
      %v3128 = vpop.permute.xlu0 %3127
      %v3129 = vsel %vm2857, %v3114, %v3122
      %v3130 = vsel %vm2857, %v3116, %v3124
      %v3131 = vsel %vm2857, %v3118, %v3126
      %v3132 = vsel %vm2857, %v3120, %v3128
      %v3133 = vsel %vm2857, %v3122, %v3114
      %v3134 = vsel %vm2857, %v3124, %v3116
      %v3135 = vsel %vm2857, %v3126, %v3118
      %v3136 = vsel %vm2857, %v3128, %v3120
      %v3137 = vmax.f32 %v3105, %v3129
      %v3138 = vmax.f32 %v3106, %v3133
      %v3139 = vmax.f32 %v3107, %v3130
      %v3140 = vmax.f32 %v3108, %v3134
      %v3141 = vmax.f32 %v3109, %v3131
      %v3142 = vmax.f32 %v3110, %v3135
      %v3143 = vmax.f32 %v3111, %v3132
      %v3144 = vmax.f32 %v3112, %v3136
      %3145 = vrot.lane.b32.xlu0 %v3073, 111
      %v3146 = vpop.permute.xlu0 %3145
      %3147 = vrot.lane.b32.xlu0 %v3075, 111
      %v3148 = vpop.permute.xlu0 %3147
      %3149 = vrot.lane.b32.xlu0 %v3077, 111
      %v3150 = vpop.permute.xlu0 %3149
      %3151 = vrot.lane.b32.xlu0 %v3079, 111
      %v3152 = vpop.permute.xlu0 %3151
      %3153 = vrot.lane.b32.xlu0 %v3074, 111
      %v3154 = vpop.permute.xlu0 %3153
      %3155 = vrot.lane.b32.xlu0 %v3076, 111
      %v3156 = vpop.permute.xlu0 %3155
      %3157 = vrot.lane.b32.xlu0 %v3078, 111
      %v3158 = vpop.permute.xlu0 %3157
      %3159 = vrot.lane.b32.xlu0 %v3080, 111
      %v3160 = vpop.permute.xlu0 %3159
      %v3161 = vsel %vm2887, %v3146, %v3154
      %v3162 = vsel %vm2887, %v3148, %v3156
      %v3163 = vsel %vm2887, %v3150, %v3158
      %v3164 = vsel %vm2887, %v3152, %v3160
      %v3165 = vsel %vm2887, %v3154, %v3146
      %v3166 = vsel %vm2887, %v3156, %v3148
      %v3167 = vsel %vm2887, %v3158, %v3150
      %v3168 = vsel %vm2887, %v3160, %v3152
      %v3169 = vmax.f32 %v3137, %v3161
      %v3170 = vmax.f32 %v3138, %v3165
      %v3171 = vmax.f32 %v3139, %v3162
      %v3172 = vmax.f32 %v3140, %v3166
      %v3173 = vmax.f32 %v3141, %v3163
      %v3174 = vmax.f32 %v3142, %v3167
      %v3175 = vmax.f32 %v3143, %v3164
      %v3176 = vmax.f32 %v3144, %v3168
      %v3177 = vpack.c.bf16 %v3171, %v3169
      %v3178 = vpack.c.bf16 %v3172, %v3170
      %v3179 = vpack.c.bf16 %v3175, %v3173
      %v3180 = vpack.c.bf16 %v3176, %v3174
      %v3181 = vld [vmem:[%s10] sm:$0xf]
      %v3182 = vld [vmem:[%s10 + $0x4] sm:$0xf]
      %v3183 = vld [vmem:[%s10 + $0x8] sm:$0xf]
      %v3184 = vld [vmem:[%s10 + $0xc] sm:$0xf]
      %v3185 = vld [vmem:[%s10 + $0x10] sm:$0xf]
      %v3186 = vld [vmem:[%s10 + $0x14] sm:$0xf]
      %v3187 = vld [vmem:[%s10 + $0x18] sm:$0xf]
      %v3188 = vld [vmem:[%s10 + $0x1c] sm:$0xf]
      %v3189 = vld [vmem:[%s10 + $0x20] sm:$0xf]
      %v3190 = vld [vmem:[%s10 + $0x24] sm:$0xf]
      %v3191 = vld [vmem:[%s10 + $0x28] sm:$0xf]
      %v3192 = vld [vmem:[%s10 + $0x2c] sm:$0xf]
      %v3193 = vld [vmem:[%s10 + $0x30] sm:$0xf]
      %v3194 = vld [vmem:[%s10 + $0x34] sm:$0xf]
      %v3195 = vld [vmem:[%s10 + $0x38] sm:$0xf]
      %v3196 = vld [vmem:[%s10 + $0x3c] sm:$0xf]
      %v3197 = vld [vmem:[%s10 + $0x40] sm:$0xf]
      %v3198 = vld [vmem:[%s10 + $0x44] sm:$0xf]
      %v3199 = vld [vmem:[%s10 + $0x48] sm:$0xf]
      %v3200 = vld [vmem:[%s10 + $0x4c] sm:$0xf]
      %v3201 = vld [vmem:[%s10 + $0x50] sm:$0xf]
      %v3202 = vld [vmem:[%s10 + $0x54] sm:$0xf]
      %v3203 = vld [vmem:[%s10 + $0x58] sm:$0xf]
      %v3204 = vld [vmem:[%s10 + $0x5c] sm:$0xf]
      %v3205 = vld [vmem:[%s10 + $0x60] sm:$0xf]
      %v3206 = vld [vmem:[%s10 + $0x64] sm:$0xf]
      %v3207 = vld [vmem:[%s10 + $0x68] sm:$0xf]
      %v3208 = vld [vmem:[%s10 + $0x6c] sm:$0xf]
      %v3209 = vld [vmem:[%s10 + $0x70] sm:$0xf]
      %v3210 = vld [vmem:[%s10 + $0x74] sm:$0xf]
      %v3211 = vld [vmem:[%s10 + $0x78] sm:$0xf]
      %v3212 = vld [vmem:[%s10 + $0x7c] sm:$0xf]
      %v3245 = vunpack.c.l.b16 %v3181
      %v3246 = vunpack.c.l.b16 %v3182
      %v3247 = vunpack.c.l.b16 %v3183
      %v3248 = vunpack.c.l.b16 %v3184
      %v3249 = vunpack.c.l.b16 %v3185
      %v3250 = vunpack.c.l.b16 %v3186
      %v3251 = vunpack.c.l.b16 %v3187
      %v3252 = vunpack.c.l.b16 %v3188
      %v3253 = vunpack.c.l.b16 %v3189
      %v3254 = vunpack.c.l.b16 %v3190
      %v3255 = vunpack.c.l.b16 %v3191
      %v3256 = vunpack.c.l.b16 %v3192
      %v3257 = vunpack.c.l.b16 %v3193
      %v3258 = vunpack.c.l.b16 %v3194
      %v3259 = vunpack.c.l.b16 %v3195
      %v3260 = vunpack.c.l.b16 %v3196
      %v3261 = vunpack.c.l.b16 %v3197
      %v3262 = vunpack.c.l.b16 %v3198
      %v3263 = vunpack.c.l.b16 %v3199
      %v3264 = vunpack.c.l.b16 %v3200
      %v3265 = vunpack.c.l.b16 %v3201
      %v3266 = vunpack.c.l.b16 %v3202
      %v3267 = vunpack.c.l.b16 %v3203
      %v3268 = vunpack.c.l.b16 %v3204
      %v3269 = vunpack.c.l.b16 %v3205
      %v3270 = vunpack.c.l.b16 %v3206
      %v3271 = vunpack.c.l.b16 %v3207
      %v3272 = vunpack.c.l.b16 %v3208
      %v3273 = vunpack.c.l.b16 %v3209
      %v3274 = vunpack.c.l.b16 %v3210
      %v3275 = vunpack.c.l.b16 %v3211
      %v3276 = vunpack.c.l.b16 %v3212
      %v3277 = vpack.c.b16 %v3246, %v3245
      %v3278 = vpack.c.b16 %v3248, %v3247
      %v3279 = vpack.c.b16 %v3250, %v3249
      %v3280 = vpack.c.b16 %v3252, %v3251
      %v3281 = vpack.c.b16 %v3254, %v3253
      %v3282 = vpack.c.b16 %v3256, %v3255
      %v3283 = vpack.c.b16 %v3258, %v3257
      %v3284 = vpack.c.b16 %v3260, %v3259
      %v3285 = vpack.c.b16 %v3262, %v3261
      %v3286 = vpack.c.b16 %v3264, %v3263
      %v3287 = vpack.c.b16 %v3266, %v3265
      %v3288 = vpack.c.b16 %v3268, %v3267
      %v3289 = vpack.c.b16 %v3270, %v3269
      %v3290 = vpack.c.b16 %v3272, %v3271
      %v3291 = vpack.c.b16 %v3274, %v3273
      %v3292 = vpack.c.b16 %v3276, %v3275
      %3309 = vmatprep.subr.bf16.mxu0 0
      %3310 = vmatpush1.bf16.msra.mxu0 %v3277
      %3311 = vmatprep.subr.bf16.mxu0 0
      %3312 = vmatpush1.bf16.msra.mxu0 %v3278
      %3313 = vmatprep.subr.bf16.mxu0 0
      %3314 = vmatpush1.bf16.msra.mxu0 %v3279
      %3315 = vmatprep.subr.bf16.mxu0 0
      %3316 = vmatpush1.bf16.msra.mxu0 %v3280
      %3317 = vmatprep.subr.bf16.mxu0 0
      %3318 = vmatpush1.bf16.msra.mxu0 %v3281
      %3319 = vmatprep.subr.bf16.mxu0 0
      %3320 = vmatpush1.bf16.msra.mxu0 %v3282
      %3321 = vmatprep.subr.bf16.mxu0 0
      %3322 = vmatpush1.bf16.msra.mxu0 %v3283
      %3323 = vmatprep.subr.bf16.mxu0 0
      %3324 = vmatpush1.bf16.msra.mxu0 %v3284
      %3325 = vmatprep.subr.bf16.mxu0 0
      %3326 = vmatpush1.bf16.msra.mxu0 %v3285
      %3327 = vmatprep.subr.bf16.mxu0 0
      %3328 = vmatpush1.bf16.msra.mxu0 %v3286
      %3329 = vmatprep.subr.bf16.mxu0 0
      %3330 = vmatpush1.bf16.msra.mxu0 %v3287
      %3331 = vmatprep.subr.bf16.mxu0 0
      %3332 = vmatpush1.bf16.msra.mxu0 %v3288
      %3333 = vmatprep.subr.bf16.mxu0 0
      %3334 = vmatpush1.bf16.msra.mxu0 %v3289
      %3335 = vmatprep.subr.bf16.mxu0 0
      %3336 = vmatpush1.bf16.msra.mxu0 %v3290
      %3337 = vmatprep.subr.bf16.mxu0 0
      %3338 = vmatpush1.bf16.msra.mxu0 %v3291
      %3339 = vmatprep.subr.bf16.mxu0 0
      %3340 = vmatpush1.bf16.msra.mxu0 %v3292
      %3341 = vmatprep.mubr.bf16.mxu0 %v3178
      %3342 = vmatmul.mubr.bf16.gmra.mrb[0].mxu0 %v3177
      %v3343 = vpop.f32.mrb[0].mxu0
      %v3344 = vadd.f32 0.0, %v3343
      %v3345 = vpop.f32.mrb[0].mxu0
      %v3346 = vpop.f32.mrb[0].mxu0
      %v3347 = vadd.f32 0.0, %v3346
      %v3348 = vpop.f32.mrb[0].mxu0
      %3349 = vmatprep.mubr.bf16.mxu0 %v3180
      %3350 = vmatmul.mubr.bf16.gmra.mrb[0].mxu0 %v3179
      %v3351 = vpop.f32.mrb[0].mxu0
      %v3352 = vadd.f32 0.0, %v3351
      %v3353 = vpop.f32.mrb[0].mxu0
      %v3354 = vpop.f32.mrb[0].mxu0
      %v3355 = vadd.f32 0.0, %v3354
      %v3356 = vpop.f32.mrb[0].mxu0
      %3357 = vdwg.mxu0
      %3358 = vrot.lane.b32.xlu0 %v3344, 9
      %v3359 = vpop.permute.xlu0 %3358
      %3360 = vrot.lane.b32.xlu0 %v3347, 9
      %v3361 = vpop.permute.xlu0 %3360
      %3362 = vrot.lane.b32.xlu0 %v3352, 9
      %v3363 = vpop.permute.xlu0 %3362
      %3364 = vrot.lane.b32.xlu0 %v3355, 9
      %v3365 = vpop.permute.xlu0 %3364
      %v3366 = vld [vmem:[%s14] sm:$0x1]
      %v3368 = vlaneseq
      %v3369 = vshrl.u32 %v3368, 7
      %v3370 = vsub.s32 0, %v3369
      %v3371 = vrot.slane %v3366, %v3370
      %v3373 = vmul.f32 %v3359, %v3371
      %v3374 = vmul.f32 %v3361, %v3371
      %v3375 = vmul.f32 %v3363, %v3371
      %v3376 = vmul.f32 %v3365, %v3371
      %3377 = vrot.lane.b32.xlu0 %v3344, 8
      %v3378 = vpop.permute.xlu0 %3377
      %3379 = vrot.lane.b32.xlu0 %v3347, 8
      %v3380 = vpop.permute.xlu0 %3379
      %3381 = vrot.lane.b32.xlu0 %v3352, 8
      %v3382 = vpop.permute.xlu0 %3381
      %3383 = vrot.lane.b32.xlu0 %v3355, 8
      %v3384 = vpop.permute.xlu0 %3383
      %s3385 = scalar_lea.vmem %s14, 1
      %v3386 = vld [vmem:[%s3385] sm:$0x1]
      %v3388 = vlaneseq
      %v3389 = vshrl.u32 %v3388, 7
      %v3390 = vsub.s32 0, %v3389
      %v3391 = vrot.slane %v3386, %v3390
      %v3393 = vmul.f32 %v3378, %v3391
      %v3394 = vmul.f32 %v3380, %v3391
      %v3395 = vmul.f32 %v3382, %v3391
      %v3396 = vmul.f32 %v3384, %v3391
      %3397 = vrot.lane.b32.xlu0 %v3344, 7
      %v3398 = vpop.permute.xlu0 %3397
      %3399 = vrot.lane.b32.xlu0 %v3347, 7
      %v3400 = vpop.permute.xlu0 %3399
      %3401 = vrot.lane.b32.xlu0 %v3352, 7
      %v3402 = vpop.permute.xlu0 %3401
      %3403 = vrot.lane.b32.xlu0 %v3355, 7
      %v3404 = vpop.permute.xlu0 %3403
      %s3405 = scalar_lea.vmem %s14, 2
      %v3406 = vld [vmem:[%s3405] sm:$0x1]
      %v3408 = vlaneseq
      %v3409 = vshrl.u32 %v3408, 7
      %v3410 = vsub.s32 0, %v3409
      %v3411 = vrot.slane %v3406, %v3410
      %v3413 = vmul.f32 %v3398, %v3411
      %v3414 = vmul.f32 %v3400, %v3411
      %v3415 = vmul.f32 %v3402, %v3411
      %v3416 = vmul.f32 %v3404, %v3411
      %3417 = vrot.lane.b32.xlu0 %v3344, 1
      %v3418 = vpop.permute.xlu0 %3417
      %3419 = vrot.lane.b32.xlu0 %v3347, 1
      %v3420 = vpop.permute.xlu0 %3419
      %3421 = vrot.lane.b32.xlu0 %v3352, 1
      %v3422 = vpop.permute.xlu0 %3421
      %3423 = vrot.lane.b32.xlu0 %v3355, 1
      %v3424 = vpop.permute.xlu0 %3423
      %s3425 = scalar_lea.vmem %s14, 3
      %v3426 = vld [vmem:[%s3425] sm:$0x1]
      %v3428 = vlaneseq
      %v3429 = vshrl.u32 %v3428, 7
      %v3430 = vsub.s32 0, %v3429
      %v3431 = vrot.slane %v3426, %v3430
      %v3433 = vmul.f32 %v3418, %v3431
      %v3434 = vmul.f32 %v3420, %v3431
      %v3435 = vmul.f32 %v3422, %v3431
      %v3436 = vmul.f32 %v3424, %v3431
      %s3437 = scalar_lea.vmem %s14, 4
      %v3438 = vld [vmem:[%s3437] sm:$0x1]
      %v3440 = vlaneseq
      %v3441 = vshrl.u32 %v3440, 7
      %v3442 = vsub.s32 0, %v3441
      %v3443 = vrot.slane %v3438, %v3442
      %v3445 = vmul.f32 %v3344, %v3443
      %v3446 = vmul.f32 %v3347, %v3443
      %v3447 = vmul.f32 %v3352, %v3443
      %v3448 = vmul.f32 %v3355, %v3443
      %3449 = vrot.lane.b32.xlu0 %v3344, 127
      %v3450 = vpop.permute.xlu0 %3449
      %3451 = vrot.lane.b32.xlu0 %v3347, 127
      %v3452 = vpop.permute.xlu0 %3451
      %3453 = vrot.lane.b32.xlu0 %v3352, 127
      %v3454 = vpop.permute.xlu0 %3453
      %3455 = vrot.lane.b32.xlu0 %v3355, 127
      %v3456 = vpop.permute.xlu0 %3455
      %s3457 = scalar_lea.vmem %s14, 5
      %v3458 = vld [vmem:[%s3457] sm:$0x1]
      %v3460 = vlaneseq
      %v3461 = vshrl.u32 %v3460, 7
      %v3462 = vsub.s32 0, %v3461
      %v3463 = vrot.slane %v3458, %v3462
      %v3465 = vmul.f32 %v3450, %v3463
      %v3466 = vmul.f32 %v3452, %v3463
      %v3467 = vmul.f32 %v3454, %v3463
      %v3468 = vmul.f32 %v3456, %v3463
      %3469 = vrot.lane.b32.xlu0 %v3344, 121
      %v3470 = vpop.permute.xlu0 %3469
      %3471 = vrot.lane.b32.xlu0 %v3347, 121
      %v3472 = vpop.permute.xlu0 %3471
      %3473 = vrot.lane.b32.xlu0 %v3352, 121
      %v3474 = vpop.permute.xlu0 %3473
      %3475 = vrot.lane.b32.xlu0 %v3355, 121
      %v3476 = vpop.permute.xlu0 %3475
      %s3477 = scalar_lea.vmem %s14, 6
      %v3478 = vld [vmem:[%s3477] sm:$0x1]
      %v3480 = vlaneseq
      %v3481 = vshrl.u32 %v3480, 7
      %v3482 = vsub.s32 0, %v3481
      %v3483 = vrot.slane %v3478, %v3482
      %v3485 = vmul.f32 %v3470, %v3483
      %v3486 = vmul.f32 %v3472, %v3483
      %v3487 = vmul.f32 %v3474, %v3483
      %v3488 = vmul.f32 %v3476, %v3483
      %3489 = vrot.lane.b32.xlu0 %v3344, 120
      %v3490 = vpop.permute.xlu0 %3489
      %3491 = vrot.lane.b32.xlu0 %v3347, 120
      %v3492 = vpop.permute.xlu0 %3491
      %3493 = vrot.lane.b32.xlu0 %v3352, 120
      %v3494 = vpop.permute.xlu0 %3493
      %3495 = vrot.lane.b32.xlu0 %v3355, 120
      %v3496 = vpop.permute.xlu0 %3495
      %s3497 = scalar_lea.vmem %s14, 7
      %v3498 = vld [vmem:[%s3497] sm:$0x1]
      %v3500 = vlaneseq
      %v3501 = vshrl.u32 %v3500, 7
      %v3502 = vsub.s32 0, %v3501
      %v3503 = vrot.slane %v3498, %v3502
      %v3505 = vmul.f32 %v3490, %v3503
      %v3506 = vmul.f32 %v3492, %v3503
      %v3507 = vmul.f32 %v3494, %v3503
      %v3508 = vmul.f32 %v3496, %v3503
      %3509 = vrot.lane.b32.xlu0 %v3344, 119
      %v3510 = vpop.permute.xlu0 %3509
      %3511 = vrot.lane.b32.xlu0 %v3347, 119
      %v3512 = vpop.permute.xlu0 %3511
      %3513 = vrot.lane.b32.xlu0 %v3352, 119
      %v3514 = vpop.permute.xlu0 %3513
      %3515 = vrot.lane.b32.xlu0 %v3355, 119
      %v3516 = vpop.permute.xlu0 %3515
      %s3517 = scalar_lea.vmem %s14, 8
      %v3518 = vld [vmem:[%s3517] sm:$0x1]
      %v3520 = vlaneseq
      %v3521 = vshrl.u32 %v3520, 7
      %v3522 = vsub.s32 0, %v3521
      %v3523 = vrot.slane %v3518, %v3522
      %v3525 = vmul.f32 %v3510, %v3523
      %v3526 = vmul.f32 %v3512, %v3523
      %v3527 = vmul.f32 %v3514, %v3523
      %v3528 = vmul.f32 %v3516, %v3523
      %v3529 = vpack.c.bf16 %v3374, %v3373
      %v3530 = vpack.c.bf16 %v3376, %v3375
      %v3531 = vpack.c.bf16 %v3394, %v3393
      %v3532 = vpack.c.bf16 %v3396, %v3395
      %v3533 = vpack.c.bf16 %v3414, %v3413
      %v3534 = vpack.c.bf16 %v3416, %v3415
      %v3535 = vpack.c.bf16 %v3434, %v3433
      %v3536 = vpack.c.bf16 %v3436, %v3435
      %v3537 = vpack.c.bf16 %v3446, %v3445
      %v3538 = vpack.c.bf16 %v3448, %v3447
      %v3539 = vpack.c.bf16 %v3466, %v3465
      %v3540 = vpack.c.bf16 %v3468, %v3467
      %v3541 = vpack.c.bf16 %v3486, %v3485
      %v3542 = vpack.c.bf16 %v3488, %v3487
      %v3543 = vpack.c.bf16 %v3506, %v3505
      %v3544 = vpack.c.bf16 %v3508, %v3507
      %v3545 = vpack.c.bf16 %v3526, %v3525
      %v3546 = vpack.c.bf16 %v3528, %v3527
      %v3547 = vld [vmem:[%s11] sm:$0xff]
      %v3548 = vld [vmem:[%s11 + $0x8] sm:$0xf]
      %v3549 = vld [vmem:[%s11 + $0xc] sm:$0xff]
      %v3550 = vld [vmem:[%s11 + $0x14] sm:$0xf]
      %v3551 = vld [vmem:[%s11 + $0x18] sm:$0xff]
      %v3552 = vld [vmem:[%s11 + $0x20] sm:$0xf]
      %v3553 = vld [vmem:[%s11 + $0x24] sm:$0xff]
      %v3554 = vld [vmem:[%s11 + $0x2c] sm:$0xf]
      %v3555 = vld [vmem:[%s11 + $0x30] sm:$0xff]
      %v3556 = vld [vmem:[%s11 + $0x38] sm:$0xf]
      %v3557 = vld [vmem:[%s11 + $0x3c] sm:$0xff]
      %v3558 = vld [vmem:[%s11 + $0x44] sm:$0xf]
      %v3559 = vld [vmem:[%s11 + $0x48] sm:$0xff]
      %v3560 = vld [vmem:[%s11 + $0x50] sm:$0xf]
      %v3561 = vld [vmem:[%s11 + $0x54] sm:$0xff]
      %v3562 = vld [vmem:[%s11 + $0x5c] sm:$0xf]
      %v3579 = vunpack.c.l.b16 %v3547
      %v3580 = vunpack.c.h.b16 %v3547
      %v3581 = vunpack.c.l.b16 %v3548
      %v3582 = vunpack.c.l.b16 %v3549
      %v3583 = vunpack.c.h.b16 %v3549
      %v3584 = vunpack.c.l.b16 %v3550
      %v3585 = vunpack.c.l.b16 %v3551
      %v3586 = vunpack.c.h.b16 %v3551
      %v3587 = vunpack.c.l.b16 %v3552
      %v3588 = vunpack.c.l.b16 %v3553
      %v3589 = vunpack.c.h.b16 %v3553
      %v3590 = vunpack.c.l.b16 %v3554
      %v3591 = vunpack.c.l.b16 %v3555
      %v3592 = vunpack.c.h.b16 %v3555
      %v3593 = vunpack.c.l.b16 %v3556
      %v3594 = vunpack.c.l.b16 %v3557
      %v3595 = vunpack.c.h.b16 %v3557
      %v3596 = vunpack.c.l.b16 %v3558
      %v3597 = vunpack.c.l.b16 %v3559
      %v3598 = vunpack.c.h.b16 %v3559
      %v3599 = vunpack.c.l.b16 %v3560
      %v3600 = vunpack.c.l.b16 %v3561
      %v3601 = vunpack.c.h.b16 %v3561
      %v3602 = vunpack.c.l.b16 %v3562
      %v3603 = vpack.c.b16 %v3582, %v3579
      %v3604 = vpack.c.b16 %v3583, %v3580
      %v3605 = vpack.c.b16 %v3584, %v3581
      %v3606 = vpack.c.b16 %v3588, %v3585
      %v3607 = vpack.c.b16 %v3589, %v3586
      %v3608 = vpack.c.b16 %v3590, %v3587
      %v3609 = vpack.c.b16 %v3594, %v3591
      %v3610 = vpack.c.b16 %v3595, %v3592
      %v3611 = vpack.c.b16 %v3596, %v3593
      %v3612 = vpack.c.b16 %v3600, %v3597
      %v3613 = vpack.c.b16 %v3601, %v3598
      %v3614 = vpack.c.b16 %v3602, %v3599
      %vm3623 = vcmask 261120
      %v3625 = vsel %vm3623, %v3605, 0
      %v3628 = vsel %vm3623, %v3608, 0
      %v3631 = vsel %vm3623, %v3611, 0
      %v3634 = vsel %vm3623, %v3614, 0
      %3636 = vmatprep.subr.bf16.mxu0 0
      %3637 = vmatpush1.bf16.msra.mxu0 %v3529
      %3638 = vmatprep.subr.bf16.mxu0 0
      %3639 = vmatpush1.bf16.msra.mxu0 %v3530
      %3640 = vmatprep.subr.bf16.mxu0 0
      %3641 = vmatpush1.bf16.msra.mxu0 %v3531
      %3642 = vmatprep.subr.bf16.mxu0 0
      %3643 = vmatpush1.bf16.msra.mxu0 %v3532
      %3644 = vmatprep.subr.bf16.mxu0 0
      %3645 = vmatpush1.bf16.msra.mxu0 %v3533
      %3646 = vmatprep.subr.bf16.mxu0 0
      %3647 = vmatpush1.bf16.msra.mxu0 %v3534
      %3648 = vmatprep.subr.bf16.mxu0 0
      %3649 = vmatpush1.bf16.msra.mxu0 %v3535
      %3650 = vmatprep.subr.bf16.mxu0 0
      %3651 = vmatpush1.bf16.msra.mxu0 %v3536
      %3652 = vmatprep.subr.bf16.mxu0 0
      %3653 = vmatpush1.bf16.msra.mxu0 %v3537
      %3654 = vmatprep.subr.bf16.mxu0 0
      %3655 = vmatpush1.bf16.msra.mxu0 %v3538
      %3656 = vmatprep.subr.bf16.mxu0 0
      %3657 = vmatpush1.bf16.msra.mxu0 %v3539
      %3658 = vmatprep.subr.bf16.mxu0 0
      %3659 = vmatpush1.bf16.msra.mxu0 %v3540
      %3660 = vmatprep.subr.bf16.mxu0 0
      %3661 = vmatpush1.bf16.msra.mxu0 %v3541
      %3662 = vmatprep.subr.bf16.mxu0 0
      %3663 = vmatpush1.bf16.msra.mxu0 %v3542
      %3664 = vmatprep.subr.bf16.mxu0 0
      %3665 = vmatpush1.bf16.msra.mxu0 %v3543
      %3666 = vmatprep.subr.bf16.mxu0 0
      %3667 = vmatpush1.bf16.msra.mxu0 %v3544
      %3668 = vmatprep.mubr.bf16.mxu0 %v3604
      %3669 = vmatmul.mubr.bf16.gmra.mrb[0].mxu0 %v3603
      %v3670 = vpop.f32.mrb[0].mxu0
      %v3671 = vadd.f32 0.0, %v3670
      %v3672 = vpop.f32.mrb[0].mxu0
      %v3673 = vpop.f32.mrb[0].mxu0
      %v3674 = vadd.f32 0.0, %v3673
      %v3675 = vpop.f32.mrb[0].mxu0
      %3676 = vmatprep.mubr.bf16.mxu0 %v3607
      %3677 = vmatmul.mubr.bf16.gmra.mrb[0].mxu0 %v3606
      %v3678 = vpop.f32.mrb[0].mxu0
      %v3679 = vadd.f32 0.0, %v3678
      %v3680 = vpop.f32.mrb[0].mxu0
      %v3681 = vpop.f32.mrb[0].mxu0
      %v3682 = vadd.f32 0.0, %v3681
      %v3683 = vpop.f32.mrb[0].mxu0
      %3684 = vmatprep.mubr.bf16.mxu0 %v3610
      %3685 = vmatmul.mubr.bf16.gmra.mrb[0].mxu0 %v3609
      %v3686 = vpop.f32.mrb[0].mxu0
      %v3687 = vadd.f32 0.0, %v3686
      %v3688 = vpop.f32.mrb[0].mxu0
      %v3689 = vpop.f32.mrb[0].mxu0
      %v3690 = vadd.f32 0.0, %v3689
      %v3691 = vpop.f32.mrb[0].mxu0
      %3692 = vmatprep.mubr.bf16.mxu0 %v3613
      %3693 = vmatmul.mubr.bf16.gmra.mrb[0].mxu0 %v3612
      %v3694 = vpop.f32.mrb[0].mxu0
      %v3695 = vadd.f32 0.0, %v3694
      %v3696 = vpop.f32.mrb[0].mxu0
      %v3697 = vpop.f32.mrb[0].mxu0
      %v3698 = vadd.f32 0.0, %v3697
      %v3699 = vpop.f32.mrb[0].mxu0
      %3700 = vdwg.mxu0
      %3701 = vmatprep.subr.bf16.mxu0 0
      %3702 = vmatpush1.bf16.msra.mxu0 %v3545
      %3703 = vmatprep.subr.bf16.mxu0 0
      %3704 = vmatpush1.bf16.msra.mxu0 %v3546
      %3705 = vmatprep.subr.bf16.mxu0 0
      %3706 = vmatpush1.bf16.msra.mxu0 0
      %3707 = vmatprep.subr.bf16.mxu0 0
      %3708 = vmatpush1.bf16.msra.mxu0 0
      %3709 = vmatprep.subr.bf16.mxu0 0
      %3710 = vmatpush1.bf16.msra.mxu0 0
      %3711 = vmatprep.subr.bf16.mxu0 0
      %3712 = vmatpush1.bf16.msra.mxu0 0
      %3713 = vmatprep.subr.bf16.mxu0 0
      %3714 = vmatpush1.bf16.msra.mxu0 0
      %3715 = vmatprep.subr.bf16.mxu0 0
      %3716 = vmatpush1.bf16.msra.mxu0 0
      %3717 = vmatprep.subr.bf16.mxu0 0
      %3718 = vmatpush1.bf16.msra.mxu0 0
      %3719 = vmatprep.subr.bf16.mxu0 0
      %3720 = vmatpush1.bf16.msra.mxu0 0
      %3721 = vmatprep.subr.bf16.mxu0 0
      %3722 = vmatpush1.bf16.msra.mxu0 0
      %3723 = vmatprep.subr.bf16.mxu0 0
      %3724 = vmatpush1.bf16.msra.mxu0 0
      %3725 = vmatprep.subr.bf16.mxu0 0
      %3726 = vmatpush1.bf16.msra.mxu0 0
      %3727 = vmatprep.subr.bf16.mxu0 0
      %3728 = vmatpush1.bf16.msra.mxu0 0
      %3729 = vmatprep.subr.bf16.mxu0 0
      %3730 = vmatpush1.bf16.msra.mxu0 0
      %3731 = vmatprep.subr.bf16.mxu0 0
      %3732 = vmatpush1.bf16.msra.mxu0 0
      %3733 = vmatprep.mubr.bf16.mxu0 0
      %3734 = vmatmul.mubr.bf16.gmra.mrb[0].mxu0 %v3625
      %v3735 = vpop.f32.mrb[0].mxu0
      %v3736 = vadd.f32 %v3671, %v3735
      %v3737 = vpop.f32.mrb[0].mxu0
      %v3738 = vpop.f32.mrb[0].mxu0
      %v3739 = vadd.f32 %v3674, %v3738
      %v3740 = vpop.f32.mrb[0].mxu0
      %3741 = vmatprep.mubr.bf16.mxu0 0
      %3742 = vmatmul.mubr.bf16.gmra.mrb[0].mxu0 %v3628
      %v3743 = vpop.f32.mrb[0].mxu0
      %v3744 = vadd.f32 %v3679, %v3743
      %v3745 = vpop.f32.mrb[0].mxu0
      %v3746 = vpop.f32.mrb[0].mxu0
      %v3747 = vadd.f32 %v3682, %v3746
      %v3748 = vpop.f32.mrb[0].mxu0
      %3749 = vmatprep.mubr.bf16.mxu0 0
      %3750 = vmatmul.mubr.bf16.gmra.mrb[0].mxu0 %v3631
      %v3751 = vpop.f32.mrb[0].mxu0
      %v3752 = vadd.f32 %v3687, %v3751
      %v3753 = vpop.f32.mrb[0].mxu0
      %v3754 = vpop.f32.mrb[0].mxu0
      %v3755 = vadd.f32 %v3690, %v3754
      %v3756 = vpop.f32.mrb[0].mxu0
      %3757 = vmatprep.mubr.bf16.mxu0 0
      %3758 = vmatmul.mubr.bf16.gmra.mrb[0].mxu0 %v3634
      %v3759 = vpop.f32.mrb[0].mxu0
      %v3760 = vadd.f32 %v3695, %v3759
      %v3761 = vpop.f32.mrb[0].mxu0
      %v3762 = vpop.f32.mrb[0].mxu0
      %v3763 = vadd.f32 %v3698, %v3762
      %v3764 = vpop.f32.mrb[0].mxu0
      %3765 = vdwg.mxu0
      %v3766 = vld [vmem:[%s12] sm:$0xff]
      %v3767 = vld [vmem:[%s12 + $0x8] sm:$0xff]
      %v3768 = vld [vmem:[%s12 + $0x10] sm:$0xff]
      %v3769 = vld [vmem:[%s12 + $0x18] sm:$0xff]
      %v3770 = vld [vmem:[%s12 + $0x20] sm:$0xff]
      %v3771 = vld [vmem:[%s12 + $0x28] sm:$0xff]
      %v3772 = vld [vmem:[%s12 + $0x30] sm:$0xff]
      %v3773 = vld [vmem:[%s12 + $0x38] sm:$0xff]
      %3775 = vset.pattern.permute.xlu0 0
      %3776 = vperm.xlu0 %3775, %v3766
      %v3777 = vpop.permute.xlu0 %3776
      %3780 = vset.pattern.permute.xlu0 0
      %3781 = vperm.xlu0 %3780, %v3767
      %v3782 = vpop.permute.xlu0 %3781
      %3785 = vset.pattern.permute.xlu0 0
      %3786 = vperm.xlu0 %3785, %v3768
      %v3787 = vpop.permute.xlu0 %3786
      %3790 = vset.pattern.permute.xlu0 0
      %3791 = vperm.xlu0 %3790, %v3769
      %v3792 = vpop.permute.xlu0 %3791
      %3795 = vset.pattern.permute.xlu0 0
      %3796 = vperm.xlu0 %3795, %v3770
      %v3797 = vpop.permute.xlu0 %3796
      %3800 = vset.pattern.permute.xlu0 0
      %3801 = vperm.xlu0 %3800, %v3771
      %v3802 = vpop.permute.xlu0 %3801
      %3805 = vset.pattern.permute.xlu0 0
      %3806 = vperm.xlu0 %3805, %v3772
      %v3807 = vpop.permute.xlu0 %3806
      %3810 = vset.pattern.permute.xlu0 0
      %3811 = vperm.xlu0 %3810, %v3773
      %v3812 = vpop.permute.xlu0 %3811
      %v3814 = vmul.f32 %v3736, %v3777
      %v3815 = vmul.f32 %v3739, %v3782
      %v3816 = vmul.f32 %v3744, %v3787
      %v3817 = vmul.f32 %v3747, %v3792
      %v3818 = vmul.f32 %v3752, %v3797
      %v3819 = vmul.f32 %v3755, %v3802
      %v3820 = vmul.f32 %v3760, %v3807
      %v3821 = vmul.f32 %v3763, %v3812
      %v3822 = vld [vmem:[%s13] sm:$0xff]
      %v3823 = vld [vmem:[%s13 + $0x8] sm:$0xff]
      %v3824 = vld [vmem:[%s13 + $0x10] sm:$0xff]
      %v3825 = vld [vmem:[%s13 + $0x18] sm:$0xff]
      %v3826 = vld [vmem:[%s13 + $0x20] sm:$0xff]
      %v3827 = vld [vmem:[%s13 + $0x28] sm:$0xff]
      %v3828 = vld [vmem:[%s13 + $0x30] sm:$0xff]
      %v3829 = vld [vmem:[%s13 + $0x38] sm:$0xff]
      %3831 = vset.pattern.permute.xlu0 0
      %3832 = vperm.xlu0 %3831, %v3822
      %v3833 = vpop.permute.xlu0 %3832
      %3836 = vset.pattern.permute.xlu0 0
      %3837 = vperm.xlu0 %3836, %v3823
      %v3838 = vpop.permute.xlu0 %3837
      %3841 = vset.pattern.permute.xlu0 0
      %3842 = vperm.xlu0 %3841, %v3824
      %v3843 = vpop.permute.xlu0 %3842
      %3846 = vset.pattern.permute.xlu0 0
      %3847 = vperm.xlu0 %3846, %v3825
      %v3848 = vpop.permute.xlu0 %3847
      %3851 = vset.pattern.permute.xlu0 0
      %3852 = vperm.xlu0 %3851, %v3826
      %v3853 = vpop.permute.xlu0 %3852
      %3856 = vset.pattern.permute.xlu0 0
      %3857 = vperm.xlu0 %3856, %v3827
      %v3858 = vpop.permute.xlu0 %3857
      %3861 = vset.pattern.permute.xlu0 0
      %3862 = vperm.xlu0 %3861, %v3828
      %v3863 = vpop.permute.xlu0 %3862
      %3866 = vset.pattern.permute.xlu0 0
      %3867 = vperm.xlu0 %3866, %v3829
      %v3868 = vpop.permute.xlu0 %3867
      %v3870 = vadd.f32 %v3814, %v3833
      %v3871 = vadd.f32 %v3815, %v3838
      %v3872 = vadd.f32 %v3816, %v3843
      %v3873 = vadd.f32 %v3817, %v3848
      %v3874 = vadd.f32 %v3818, %v3853
      %v3875 = vadd.f32 %v3819, %v3858
      %v3876 = vadd.f32 %v3820, %v3863
      %v3877 = vadd.f32 %v3821, %v3868
      %v3878 = vmax.f32 %v3870, 0.0
      %v3879 = vmax.f32 %v3871, 0.0
      %v3880 = vmax.f32 %v3872, 0.0
      %v3881 = vmax.f32 %v3873, 0.0
      %v3882 = vmax.f32 %v3874, 0.0
      %v3883 = vmax.f32 %v3875, 0.0
      %v3884 = vmax.f32 %v3876, 0.0
      %v3885 = vmax.f32 %v3877, 0.0
      %3886 = vrot.lane.b32.xlu0 %v3878, 127
      %v3887 = vpop.permute.xlu0 %3886
      %3888 = vrot.lane.b32.xlu0 %v3879, 127
      %v3889 = vpop.permute.xlu0 %3888
      %3890 = vrot.lane.b32.xlu0 %v3880, 127
      %v3891 = vpop.permute.xlu0 %3890
      %3892 = vrot.lane.b32.xlu0 %v3881, 127
      %v3893 = vpop.permute.xlu0 %3892
      %3894 = vrot.lane.b32.xlu0 %v3882, 127
      %v3895 = vpop.permute.xlu0 %3894
      %3896 = vrot.lane.b32.xlu0 %v3883, 127
      %v3897 = vpop.permute.xlu0 %3896
      %3898 = vrot.lane.b32.xlu0 %v3884, 127
      %v3899 = vpop.permute.xlu0 %3898
      %3900 = vrot.lane.b32.xlu0 %v3885, 127
      %v3901 = vpop.permute.xlu0 %3900
      %v3902 = vmax.f32 %v3878, %v3887
      %v3903 = vmax.f32 %v3879, %v3889
      %v3904 = vmax.f32 %v3880, %v3891
      %v3905 = vmax.f32 %v3881, %v3893
      %v3906 = vmax.f32 %v3882, %v3895
      %v3907 = vmax.f32 %v3883, %v3897
      %v3908 = vmax.f32 %v3884, %v3899
      %v3909 = vmax.f32 %v3885, %v3901
      %3910 = vrot.lane.b32.xlu0 %v3878, 120
      %v3911 = vpop.permute.xlu0 %3910
      %3912 = vrot.lane.b32.xlu0 %v3879, 120
      %v3913 = vpop.permute.xlu0 %3912
      %3914 = vrot.lane.b32.xlu0 %v3880, 120
      %v3915 = vpop.permute.xlu0 %3914
      %3916 = vrot.lane.b32.xlu0 %v3881, 120
      %v3917 = vpop.permute.xlu0 %3916
      %3918 = vrot.lane.b32.xlu0 %v3882, 120
      %v3919 = vpop.permute.xlu0 %3918
      %3920 = vrot.lane.b32.xlu0 %v3883, 120
      %v3921 = vpop.permute.xlu0 %3920
      %3922 = vrot.lane.b32.xlu0 %v3884, 120
      %v3923 = vpop.permute.xlu0 %3922
      %3924 = vrot.lane.b32.xlu0 %v3885, 120
      %v3925 = vpop.permute.xlu0 %3924
      %v3926 = vmax.f32 %v3902, %v3911
      %v3927 = vmax.f32 %v3903, %v3913
      %v3928 = vmax.f32 %v3904, %v3915
      %v3929 = vmax.f32 %v3905, %v3917
      %v3930 = vmax.f32 %v3906, %v3919
      %v3931 = vmax.f32 %v3907, %v3921
      %v3932 = vmax.f32 %v3908, %v3923
      %v3933 = vmax.f32 %v3909, %v3925
      %3934 = vrot.lane.b32.xlu0 %v3878, 119
      %v3935 = vpop.permute.xlu0 %3934
      %3936 = vrot.lane.b32.xlu0 %v3879, 119
      %v3937 = vpop.permute.xlu0 %3936
      %3938 = vrot.lane.b32.xlu0 %v3880, 119
      %v3939 = vpop.permute.xlu0 %3938
      %3940 = vrot.lane.b32.xlu0 %v3881, 119
      %v3941 = vpop.permute.xlu0 %3940
      %3942 = vrot.lane.b32.xlu0 %v3882, 119
      %v3943 = vpop.permute.xlu0 %3942
      %3944 = vrot.lane.b32.xlu0 %v3883, 119
      %v3945 = vpop.permute.xlu0 %3944
      %3946 = vrot.lane.b32.xlu0 %v3884, 119
      %v3947 = vpop.permute.xlu0 %3946
      %3948 = vrot.lane.b32.xlu0 %v3885, 119
      %v3949 = vpop.permute.xlu0 %3948
      %v3950 = vmax.f32 %v3926, %v3935
      %v3951 = vmax.f32 %v3927, %v3937
      %v3952 = vmax.f32 %v3928, %v3939
      %v3953 = vmax.f32 %v3929, %v3941
      %v3954 = vmax.f32 %v3930, %v3943
      %v3955 = vmax.f32 %v3931, %v3945
      %v3956 = vmax.f32 %v3932, %v3947
      %v3957 = vmax.f32 %v3933, %v3949
      %v3958 = vpack.c.bf16 %v3951, %v3950
      %v3959 = vpack.c.bf16 %v3953, %v3952
      %v3960 = vpack.c.bf16 %v3955, %v3954
      %v3961 = vpack.c.bf16 %v3957, %v3956
      %v3962 = vld [vmem:[%s15] sm:$0xf]
      %v3963 = vld [vmem:[%s15 + $0x4] sm:$0xf]
      %v3964 = vld [vmem:[%s15 + $0x8] sm:$0xf]
      %v3965 = vld [vmem:[%s15 + $0xc] sm:$0xf]
      %v3966 = vld [vmem:[%s15 + $0x10] sm:$0xf]
      %v3967 = vld [vmem:[%s15 + $0x14] sm:$0xf]
      %v3968 = vld [vmem:[%s15 + $0x18] sm:$0xf]
      %v3969 = vld [vmem:[%s15 + $0x1c] sm:$0xf]
      %v3970 = vld [vmem:[%s15 + $0x20] sm:$0xf]
      %v3971 = vld [vmem:[%s15 + $0x24] sm:$0xf]
      %v3972 = vld [vmem:[%s15 + $0x28] sm:$0xf]
      %v3973 = vld [vmem:[%s15 + $0x2c] sm:$0xf]
      %v3974 = vld [vmem:[%s15 + $0x30] sm:$0xf]
      %v3975 = vld [vmem:[%s15 + $0x34] sm:$0xf]
      %v3976 = vld [vmem:[%s15 + $0x38] sm:$0xf]
      %v3977 = vld [vmem:[%s15 + $0x3c] sm:$0xf]
      %v3994 = vunpack.c.l.b16 %v3962
      %v3995 = vunpack.c.l.b16 %v3963
      %v3996 = vunpack.c.l.b16 %v3964
      %v3997 = vunpack.c.l.b16 %v3965
      %v3998 = vunpack.c.l.b16 %v3966
      %v3999 = vunpack.c.l.b16 %v3967
      %v4000 = vunpack.c.l.b16 %v3968
      %v4001 = vunpack.c.l.b16 %v3969
      %v4002 = vunpack.c.l.b16 %v3970
      %v4003 = vunpack.c.l.b16 %v3971
      %v4004 = vunpack.c.l.b16 %v3972
      %v4005 = vunpack.c.l.b16 %v3973
      %v4006 = vunpack.c.l.b16 %v3974
      %v4007 = vunpack.c.l.b16 %v3975
      %v4008 = vunpack.c.l.b16 %v3976
      %v4009 = vunpack.c.l.b16 %v3977
      %v4010 = vpack.c.b16 %v3995, %v3994
      %v4011 = vpack.c.b16 %v3997, %v3996
      %v4012 = vpack.c.b16 %v3999, %v3998
      %v4013 = vpack.c.b16 %v4001, %v4000
      %v4014 = vpack.c.b16 %v4003, %v4002
      %v4015 = vpack.c.b16 %v4005, %v4004
      %v4016 = vpack.c.b16 %v4007, %v4006
      %v4017 = vpack.c.b16 %v4009, %v4008
      %4026 = vmatprep.subr.bf16.mxu0 0
      %4027 = vmatpush1.bf16.msra.mxu0 %v4010
      %4028 = vmatprep.subr.bf16.mxu0 0
      %4029 = vmatpush1.bf16.msra.mxu0 %v4011
      %4030 = vmatprep.subr.bf16.mxu0 0
      %4031 = vmatpush1.bf16.msra.mxu0 %v4012
      %4032 = vmatprep.subr.bf16.mxu0 0
      %4033 = vmatpush1.bf16.msra.mxu0 %v4013
      %4034 = vmatprep.subr.bf16.mxu0 0
      %4035 = vmatpush1.bf16.msra.mxu0 %v4014
      %4036 = vmatprep.subr.bf16.mxu0 0
      %4037 = vmatpush1.bf16.msra.mxu0 %v4015
      %4038 = vmatprep.subr.bf16.mxu0 0
      %4039 = vmatpush1.bf16.msra.mxu0 %v4016
      %4040 = vmatprep.subr.bf16.mxu0 0
      %4041 = vmatpush1.bf16.msra.mxu0 %v4017
      %4042 = vmatprep.subr.bf16.mxu0 0
      %4043 = vmatpush1.bf16.msra.mxu0 0
      %4044 = vmatprep.subr.bf16.mxu0 0
      %4045 = vmatpush1.bf16.msra.mxu0 0
      %4046 = vmatprep.subr.bf16.mxu0 0
      %4047 = vmatpush1.bf16.msra.mxu0 0
      %4048 = vmatprep.subr.bf16.mxu0 0
      %4049 = vmatpush1.bf16.msra.mxu0 0
      %4050 = vmatprep.subr.bf16.mxu0 0
      %4051 = vmatpush1.bf16.msra.mxu0 0
      %4052 = vmatprep.subr.bf16.mxu0 0
      %4053 = vmatpush1.bf16.msra.mxu0 0
      %4054 = vmatprep.subr.bf16.mxu0 0
      %4055 = vmatpush1.bf16.msra.mxu0 0
      %4056 = vmatprep.subr.bf16.mxu0 0
      %4057 = vmatpush1.bf16.msra.mxu0 0
      %4058 = vmatprep.mubr.bf16.mxu0 0
      %4059 = vmatmul.mubr.bf16.gmra.mrb[0].mxu0 %v3958
      %v4060 = vpop.f32.mrb[0].mxu0
      %v4061 = vadd.f32 0.0, %v4060
      %v4062 = vpop.f32.mrb[0].mxu0
      %v4063 = vpop.f32.mrb[0].mxu0
      %v4064 = vadd.f32 0.0, %v4063
      %v4065 = vpop.f32.mrb[0].mxu0
      %4066 = vmatprep.mubr.bf16.mxu0 0
      %4067 = vmatmul.mubr.bf16.gmra.mrb[0].mxu0 %v3959
      %v4068 = vpop.f32.mrb[0].mxu0
      %v4069 = vadd.f32 0.0, %v4068
      %v4070 = vpop.f32.mrb[0].mxu0
      %v4071 = vpop.f32.mrb[0].mxu0
      %v4072 = vadd.f32 0.0, %v4071
      %v4073 = vpop.f32.mrb[0].mxu0
      %4074 = vmatprep.mubr.bf16.mxu0 0
      %4075 = vmatmul.mubr.bf16.gmra.mrb[0].mxu0 %v3960
      %v4076 = vpop.f32.mrb[0].mxu0
      %v4077 = vadd.f32 0.0, %v4076
      %v4078 = vpop.f32.mrb[0].mxu0
      %v4079 = vpop.f32.mrb[0].mxu0
      %v4080 = vadd.f32 0.0, %v4079
      %v4081 = vpop.f32.mrb[0].mxu0
      %4082 = vmatprep.mubr.bf16.mxu0 0
      %4083 = vmatmul.mubr.bf16.gmra.mrb[0].mxu0 %v3961
      %v4084 = vpop.f32.mrb[0].mxu0
      %v4085 = vadd.f32 0.0, %v4084
      %v4086 = vpop.f32.mrb[0].mxu0
      %v4087 = vpop.f32.mrb[0].mxu0
      %v4088 = vadd.f32 0.0, %v4087
      %v4089 = vpop.f32.mrb[0].mxu0
      %4090 = vdwg.mxu0
      %4091 = vst [vmem:[%s521] sm:$0xff] %v4061
      %4092 = vst [vmem:[%s521 + $0x8] sm:$0xff] %v4064
      %4093 = vst [vmem:[%s521 + $0x10] sm:$0xff] %v4069
      %4094 = vst [vmem:[%s521 + $0x18] sm:$0xff] %v4072
      %4095 = vst [vmem:[%s521 + $0x20] sm:$0xff] %v4077
      %4096 = vst [vmem:[%s521 + $0x28] sm:$0xff] %v4080
      %4097 = vst [vmem:[%s521 + $0x30] sm:$0xff] %v4085
      %4098 = vst [vmem:[%s521 + $0x38] sm:$0xff] %v4088
      %p4099 = scmp.lt.s32.totalorder %s27, 1
      %s4100 = scalar_select %p4099, %s27, 1
      %s4101 = smul.addr %s4100, 8
      %s4102 = smul.addr %s4101, 8
      %s4103 = scalar_lea.vmem %s16, %s4102
      // Predicated region
      $region85: #{image_cnn_forward.2} parent=83 // pred_check
        %p4104 = pneg %p386
      $region86: #{image_cnn_forward.2} parent=83 // pred_check_branch
        %4106 = sbr.rel (%p4104) target = $region88
      $region87: #{image_cnn_forward.2} parent=83 // pred_region
        _
      $region88: #{image_cnn_forward.2} parent=83 // pred_fallthru
        _
    $region84: #{image_cnn_forward.2} parent=5 // pred_fallthru
      _
    %p4107 = scmp.le.s32.totalorder 2, %s22
    // Predicated region
    $region89: #{image_cnn_forward.2} parent=5 // pred_check
      %p4108 = pneg %p4107
    $region90: #{image_cnn_forward.2} parent=5 // pred_check_branch
      %4110 = sbr.rel (%p4108) target = $region92
    $region91: #{image_cnn_forward.2} parent=5 // pred_region
      %s4111 = ssub.s32 %s22, 2
      // Predicated region
      $region93: #{image_cnn_forward.2} parent=91 // pred_check
        %p4112 = pneg %p392
      $region94: #{image_cnn_forward.2} parent=91 // pred_check_branch
        %4114 = sbr.rel (%p4112) target = $region96
      $region95: #{image_cnn_forward.2} parent=91 // pred_region
        %p4115 = scmp.lt.s32.totalorder %s28, 1
        %s4116 = scalar_select %p4115, %s28, 1
        %s4117 = smul.addr %s4116, 8
        %s4118 = smul.addr %s4117, 8
        %s4119 = scalar_lea.vmem %s16, %s4118
      $region96: #{image_cnn_forward.2} parent=91 // pred_fallthru
        _
    $region92: #{image_cnn_forward.2} parent=5 // pred_fallthru
      _
  $region6: #{image_cnn_forward.2} parent=0 // loop_footer
    %s26 = sadd.s32 1, %s22
  $region7: #{image_cnn_forward.2} parent=0 // loop_footer_branch
    %21 = sbr.rel target = $region3
  $region8: #{image_cnn_forward.2} parent=0 // loop_exit
    _

</llo_original>
